<compile_context>
chip_gen: v7x
topology: tpu7x:2x2x1
jax: 0.10.0
libtpu: 0.0.40
codegen_flags: <defaults>
</compile_context>

<pallas_src>
import functools
import math

import jax
import jax.numpy as jnp
from jax import lax
from jax.experimental import pallas as pl
from jax.experimental.pallas import tpu as pltpu


# ----------------------------------------------------------------------------- utils
def _round_up(x, m):
    return (x + m - 1) // m * m


def _padded_2d_bytes(rows, cols, itemsize):
    """VMEM footprint of a (rows, cols) tile after (8,128) layout padding."""
    return _round_up(max(int(rows), 1), 8) * _round_up(max(int(cols), 1), 128) * itemsize


def _pick_unroll(T, B, H):
    """Cap fori_loop unroll so the per-step live gate slab stays within ~96 KiB
    of the 256 KiB vreg file (avoids VMEM spills in the hot recurrence loop)."""
    per_step = max(1, B * 4 * H * 4)          # (B, 4H) f32 gate slab per unrolled step
    return int(max(1, min(T, (96 * 1024) // per_step)))


_FUSED_VMEM_BUDGET = 30 * 1024 * 1024         # fused path allowed resident set
_LAYER_VMEM_BUDGET = 28 * 1024 * 1024         # fallback per-layer resident budget
_VMEM_LIMIT_BYTES = 48 * 1024 * 1024          # safe on v5e/v6e (128 MiB) and v7x (64 MiB)


# ======================================================================== fused kernel
def _fused_lstm_kernel(*refs, num_layers, T, B, D0, H, O, unroll, w_dtype):
    """Whole model in one kernel: all layers' recurrences + FC head.

    refs = [x, (wih_t, whh_t, b) * L, fc_wt, fc_b,   # inputs
            out, hN, cN,                             # outputs
            seq, gx]                                 # VMEM scratch
    """
    n_in = 1 + 3 * num_layers + 2
    x_ref = refs[0]
    layer_refs = refs[1:1 + 3 * num_layers]
    fc_wt_ref = refs[1 + 3 * num_layers]
    fc_b_ref = refs[2 + 3 * num_layers]
    out_ref, hN_ref, cN_ref = refs[n_in:n_in + 3]
    seq_ref, gx_ref = refs[n_in + 3:n_in + 5]

    G = 4 * H
    h_fin = None
    for layer in range(num_layers):                       # static unrolled layer loop
        wih_t_ref = layer_refs[3 * layer + 0]
        whh_t_ref = layer_refs[3 * layer + 1]
        b_ref = layer_refs[3 * layer + 2]
        d_in = D0 if layer == 0 else H
        src_ref = x_ref if layer == 0 else seq_ref        # previous layer's h sequence

        # Hoisted input projection for the whole sequence: ONE MXU matmul,
        # result parked in VMEM scratch (gx_ref) for cheap per-step ref reads.
        in_flat = src_ref[...].reshape(T * B, d_in).astype(w_dtype)
        gx_ref[...] = (jnp.dot(in_flat, wih_t_ref[...],
                               preferred_element_type=jnp.float32)
                       + b_ref[...]).reshape(T, B, G)

        def step(t, carry, _whh_ref=whh_t_ref):
            h, c = carry
            gates = gx_ref[t] + jnp.dot(h.astype(w_dtype), _whh_ref[...],
                                        preferred_element_type=jnp.float32)
            i_g = jax.nn.sigmoid(gates[:, 0 * H:1 * H])
            f_g = jax.nn.sigmoid(gates[:, 1 * H:2 * H])
            g_g = jnp.tanh(gates[:, 2 * H:3 * H])
            o_g = jax.nn.sigmoid(gates[:, 3 * H:4 * H])
            c_new = f_g * c + i_g * g_g
            h_new = o_g * jnp.tanh(c_new)
            seq_ref[t] = h_new                            # stays in VMEM for next layer
            return h_new, c_new

        zero = jnp.zeros((B, H), jnp.float32)
        h_fin, c_fin = lax.fori_loop(0, T, step, (zero, zero), unroll=unroll)
        hN_ref[layer] = h_fin
        cN_ref[layer] = c_fin

    # FC head folded into the same kernel (fc(output)[:, -1, :] == fc(h_T of last layer)).
    out_ref[...] = (jnp.dot(h_fin.astype(w_dtype), fc_wt_ref[...],
                            preferred_element_type=jnp.float32)
                    + fc_b_ref[...]).astype(out_ref.dtype)


def _fused_vmem_estimate(T, B, D0, H, L, O, w_bytes):
    total = T * _padded_2d_bytes(B, D0, 4)                # x
    total += T * _padded_2d_bytes(B, H, 4)                # seq scratch
    total += T * _padded_2d_bytes(B, 4 * H, 4)            # gx scratch
    for layer in range(L):
        d_in = D0 if layer == 0 else H
        total += _padded_2d_bytes(d_in, 4 * H, w_bytes)   # w_ih^T
        total += _padded_2d_bytes(H, 4 * H, w_bytes)      # w_hh^T
        total += _padded_2d_bytes(1, 4 * H, 4)            # bias
    total += _padded_2d_bytes(H, O, w_bytes) + _padded_2d_bytes(1, O, 4)
    total += _padded_2d_bytes(B, O, 4) + 2 * L * _padded_2d_bytes(B, H, 4)
    return total


def _fused_forward(x_tm, params, *, w_dtype):
    T, B, D0 = x_tm.shape
    H = params["lstm"][0][1].shape[1]                     # w_hh: (4H, H)
    L = len(params["lstm"])
    O = params["fc_w"].shape[0]

    args = [x_tm]
    for (w_ih, w_hh, b_ih, b_hh) in params["lstm"]:
        args.append(jnp.transpose(w_ih).astype(w_dtype))          # (D_in, 4H)
        args.append(jnp.transpose(w_hh).astype(w_dtype))          # (H, 4H)
        args.append((b_ih + b_hh).reshape(1, 4 * H).astype(jnp.float32))
    args.append(jnp.transpose(params["fc_w"]).astype(w_dtype))    # (H, O)
    args.append(params["fc_b"].reshape(1, O).astype(jnp.float32))

    kernel = functools.partial(
        _fused_lstm_kernel, num_layers=L, T=T, B=B, D0=D0, H=H, O=O,
        unroll=_pick_unroll(T, B, H), w_dtype=w_dtype)

    out, hN, cN = pl.pallas_call(
        kernel,
        out_shape=(jax.ShapeDtypeStruct((B, O), jnp.float32),
                   jax.ShapeDtypeStruct((L, B, H), jnp.float32),
                   jax.ShapeDtypeStruct((L, B, H), jnp.float32)),
        scratch_shapes=[pltpu.VMEM((T, B, H), jnp.float32),       # inter-layer h sequence
                        pltpu.VMEM((T, B, 4 * H), jnp.float32)],  # hoisted input projection
        compiler_params=pltpu.CompilerParams(
            vmem_limit_bytes=_VMEM_LIMIT_BYTES),
    )(*args)
    return out, hN, cN


# ================================================================= fallback (big shapes)
def _lstm_layer_kernel(x_ref, wih_t_ref, whh_t_ref, b_ref, y_ref, cN_ref,
                       h_sc, c_sc, gx_ref, *, T_true, unroll):
    """One grid step == one chunk of Tc timesteps; h/c persist in VMEM scratch."""
    chunk = pl.program_id(0)
    Tc, Bp, Din = x_ref.shape
    H = h_sc.shape[-1]
    G = 4 * H

    @pl.when(chunk == 0)
    def _():
        h_sc[...] = jnp.zeros_like(h_sc)
        c_sc[...] = jnp.zeros_like(c_sc)

    w_dtype = wih_t_ref.dtype
    # Hoisted input projection for the whole chunk -> VMEM scratch.
    x_flat = x_ref[...].reshape(Tc * Bp, Din).astype(w_dtype)
    gx_ref[...] = (jnp.dot(x_flat, wih_t_ref[...], preferred_element_type=jnp.float32)
                   + b_ref[...]).reshape(Tc, Bp, G)

    def step(t, carry):
        h, c = carry
        gates = gx_ref[t] + jnp.dot(h.astype(w_dtype), whh_t_ref[...],
                                    preferred_element_type=jnp.float32)
        i_g = jax.nn.sigmoid(gates[:, 0 * H:1 * H])
        f_g = jax.nn.sigmoid(gates[:, 1 * H:2 * H])
        g_g = jnp.tanh(gates[:, 2 * H:3 * H])
        o_g = jax.nn.sigmoid(gates[:, 3 * H:4 * H])
        c_new = f_g * c + i_g * g_g
        h_new = o_g * jnp.tanh(c_new)
        y_ref[t] = h_new.astype(y_ref.dtype)

        # Ragged-T handling: capture c_T at the TRUE last timestep (T may be padded
        # up to a multiple of the chunk size).
        @pl.when(chunk * Tc + t == T_true - 1)
        def _():
            cN_ref[...] = c_new
        return h_new, c_new

    h_fin, c_fin = lax.fori_loop(0, Tc, step, (h_sc[...], c_sc[...]), unroll=unroll)
    h_sc[...] = h_fin
    c_sc[...] = c_fin


def _pick_chunk(T, Bp, Din, H, w_bytes, budget_bytes):
    """Largest time-chunk whose resident set fits the per-layer VMEM budget."""
    fixed = (_padded_2d_bytes(Din, 4 * H, w_bytes)        # w_ih^T (single-buffered)
             + _padded_2d_bytes(H, 4 * H, w_bytes)        # w_hh^T (single-buffered)
             + _padded_2d_bytes(1, 4 * H, 4))
    per_t = (2 * _padded_2d_bytes(Bp, Din, 4)             # x chunk, double-buffered
             + 2 * _padded_2d_bytes(Bp, H, 4)             # y chunk, double-buffered
             + _padded_2d_bytes(Bp, 4 * H, 4))            # gx scratch
    avail = max(budget_bytes - fixed, per_t)
    tc = int(max(1, min(T, avail // per_t)))
    n_chunks = -(-T // tc)                                # ceil
    return tc, n_chunks


def _layered_forward(x_tm, params, *, w_dtype):
    """Per-layer time-chunked kernels (used when the fused problem exceeds VMEM)."""
    T, B, D0 = x_tm.shape
    H = params["lstm"][0][1].shape[1]
    L = len(params["lstm"])
    Bp = _round_up(B, 8)
    w_bytes = jnp.dtype(w_dtype).itemsize

    tc, n_chunks = _pick_chunk(T, Bp, max(D0, H), H, w_bytes, _LAYER_VMEM_BUDGET)
    Tp = tc * n_chunks
    unroll = _pick_unroll(tc, Bp, H)
    # bf16 inter-layer activation halves the inter-layer HBM traffic in bf16 mode.
    y_dtype = jnp.float32 if w_dtype == jnp.float32 else w_dtype

    inp = jnp.pad(x_tm, ((0, Tp - T), (0, Bp - B), (0, 0)))
    # TODO(synk): optional leading batch grid axis marked "parallel" to split the
    # recurrence across v7x's two TensorCores for Bp >= 16.

    h_list, c_list = [], []
    for (w_ih, w_hh, b_ih, b_hh) in params["lstm"]:
        Din = w_ih.shape[1]
        wih_t = jnp.transpose(w_ih).astype(w_dtype)
        whh_t = jnp.transpose(w_hh).astype(w_dtype)
        b_row = (b_ih + b_hh).reshape(1, 4 * H).astype(jnp.float32)

        kernel = functools.partial(_lstm_layer_kernel, T_true=T, unroll=unroll)
        y, cN = pl.pallas_call(
            kernel,
            out_shape=(jax.ShapeDtypeStruct((Tp, Bp, H), y_dtype),
                       jax.ShapeDtypeStruct((Bp, H), jnp.float32)),
            grid_spec=pltpu.PrefetchScalarGridSpec(
                num_scalar_prefetch=0,
                grid=(n_chunks,),
                in_specs=[
                    pl.BlockSpec((tc, Bp, Din), lambda n: (n, 0, 0)),
                    # Constant-index weights: single-buffered (no pointless 2x VMEM).
                    pl.BlockSpec((Din, 4 * H), lambda n: (0, 0),
                                 pipeline_mode=pl.Buffered(1)),
                    pl.BlockSpec((H, 4 * H), lambda n: (0, 0),
                                 pipeline_mode=pl.Buffered(1)),
                    pl.BlockSpec((1, 4 * H), lambda n: (0, 0),
                                 pipeline_mode=pl.Buffered(1)),
                ],
                out_specs=[
                    pl.BlockSpec((tc, Bp, H), lambda n: (n, 0, 0)),
                    pl.BlockSpec((Bp, H), lambda n: (0, 0)),
                ],
                scratch_shapes=[pltpu.VMEM((Bp, H), jnp.float32),        # h
                                pltpu.VMEM((Bp, H), jnp.float32),        # c
                                pltpu.VMEM((tc, Bp, 4 * H), jnp.float32)]),  # gx
            compiler_params=pltpu.CompilerParams(
                dimension_semantics=("arbitrary",),       # strict sequential recurrence
                vmem_limit_bytes=_VMEM_LIMIT_BYTES),
        )(inp, wih_t, whh_t, b_row)

        h_list.append(y[T - 1, :B].astype(jnp.float32))   # h_T == last (true) output row
        c_list.append(cN[:B])
        inp = y                                           # stays padded for the next layer

    hidden = jnp.stack(h_list, axis=0)
    cell = jnp.stack(c_list, axis=0)
    last = inp[T - 1, :B].astype(jnp.float32)
    # FC head: a standalone pallas_call for a tiny (B,H)@(H,O) matmul is pure launch
    # overhead (per review) -> plain XLA dot in this fallback path.
    out = last @ jnp.transpose(params["fc_w"]) + params["fc_b"]
    return out, hidden, cell


# ============================================================================== model
def lstm_model_forward(x, params, *, use_bf16_matmul=False):
    """x: (B, T, input_size), batch_first — same as the PyTorch module.

    Returns (fc(output)[:, -1, :], hidden (L,B,H), cell (L,B,H)).
    """
    B, T, D0 = x.shape
    H = params["lstm"][0][1].shape[1]
    L = len(params["lstm"])
    O = params["fc_w"].shape[0]
    w_dtype = jnp.bfloat16 if use_bf16_matmul else jnp.float32
    w_bytes = 2 if use_bf16_matmul else 4

    x_tm = jnp.transpose(x, (1, 0, 2))                    # time-major (T, B, D0)

    if _fused_vmem_estimate(T, B, D0, H, L, O, w_bytes) <= _FUSED_VMEM_BUDGET:
        return _fused_forward(x_tm, params, w_dtype=w_dtype)
    return _layered_forward(x_tm, params, w_dtype=w_dtype)


def init_params(key, input_size, hidden_size, output_size, num_layers):
    """Deterministic uniform(-1/sqrt(H), 1/sqrt(H)) init, mirroring nn.LSTM/nn.Linear."""
    keys = jax.random.split(key, num_layers * 4 + 2)
    k = 1.0 / math.sqrt(hidden_size)
    lstm_params = []
    idx = 0
    for layer in range(num_layers):
        in_sz = input_size if layer == 0 else hidden_size
        w_ih = jax.random.uniform(keys[idx], (4 * hidden_size, in_sz),
                                  jnp.float32, -k, k); idx += 1
        w_hh = jax.random.uniform(keys[idx], (4 * hidden_size, hidden_size),
                                  jnp.float32, -k, k); idx += 1
        b_ih = jax.random.uniform(keys[idx], (4 * hidden_size,),
                                  jnp.float32, -k, k); idx += 1
        b_hh = jax.random.uniform(keys[idx], (4 * hidden_size,),
                                  jnp.float32, -k, k); idx += 1
        lstm_params.append((w_ih, w_hh, b_ih, b_hh))
    fc_w = jax.random.uniform(keys[idx], (output_size, hidden_size),
                              jnp.float32, -k, k); idx += 1
    fc_b = jax.random.uniform(keys[idx], (output_size,), jnp.float32, -k, k)
    return {"lstm": lstm_params, "fc_w": fc_w, "fc_b": fc_b}


def _reference_forward(x, params):
    """Pure-JAX reference matching torch.nn.LSTM + Linear semantics."""
    B, T, _ = x.shape
    H = params["lstm"][0][1].shape[1]
    inp = x
    h_list, c_list = [], []
    for (w_ih, w_hh, b_ih, b_hh) in params["lstm"]:
        h = jnp.zeros((B, H), jnp.float32)
        c = jnp.zeros((B, H), jnp.float32)
        ys = []
        for t in range(T):
            gates = inp[:, t, :] @ w_ih.T + b_ih + h @ w_hh.T + b_hh
            i = jax.nn.sigmoid(gates[:, 0:H])
            f = jax.nn.sigmoid(gates[:, H:2 * H])
            g = jnp.tanh(gates[:, 2 * H:3 * H])
            o = jax.nn.sigmoid(gates[:, 3 * H:4 * H])
            c = f * c + i * g
            h = o * jnp.tanh(c)
            ys.append(h)
        inp = jnp.stack(ys, axis=1)
        h_list.append(h)
        c_list.append(c)
    out = inp[:, -1, :] @ params["fc_w"].T + params["fc_b"]
    return out, jnp.stack(h_list, axis=0), jnp.stack(c_list, axis=0)


if __name__ == "__main__":
    input_size = 16
    hidden_size = 32
    sequence_length = 8
    output_size = 10
    num_layers = 2
    batch = 2

    key = jax.random.PRNGKey(0)
    kp, kx = jax.random.split(key)
    params = init_params(kp, input_size, hidden_size, output_size, num_layers)
    x = jax.random.normal(kx, (batch, sequence_length, input_size), jnp.float32)

    # Default keeps f32 matmul inputs to bit-match the f32 PyTorch reference;
    # pass use_bf16_matmul=True on v6e/v7x for MXU throughput (small ~1e-3 drift).
    fwd = jax.jit(lambda xx: lstm_model_forward(xx, params, use_bf16_matmul=False))
    out, hidden, cell = fwd(x)
    jax.block_until_ready((out, hidden, cell))

    assert out.shape == (batch, output_size)
    assert hidden.shape == (num_layers, batch, hidden_size)
    assert cell.shape == (num_layers, batch, hidden_size)

    ref_out, ref_hidden, ref_cell = _reference_forward(x, params)
    assert jnp.allclose(out, ref_out, atol=2e-3, rtol=2e-3), "output mismatch vs reference"
    assert jnp.allclose(hidden, ref_hidden, atol=2e-3, rtol=2e-3), "hidden mismatch vs reference"
    assert jnp.allclose(cell, ref_cell, atol=2e-3, rtol=2e-3), "cell mismatch vs reference"

    print("KERNEL_OK")
</pallas_src>

<mosaic_0001>
module attributes {stable_mosaic.version = 11 : i64} {
  func.func @_fused_lstm_kernel(%arg0: memref<8x2x16xf32, #tpu.memory_space<vmem>>, %arg1: memref<16x128xf32, #tpu.memory_space<vmem>>, %arg2: memref<32x128xf32, #tpu.memory_space<vmem>>, %arg3: memref<1x128xf32, #tpu.memory_space<vmem>>, %arg4: memref<32x128xf32, #tpu.memory_space<vmem>>, %arg5: memref<32x128xf32, #tpu.memory_space<vmem>>, %arg6: memref<1x128xf32, #tpu.memory_space<vmem>>, %arg7: memref<32x10xf32, #tpu.memory_space<vmem>>, %arg8: memref<1x10xf32, #tpu.memory_space<vmem>>, %arg9: memref<2x10xf32, #tpu.memory_space<vmem>>, %arg10: memref<2x2x32xf32, #tpu.memory_space<vmem>>, %arg11: memref<2x2x32xf32, #tpu.memory_space<vmem>>, %arg12: memref<8x2x32xf32, #tpu.memory_space<vmem>>, %arg13: memref<8x2x128xf32, #tpu.memory_space<vmem>>) attributes {dimension_semantics = [], scalar_prefetch = 0 : i64, scratch_operands = 2 : i64, tpu.core_type = #tpu.core_type<tc>} {
    %c0 = arith.constant 0 : index
    %c0_0 = arith.constant 0 : index
    %c0_1 = arith.constant 0 : index
    %0 = vector.load %arg0[%c0, %c0_0, %c0_1] : memref<8x2x16xf32, #tpu.memory_space<vmem>>, vector<8x2x16xf32>
    %1 = vector.shape_cast %0 : vector<8x2x16xf32> to vector<16x16xf32>
    %c0_2 = arith.constant 0 : index
    %c0_3 = arith.constant 0 : index
    %2 = vector.load %arg1[%c0_2, %c0_3] : memref<16x128xf32, #tpu.memory_space<vmem>>, vector<16x128xf32>
    %cst = arith.constant dense<0.000000e+00> : vector<16x128xf32>
    %3 = tpu.matmul %1, %2, %cst {dimension_numbers = #tpu.dot_dimension_numbers<[1], [0], [0], [1], [0, 0, 1, 1], [], []>} : vector<16x16xf32>, vector<16x128xf32>, vector<16x128xf32> -> vector<16x128xf32>
    %c0_4 = arith.constant 0 : index
    %c0_5 = arith.constant 0 : index
    %4 = vector.load %arg3[%c0_4, %c0_5] : memref<1x128xf32, #tpu.memory_space<vmem>>, vector<1x128xf32>
    %5 = vector.broadcast %4 : vector<1x128xf32> to vector<16x128xf32>
    %6 = arith.addf %3, %5 : vector<16x128xf32>
    %7 = vector.shape_cast %6 : vector<16x128xf32> to vector<8x2x128xf32>
    %c0_6 = arith.constant 0 : index
    %c0_7 = arith.constant 0 : index
    %c0_8 = arith.constant 0 : index
    %8 = vector.load %arg13[%c0_6, %c0_7, %c0_8] : memref<8x2x128xf32, #tpu.memory_space<vmem>>, vector<8x2x128xf32>
    tpu.vector_store %arg13[%c0_6, %c0_7, %c0_8], %7 {strides = array<i32>} : memref<8x2x128xf32, #tpu.memory_space<vmem>>, vector<8x2x128xf32>,
    %cst_9 = arith.constant 0.000000e+00 : f32
    %9 = vector.broadcast %cst_9 : f32 to vector<2x32xf32>
    %c0_i32 = arith.constant 0 : i32
    %10 = arith.index_cast %c0_i32 : i32 to index
    %c0_10 = arith.constant 0 : index
    %c0_11 = arith.constant 0 : index
    %11 = vector.load %arg13[%10, %c0_10, %c0_11] : memref<8x2x128xf32, #tpu.memory_space<vmem>>, vector<1x2x128xf32>
    %12 = vector.shape_cast %11 : vector<1x2x128xf32> to vector<2x128xf32>
    %c0_12 = arith.constant 0 : index
    %c0_13 = arith.constant 0 : index
    %13 = vector.load %arg2[%c0_12, %c0_13] : memref<32x128xf32, #tpu.memory_space<vmem>>, vector<32x128xf32>
    %cst_14 = arith.constant dense<0.000000e+00> : vector<2x128xf32>
    %14 = tpu.matmul %9, %13, %cst_14 {dimension_numbers = #tpu.dot_dimension_numbers<[1], [0], [0], [1], [0, 0, 1, 1], [], []>} : vector<2x32xf32>, vector<32x128xf32>, vector<2x128xf32> -> vector<2x128xf32>
    %15 = arith.addf %12, %14 : vector<2x128xf32>
    %16 = vector.extract_strided_slice %15 {offsets = [0, 0], sizes = [2, 32], strides = [1, 1]} : vector<2x128xf32> to vector<2x32xf32>
    %17 = arith.negf %16 : vector<2x32xf32>
    %18 = math.exp %17 : vector<2x32xf32>
    %cst_15 = arith.constant 1.000000e+00 : f32
    %19 = vector.broadcast %cst_15 : f32 to vector<2x32xf32>
    %20 = arith.addf %19, %18 : vector<2x32xf32>
    %21 = arith.divf %19, %20 : vector<2x32xf32>
    %22 = vector.extract_strided_slice %15 {offsets = [0, 32], sizes = [2, 32], strides = [1, 1]} : vector<2x128xf32> to vector<2x32xf32>
    %23 = arith.negf %22 : vector<2x32xf32>
    %24 = math.exp %23 : vector<2x32xf32>
    %cst_16 = arith.constant 1.000000e+00 : f32
    %25 = vector.broadcast %cst_16 : f32 to vector<2x32xf32>
    %26 = arith.addf %25, %24 : vector<2x32xf32>
    %27 = arith.divf %25, %26 : vector<2x32xf32>
    %28 = vector.extract_strided_slice %15 {offsets = [0, 64], sizes = [2, 32], strides = [1, 1]} : vector<2x128xf32> to vector<2x32xf32>
    %29 = math.tanh %28 : vector<2x32xf32>
    %30 = vector.extract_strided_slice %15 {offsets = [0, 96], sizes = [2, 32], strides = [1, 1]} : vector<2x128xf32> to vector<2x32xf32>
    %31 = arith.negf %30 : vector<2x32xf32>
    %32 = math.exp %31 : vector<2x32xf32>
    %cst_17 = arith.constant 1.000000e+00 : f32
    %33 = vector.broadcast %cst_17 : f32 to vector<2x32xf32>
    %34 = arith.addf %33, %32 : vector<2x32xf32>
    %35 = arith.divf %33, %34 : vector<2x32xf32>
    %36 = arith.mulf %27, %9 : vector<2x32xf32>
    %37 = arith.mulf %21, %29 : vector<2x32xf32>
    %38 = arith.addf %36, %37 : vector<2x32xf32>
    %39 = math.tanh %38 : vector<2x32xf32>
    %40 = arith.mulf %35, %39 : vector<2x32xf32>
    %41 = arith.index_cast %c0_i32 : i32 to index
    %c0_18 = arith.constant 0 : index
    %c0_19 = arith.constant 0 : index
    %42 = vector.load %arg12[%41, %c0_18, %c0_19] : memref<8x2x32xf32, #tpu.memory_space<vmem>>, vector<1x2x32xf32>
    %43 = vector.shape_cast %42 : vector<1x2x32xf32> to vector<2x32xf32>
    %44 = vector.shape_cast %40 : vector<2x32xf32> to vector<1x2x32xf32>
    tpu.vector_store %arg12[%41, %c0_18, %c0_19], %44 {strides = array<i32>} : memref<8x2x32xf32, #tpu.memory_space<vmem>>, vector<1x2x32xf32>,
    %c1_i32 = arith.constant 1 : i32
    %45 = arith.index_cast %c1_i32 : i32 to index
    %c0_20 = arith.constant 0 : index
    %c0_21 = arith.constant 0 : index
    %46 = vector.load %arg13[%45, %c0_20, %c0_21] : memref<8x2x128xf32, #tpu.memory_space<vmem>>, vector<1x2x128xf32>
    %47 = vector.shape_cast %46 : vector<1x2x128xf32> to vector<2x128xf32>
    %c0_22 = arith.constant 0 : index
    %c0_23 = arith.constant 0 : index
    %48 = vector.load %arg2[%c0_22, %c0_23] : memref<32x128xf32, #tpu.memory_space<vmem>>, vector<32x128xf32>
    %cst_24 = arith.constant dense<0.000000e+00> : vector<2x128xf32>
    %49 = tpu.matmul %40, %48, %cst_24 {dimension_numbers = #tpu.dot_dimension_numbers<[1], [0], [0], [1], [0, 0, 1, 1], [], []>} : vector<2x32xf32>, vector<32x128xf32>, vector<2x128xf32> -> vector<2x128xf32>
    %50 = arith.addf %47, %49 : vector<2x128xf32>
    %51 = vector.extract_strided_slice %50 {offsets = [0, 0], sizes = [2, 32], strides = [1, 1]} : vector<2x128xf32> to vector<2x32xf32>
    %52 = arith.negf %51 : vector<2x32xf32>
    %53 = math.exp %52 : vector<2x32xf32>
    %cst_25 = arith.constant 1.000000e+00 : f32
    %54 = vector.broadcast %cst_25 : f32 to vector<2x32xf32>
    %55 = arith.addf %54, %53 : vector<2x32xf32>
    %56 = arith.divf %54, %55 : vector<2x32xf32>
    %57 = vector.extract_strided_slice %50 {offsets = [0, 32], sizes = [2, 32], strides = [1, 1]} : vector<2x128xf32> to vector<2x32xf32>
    %58 = arith.negf %57 : vector<2x32xf32>
    %59 = math.exp %58 : vector<2x32xf32>
    %cst_26 = arith.constant 1.000000e+00 : f32
    %60 = vector.broadcast %cst_26 : f32 to vector<2x32xf32>
    %61 = arith.addf %60, %59 : vector<2x32xf32>
    %62 = arith.divf %60, %61 : vector<2x32xf32>
    %63 = vector.extract_strided_slice %50 {offsets = [0, 64], sizes = [2, 32], strides = [1, 1]} : vector<2x128xf32> to vector<2x32xf32>
    %64 = math.tanh %63 : vector<2x32xf32>
    %65 = vector.extract_strided_slice %50 {offsets = [0, 96], sizes = [2, 32], strides = [1, 1]} : vector<2x128xf32> to vector<2x32xf32>
    %66 = arith.negf %65 : vector<2x32xf32>
    %67 = math.exp %66 : vector<2x32xf32>
    %cst_27 = arith.constant 1.000000e+00 : f32
    %68 = vector.broadcast %cst_27 : f32 to vector<2x32xf32>
    %69 = arith.addf %68, %67 : vector<2x32xf32>
    %70 = arith.divf %68, %69 : vector<2x32xf32>
    %71 = arith.mulf %62, %38 : vector<2x32xf32>
    %72 = arith.mulf %56, %64 : vector<2x32xf32>
    %73 = arith.addf %71, %72 : vector<2x32xf32>
    %74 = math.tanh %73 : vector<2x32xf32>
    %75 = arith.mulf %70, %74 : vector<2x32xf32>
    %76 = arith.index_cast %c1_i32 : i32 to index
    %c0_28 = arith.constant 0 : index
    %c0_29 = arith.constant 0 : index
    %77 = vector.load %arg12[%76, %c0_28, %c0_29] : memref<8x2x32xf32, #tpu.memory_space<vmem>>, vector<1x2x32xf32>
    %78 = vector.shape_cast %77 : vector<1x2x32xf32> to vector<2x32xf32>
    %79 = vector.shape_cast %75 : vector<2x32xf32> to vector<1x2x32xf32>
    tpu.vector_store %arg12[%76, %c0_28, %c0_29], %79 {strides = array<i32>} : memref<8x2x32xf32, #tpu.memory_space<vmem>>, vector<1x2x32xf32>,
    %c2_i32 = arith.constant 2 : i32
    %80 = arith.index_cast %c2_i32 : i32 to index
    %c0_30 = arith.constant 0 : index
    %c0_31 = arith.constant 0 : index
    %81 = vector.load %arg13[%80, %c0_30, %c0_31] : memref<8x2x128xf32, #tpu.memory_space<vmem>>, vector<1x2x128xf32>
    %82 = vector.shape_cast %81 : vector<1x2x128xf32> to vector<2x128xf32>
    %c0_32 = arith.constant 0 : index
    %c0_33 = arith.constant 0 : index
    %83 = vector.load %arg2[%c0_32, %c0_33] : memref<32x128xf32, #tpu.memory_space<vmem>>, vector<32x128xf32>
    %cst_34 = arith.constant dense<0.000000e+00> : vector<2x128xf32>
    %84 = tpu.matmul %75, %83, %cst_34 {dimension_numbers = #tpu.dot_dimension_numbers<[1], [0], [0], [1], [0, 0, 1, 1], [], []>} : vector<2x32xf32>, vector<32x128xf32>, vector<2x128xf32> -> vector<2x128xf32>
    %85 = arith.addf %82, %84 : vector<2x128xf32>
    %86 = vector.extract_strided_slice %85 {offsets = [0, 0], sizes = [2, 32], strides = [1, 1]} : vector<2x128xf32> to vector<2x32xf32>
    %87 = arith.negf %86 : vector<2x32xf32>
    %88 = math.exp %87 : vector<2x32xf32>
    %cst_35 = arith.constant 1.000000e+00 : f32
    %89 = vector.broadcast %cst_35 : f32 to vector<2x32xf32>
    %90 = arith.addf %89, %88 : vector<2x32xf32>
    %91 = arith.divf %89, %90 : vector<2x32xf32>
    %92 = vector.extract_strided_slice %85 {offsets = [0, 32], sizes = [2, 32], strides = [1, 1]} : vector<2x128xf32> to vector<2x32xf32>
    %93 = arith.negf %92 : vector<2x32xf32>
    %94 = math.exp %93 : vector<2x32xf32>
    %cst_36 = arith.constant 1.000000e+00 : f32
    %95 = vector.broadcast %cst_36 : f32 to vector<2x32xf32>
    %96 = arith.addf %95, %94 : vector<2x32xf32>
    %97 = arith.divf %95, %96 : vector<2x32xf32>
    %98 = vector.extract_strided_slice %85 {offsets = [0, 64], sizes = [2, 32], strides = [1, 1]} : vector<2x128xf32> to vector<2x32xf32>
    %99 = math.tanh %98 : vector<2x32xf32>
    %100 = vector.extract_strided_slice %85 {offsets = [0, 96], sizes = [2, 32], strides = [1, 1]} : vector<2x128xf32> to vector<2x32xf32>
    %101 = arith.negf %100 : vector<2x32xf32>
    %102 = math.exp %101 : vector<2x32xf32>
    %cst_37 = arith.constant 1.000000e+00 : f32
    %103 = vector.broadcast %cst_37 : f32 to vector<2x32xf32>
    %104 = arith.addf %103, %102 : vector<2x32xf32>
    %105 = arith.divf %103, %104 : vector<2x32xf32>
    %106 = arith.mulf %97, %73 : vector<2x32xf32>
    %107 = arith.mulf %91, %99 : vector<2x32xf32>
    %108 = arith.addf %106, %107 : vector<2x32xf32>
    %109 = math.tanh %108 : vector<2x32xf32>
    %110 = arith.mulf %105, %109 : vector<2x32xf32>
    %111 = arith.index_cast %c2_i32 : i32 to index
    %c0_38 = arith.constant 0 : index
    %c0_39 = arith.constant 0 : index
    %112 = vector.load %arg12[%111, %c0_38, %c0_39] : memref<8x2x32xf32, #tpu.memory_space<vmem>>, vector<1x2x32xf32>
    %113 = vector.shape_cast %112 : vector<1x2x32xf32> to vector<2x32xf32>
    %114 = vector.shape_cast %110 : vector<2x32xf32> to vector<1x2x32xf32>
    tpu.vector_store %arg12[%111, %c0_38, %c0_39], %114 {strides = array<i32>} : memref<8x2x32xf32, #tpu.memory_space<vmem>>, vector<1x2x32xf32>,
    %c3_i32 = arith.constant 3 : i32
    %115 = arith.index_cast %c3_i32 : i32 to index
    %c0_40 = arith.constant 0 : index
    %c0_41 = arith.constant 0 : index
    %116 = vector.load %arg13[%115, %c0_40, %c0_41] : memref<8x2x128xf32, #tpu.memory_space<vmem>>, vector<1x2x128xf32>
    %117 = vector.shape_cast %116 : vector<1x2x128xf32> to vector<2x128xf32>
    %c0_42 = arith.constant 0 : index
    %c0_43 = arith.constant 0 : index
    %118 = vector.load %arg2[%c0_42, %c0_43] : memref<32x128xf32, #tpu.memory_space<vmem>>, vector<32x128xf32>
    %cst_44 = arith.constant dense<0.000000e+00> : vector<2x128xf32>
    %119 = tpu.matmul %110, %118, %cst_44 {dimension_numbers = #tpu.dot_dimension_numbers<[1], [0], [0], [1], [0, 0, 1, 1], [], []>} : vector<2x32xf32>, vector<32x128xf32>, vector<2x128xf32> -> vector<2x128xf32>
    %120 = arith.addf %117, %119 : vector<2x128xf32>
    %121 = vector.extract_strided_slice %120 {offsets = [0, 0], sizes = [2, 32], strides = [1, 1]} : vector<2x128xf32> to vector<2x32xf32>
    %122 = arith.negf %121 : vector<2x32xf32>
    %123 = math.exp %122 : vector<2x32xf32>
    %cst_45 = arith.constant 1.000000e+00 : f32
    %124 = vector.broadcast %cst_45 : f32 to vector<2x32xf32>
    %125 = arith.addf %124, %123 : vector<2x32xf32>
    %126 = arith.divf %124, %125 : vector<2x32xf32>
    %127 = vector.extract_strided_slice %120 {offsets = [0, 32], sizes = [2, 32], strides = [1, 1]} : vector<2x128xf32> to vector<2x32xf32>
    %128 = arith.negf %127 : vector<2x32xf32>
    %129 = math.exp %128 : vector<2x32xf32>
    %cst_46 = arith.constant 1.000000e+00 : f32
    %130 = vector.broadcast %cst_46 : f32 to vector<2x32xf32>
    %131 = arith.addf %130, %129 : vector<2x32xf32>
    %132 = arith.divf %130, %131 : vector<2x32xf32>
    %133 = vector.extract_strided_slice %120 {offsets = [0, 64], sizes = [2, 32], strides = [1, 1]} : vector<2x128xf32> to vector<2x32xf32>
    %134 = math.tanh %133 : vector<2x32xf32>
    %135 = vector.extract_strided_slice %120 {offsets = [0, 96], sizes = [2, 32], strides = [1, 1]} : vector<2x128xf32> to vector<2x32xf32>
    %136 = arith.negf %135 : vector<2x32xf32>
    %137 = math.exp %136 : vector<2x32xf32>
    %cst_47 = arith.constant 1.000000e+00 : f32
    %138 = vector.broadcast %cst_47 : f32 to vector<2x32xf32>
    %139 = arith.addf %138, %137 : vector<2x32xf32>
    %140 = arith.divf %138, %139 : vector<2x32xf32>
    %141 = arith.mulf %132, %108 : vector<2x32xf32>
    %142 = arith.mulf %126, %134 : vector<2x32xf32>
    %143 = arith.addf %141, %142 : vector<2x32xf32>
    %144 = math.tanh %143 : vector<2x32xf32>
    %145 = arith.mulf %140, %144 : vector<2x32xf32>
    %146 = arith.index_cast %c3_i32 : i32 to index
    %c0_48 = arith.constant 0 : index
    %c0_49 = arith.constant 0 : index
    %147 = vector.load %arg12[%146, %c0_48, %c0_49] : memref<8x2x32xf32, #tpu.memory_space<vmem>>, vector<1x2x32xf32>
    %148 = vector.shape_cast %147 : vector<1x2x32xf32> to vector<2x32xf32>
    %149 = vector.shape_cast %145 : vector<2x32xf32> to vector<1x2x32xf32>
    tpu.vector_store %arg12[%146, %c0_48, %c0_49], %149 {strides = array<i32>} : memref<8x2x32xf32, #tpu.memory_space<vmem>>, vector<1x2x32xf32>,
    %c4_i32 = arith.constant 4 : i32
    %150 = arith.index_cast %c4_i32 : i32 to index
    %c0_50 = arith.constant 0 : index
    %c0_51 = arith.constant 0 : index
    %151 = vector.load %arg13[%150, %c0_50, %c0_51] : memref<8x2x128xf32, #tpu.memory_space<vmem>>, vector<1x2x128xf32>
    %152 = vector.shape_cast %151 : vector<1x2x128xf32> to vector<2x128xf32>
    %c0_52 = arith.constant 0 : index
    %c0_53 = arith.constant 0 : index
    %153 = vector.load %arg2[%c0_52, %c0_53] : memref<32x128xf32, #tpu.memory_space<vmem>>, vector<32x128xf32>
    %cst_54 = arith.constant dense<0.000000e+00> : vector<2x128xf32>
    %154 = tpu.matmul %145, %153, %cst_54 {dimension_numbers = #tpu.dot_dimension_numbers<[1], [0], [0], [1], [0, 0, 1, 1], [], []>} : vector<2x32xf32>, vector<32x128xf32>, vector<2x128xf32> -> vector<2x128xf32>
    %155 = arith.addf %152, %154 : vector<2x128xf32>
    %156 = vector.extract_strided_slice %155 {offsets = [0, 0], sizes = [2, 32], strides = [1, 1]} : vector<2x128xf32> to vector<2x32xf32>
    %157 = arith.negf %156 : vector<2x32xf32>
    %158 = math.exp %157 : vector<2x32xf32>
    %cst_55 = arith.constant 1.000000e+00 : f32
    %159 = vector.broadcast %cst_55 : f32 to vector<2x32xf32>
    %160 = arith.addf %159, %158 : vector<2x32xf32>
    %161 = arith.divf %159, %160 : vector<2x32xf32>
    %162 = vector.extract_strided_slice %155 {offsets = [0, 32], sizes = [2, 32], strides = [1, 1]} : vector<2x128xf32> to vector<2x32xf32>
    %163 = arith.negf %162 : vector<2x32xf32>
    %164 = math.exp %163 : vector<2x32xf32>
    %cst_56 = arith.constant 1.000000e+00 : f32
    %165 = vector.broadcast %cst_56 : f32 to vector<2x32xf32>
    %166 = arith.addf %165, %164 : vector<2x32xf32>
    %167 = arith.divf %165, %166 : vector<2x32xf32>
    %168 = vector.extract_strided_slice %155 {offsets = [0, 64], sizes = [2, 32], strides = [1, 1]} : vector<2x128xf32> to vector<2x32xf32>
    %169 = math.tanh %168 : vector<2x32xf32>
    %170 = vector.extract_strided_slice %155 {offsets = [0, 96], sizes = [2, 32], strides = [1, 1]} : vector<2x128xf32> to vector<2x32xf32>
    %171 = arith.negf %170 : vector<2x32xf32>
    %172 = math.exp %171 : vector<2x32xf32>
    %cst_57 = arith.constant 1.000000e+00 : f32
    %173 = vector.broadcast %cst_57 : f32 to vector<2x32xf32>
    %174 = arith.addf %173, %172 : vector<2x32xf32>
    %175 = arith.divf %173, %174 : vector<2x32xf32>
    %176 = arith.mulf %167, %143 : vector<2x32xf32>
    %177 = arith.mulf %161, %169 : vector<2x32xf32>
    %178 = arith.addf %176, %177 : vector<2x32xf32>
    %179 = math.tanh %178 : vector<2x32xf32>
    %180 = arith.mulf %175, %179 : vector<2x32xf32>
    %181 = arith.index_cast %c4_i32 : i32 to index
    %c0_58 = arith.constant 0 : index
    %c0_59 = arith.constant 0 : index
    %182 = vector.load %arg12[%181, %c0_58, %c0_59] : memref<8x2x32xf32, #tpu.memory_space<vmem>>, vector<1x2x32xf32>
    %183 = vector.shape_cast %182 : vector<1x2x32xf32> to vector<2x32xf32>
    %184 = vector.shape_cast %180 : vector<2x32xf32> to vector<1x2x32xf32>
    tpu.vector_store %arg12[%181, %c0_58, %c0_59], %184 {strides = array<i32>} : memref<8x2x32xf32, #tpu.memory_space<vmem>>, vector<1x2x32xf32>,
    %c5_i32 = arith.constant 5 : i32
    %185 = arith.index_cast %c5_i32 : i32 to index
    %c0_60 = arith.constant 0 : index
    %c0_61 = arith.constant 0 : index
    %186 = vector.load %arg13[%185, %c0_60, %c0_61] : memref<8x2x128xf32, #tpu.memory_space<vmem>>, vector<1x2x128xf32>
    %187 = vector.shape_cast %186 : vector<1x2x128xf32> to vector<2x128xf32>
    %c0_62 = arith.constant 0 : index
    %c0_63 = arith.constant 0 : index
    %188 = vector.load %arg2[%c0_62, %c0_63] : memref<32x128xf32, #tpu.memory_space<vmem>>, vector<32x128xf32>
    %cst_64 = arith.constant dense<0.000000e+00> : vector<2x128xf32>
    %189 = tpu.matmul %180, %188, %cst_64 {dimension_numbers = #tpu.dot_dimension_numbers<[1], [0], [0], [1], [0, 0, 1, 1], [], []>} : vector<2x32xf32>, vector<32x128xf32>, vector<2x128xf32> -> vector<2x128xf32>
    %190 = arith.addf %187, %189 : vector<2x128xf32>
    %191 = vector.extract_strided_slice %190 {offsets = [0, 0], sizes = [2, 32], strides = [1, 1]} : vector<2x128xf32> to vector<2x32xf32>
    %192 = arith.negf %191 : vector<2x32xf32>
    %193 = math.exp %192 : vector<2x32xf32>
    %cst_65 = arith.constant 1.000000e+00 : f32
    %194 = vector.broadcast %cst_65 : f32 to vector<2x32xf32>
    %195 = arith.addf %194, %193 : vector<2x32xf32>
    %196 = arith.divf %194, %195 : vector<2x32xf32>
    %197 = vector.extract_strided_slice %190 {offsets = [0, 32], sizes = [2, 32], strides = [1, 1]} : vector<2x128xf32> to vector<2x32xf32>
    %198 = arith.negf %197 : vector<2x32xf32>
    %199 = math.exp %198 : vector<2x32xf32>
    %cst_66 = arith.constant 1.000000e+00 : f32
    %200 = vector.broadcast %cst_66 : f32 to vector<2x32xf32>
    %201 = arith.addf %200, %199 : vector<2x32xf32>
    %202 = arith.divf %200, %201 : vector<2x32xf32>
    %203 = vector.extract_strided_slice %190 {offsets = [0, 64], sizes = [2, 32], strides = [1, 1]} : vector<2x128xf32> to vector<2x32xf32>
    %204 = math.tanh %203 : vector<2x32xf32>
    %205 = vector.extract_strided_slice %190 {offsets = [0, 96], sizes = [2, 32], strides = [1, 1]} : vector<2x128xf32> to vector<2x32xf32>
    %206 = arith.negf %205 : vector<2x32xf32>
    %207 = math.exp %206 : vector<2x32xf32>
    %cst_67 = arith.constant 1.000000e+00 : f32
    %208 = vector.broadcast %cst_67 : f32 to vector<2x32xf32>
    %209 = arith.addf %208, %207 : vector<2x32xf32>
    %210 = arith.divf %208, %209 : vector<2x32xf32>
    %211 = arith.mulf %202, %178 : vector<2x32xf32>
    %212 = arith.mulf %196, %204 : vector<2x32xf32>
    %213 = arith.addf %211, %212 : vector<2x32xf32>
    %214 = math.tanh %213 : vector<2x32xf32>
    %215 = arith.mulf %210, %214 : vector<2x32xf32>
    %216 = arith.index_cast %c5_i32 : i32 to index
    %c0_68 = arith.constant 0 : index
    %c0_69 = arith.constant 0 : index
    %217 = vector.load %arg12[%216, %c0_68, %c0_69] : memref<8x2x32xf32, #tpu.memory_space<vmem>>, vector<1x2x32xf32>
    %218 = vector.shape_cast %217 : vector<1x2x32xf32> to vector<2x32xf32>
    %219 = vector.shape_cast %215 : vector<2x32xf32> to vector<1x2x32xf32>
    tpu.vector_store %arg12[%216, %c0_68, %c0_69], %219 {strides = array<i32>} : memref<8x2x32xf32, #tpu.memory_space<vmem>>, vector<1x2x32xf32>,
    %c6_i32 = arith.constant 6 : i32
    %220 = arith.index_cast %c6_i32 : i32 to index
    %c0_70 = arith.constant 0 : index
    %c0_71 = arith.constant 0 : index
    %221 = vector.load %arg13[%220, %c0_70, %c0_71] : memref<8x2x128xf32, #tpu.memory_space<vmem>>, vector<1x2x128xf32>
    %222 = vector.shape_cast %221 : vector<1x2x128xf32> to vector<2x128xf32>
    %c0_72 = arith.constant 0 : index
    %c0_73 = arith.constant 0 : index
    %223 = vector.load %arg2[%c0_72, %c0_73] : memref<32x128xf32, #tpu.memory_space<vmem>>, vector<32x128xf32>
    %cst_74 = arith.constant dense<0.000000e+00> : vector<2x128xf32>
    %224 = tpu.matmul %215, %223, %cst_74 {dimension_numbers = #tpu.dot_dimension_numbers<[1], [0], [0], [1], [0, 0, 1, 1], [], []>} : vector<2x32xf32>, vector<32x128xf32>, vector<2x128xf32> -> vector<2x128xf32>
    %225 = arith.addf %222, %224 : vector<2x128xf32>
    %226 = vector.extract_strided_slice %225 {offsets = [0, 0], sizes = [2, 32], strides = [1, 1]} : vector<2x128xf32> to vector<2x32xf32>
    %227 = arith.negf %226 : vector<2x32xf32>
    %228 = math.exp %227 : vector<2x32xf32>
    %cst_75 = arith.constant 1.000000e+00 : f32
    %229 = vector.broadcast %cst_75 : f32 to vector<2x32xf32>
    %230 = arith.addf %229, %228 : vector<2x32xf32>
    %231 = arith.divf %229, %230 : vector<2x32xf32>
    %232 = vector.extract_strided_slice %225 {offsets = [0, 32], sizes = [2, 32], strides = [1, 1]} : vector<2x128xf32> to vector<2x32xf32>
    %233 = arith.negf %232 : vector<2x32xf32>
    %234 = math.exp %233 : vector<2x32xf32>
    %cst_76 = arith.constant 1.000000e+00 : f32
    %235 = vector.broadcast %cst_76 : f32 to vector<2x32xf32>
    %236 = arith.addf %235, %234 : vector<2x32xf32>
    %237 = arith.divf %235, %236 : vector<2x32xf32>
    %238 = vector.extract_strided_slice %225 {offsets = [0, 64], sizes = [2, 32], strides = [1, 1]} : vector<2x128xf32> to vector<2x32xf32>
    %239 = math.tanh %238 : vector<2x32xf32>
    %240 = vector.extract_strided_slice %225 {offsets = [0, 96], sizes = [2, 32], strides = [1, 1]} : vector<2x128xf32> to vector<2x32xf32>
    %241 = arith.negf %240 : vector<2x32xf32>
    %242 = math.exp %241 : vector<2x32xf32>
    %cst_77 = arith.constant 1.000000e+00 : f32
    %243 = vector.broadcast %cst_77 : f32 to vector<2x32xf32>
    %244 = arith.addf %243, %242 : vector<2x32xf32>
    %245 = arith.divf %243, %244 : vector<2x32xf32>
    %246 = arith.mulf %237, %213 : vector<2x32xf32>
    %247 = arith.mulf %231, %239 : vector<2x32xf32>
    %248 = arith.addf %246, %247 : vector<2x32xf32>
    %249 = math.tanh %248 : vector<2x32xf32>
    %250 = arith.mulf %245, %249 : vector<2x32xf32>
    %251 = arith.index_cast %c6_i32 : i32 to index
    %c0_78 = arith.constant 0 : index
    %c0_79 = arith.constant 0 : index
    %252 = vector.load %arg12[%251, %c0_78, %c0_79] : memref<8x2x32xf32, #tpu.memory_space<vmem>>, vector<1x2x32xf32>
    %253 = vector.shape_cast %252 : vector<1x2x32xf32> to vector<2x32xf32>
    %254 = vector.shape_cast %250 : vector<2x32xf32> to vector<1x2x32xf32>
    tpu.vector_store %arg12[%251, %c0_78, %c0_79], %254 {strides = array<i32>} : memref<8x2x32xf32, #tpu.memory_space<vmem>>, vector<1x2x32xf32>,
    %c7_i32 = arith.constant 7 : i32
    %255 = arith.index_cast %c7_i32 : i32 to index
    %c0_80 = arith.constant 0 : index
    %c0_81 = arith.constant 0 : index
    %256 = vector.load %arg13[%255, %c0_80, %c0_81] : memref<8x2x128xf32, #tpu.memory_space<vmem>>, vector<1x2x128xf32>
    %257 = vector.shape_cast %256 : vector<1x2x128xf32> to vector<2x128xf32>
    %c0_82 = arith.constant 0 : index
    %c0_83 = arith.constant 0 : index
    %258 = vector.load %arg2[%c0_82, %c0_83] : memref<32x128xf32, #tpu.memory_space<vmem>>, vector<32x128xf32>
    %cst_84 = arith.constant dense<0.000000e+00> : vector<2x128xf32>
    %259 = tpu.matmul %250, %258, %cst_84 {dimension_numbers = #tpu.dot_dimension_numbers<[1], [0], [0], [1], [0, 0, 1, 1], [], []>} : vector<2x32xf32>, vector<32x128xf32>, vector<2x128xf32> -> vector<2x128xf32>
    %260 = arith.addf %257, %259 : vector<2x128xf32>
    %261 = vector.extract_strided_slice %260 {offsets = [0, 0], sizes = [2, 32], strides = [1, 1]} : vector<2x128xf32> to vector<2x32xf32>
    %262 = arith.negf %261 : vector<2x32xf32>
    %263 = math.exp %262 : vector<2x32xf32>
    %cst_85 = arith.constant 1.000000e+00 : f32
    %264 = vector.broadcast %cst_85 : f32 to vector<2x32xf32>
    %265 = arith.addf %264, %263 : vector<2x32xf32>
    %266 = arith.divf %264, %265 : vector<2x32xf32>
    %267 = vector.extract_strided_slice %260 {offsets = [0, 32], sizes = [2, 32], strides = [1, 1]} : vector<2x128xf32> to vector<2x32xf32>
    %268 = arith.negf %267 : vector<2x32xf32>
    %269 = math.exp %268 : vector<2x32xf32>
    %cst_86 = arith.constant 1.000000e+00 : f32
    %270 = vector.broadcast %cst_86 : f32 to vector<2x32xf32>
    %271 = arith.addf %270, %269 : vector<2x32xf32>
    %272 = arith.divf %270, %271 : vector<2x32xf32>
    %273 = vector.extract_strided_slice %260 {offsets = [0, 64], sizes = [2, 32], strides = [1, 1]} : vector<2x128xf32> to vector<2x32xf32>
    %274 = math.tanh %273 : vector<2x32xf32>
    %275 = vector.extract_strided_slice %260 {offsets = [0, 96], sizes = [2, 32], strides = [1, 1]} : vector<2x128xf32> to vector<2x32xf32>
    %276 = arith.negf %275 : vector<2x32xf32>
    %277 = math.exp %276 : vector<2x32xf32>
    %cst_87 = arith.constant 1.000000e+00 : f32
    %278 = vector.broadcast %cst_87 : f32 to vector<2x32xf32>
    %279 = arith.addf %278, %277 : vector<2x32xf32>
    %280 = arith.divf %278, %279 : vector<2x32xf32>
    %281 = arith.mulf %272, %248 : vector<2x32xf32>
    %282 = arith.mulf %266, %274 : vector<2x32xf32>
    %283 = arith.addf %281, %282 : vector<2x32xf32>
    %284 = math.tanh %283 : vector<2x32xf32>
    %285 = arith.mulf %280, %284 : vector<2x32xf32>
    %286 = arith.index_cast %c7_i32 : i32 to index
    %c0_88 = arith.constant 0 : index
    %c0_89 = arith.constant 0 : index
    %287 = vector.load %arg12[%286, %c0_88, %c0_89] : memref<8x2x32xf32, #tpu.memory_space<vmem>>, vector<1x2x32xf32>
    %288 = vector.shape_cast %287 : vector<1x2x32xf32> to vector<2x32xf32>
    %289 = vector.shape_cast %285 : vector<2x32xf32> to vector<1x2x32xf32>
    tpu.vector_store %arg12[%286, %c0_88, %c0_89], %289 {strides = array<i32>} : memref<8x2x32xf32, #tpu.memory_space<vmem>>, vector<1x2x32xf32>,
    %c8_i32 = arith.constant 8 : i32
    %c0_90 = arith.constant 0 : index
    %c0_91 = arith.constant 0 : index
    %c0_92 = arith.constant 0 : index
    %290 = vector.load %arg10[%c0_90, %c0_91, %c0_92] : memref<2x2x32xf32, #tpu.memory_space<vmem>>, vector<1x2x32xf32>
    %291 = vector.shape_cast %290 : vector<1x2x32xf32> to vector<2x32xf32>
    %292 = vector.shape_cast %285 : vector<2x32xf32> to vector<1x2x32xf32>
    tpu.vector_store %arg10[%c0_90, %c0_91, %c0_92], %292 {strides = array<i32>} : memref<2x2x32xf32, #tpu.memory_space<vmem>>, vector<1x2x32xf32>,
    %c0_93 = arith.constant 0 : index
    %c0_94 = arith.constant 0 : index
    %c0_95 = arith.constant 0 : index
    %293 = vector.load %arg11[%c0_93, %c0_94, %c0_95] : memref<2x2x32xf32, #tpu.memory_space<vmem>>, vector<1x2x32xf32>
    %294 = vector.shape_cast %293 : vector<1x2x32xf32> to vector<2x32xf32>
    %295 = vector.shape_cast %283 : vector<2x32xf32> to vector<1x2x32xf32>
    tpu.vector_store %arg11[%c0_93, %c0_94, %c0_95], %295 {strides = array<i32>} : memref<2x2x32xf32, #tpu.memory_space<vmem>>, vector<1x2x32xf32>,
    %c0_96 = arith.constant 0 : index
    %c0_97 = arith.constant 0 : index
    %c0_98 = arith.constant 0 : index
    %296 = vector.load %arg12[%c0_96, %c0_97, %c0_98] : memref<8x2x32xf32, #tpu.memory_space<vmem>>, vector<8x2x32xf32>
    %297 = vector.shape_cast %296 : vector<8x2x32xf32> to vector<16x32xf32>
    %c0_99 = arith.constant 0 : index
    %c0_100 = arith.constant 0 : index
    %298 = vector.load %arg4[%c0_99, %c0_100] : memref<32x128xf32, #tpu.memory_space<vmem>>, vector<32x128xf32>
    %cst_101 = arith.constant dense<0.000000e+00> : vector<16x128xf32>
    %299 = tpu.matmul %297, %298, %cst_101 {dimension_numbers = #tpu.dot_dimension_numbers<[1], [0], [0], [1], [0, 0, 1, 1], [], []>} : vector<16x32xf32>, vector<32x128xf32>, vector<16x128xf32> -> vector<16x128xf32>
    %c0_102 = arith.constant 0 : index
    %c0_103 = arith.constant 0 : index
    %300 = vector.load %arg6[%c0_102, %c0_103] : memref<1x128xf32, #tpu.memory_space<vmem>>, vector<1x128xf32>
    %301 = vector.broadcast %300 : vector<1x128xf32> to vector<16x128xf32>
    %302 = arith.addf %299, %301 : vector<16x128xf32>
    %303 = vector.shape_cast %302 : vector<16x128xf32> to vector<8x2x128xf32>
    %c0_104 = arith.constant 0 : index
    %c0_105 = arith.constant 0 : index
    %c0_106 = arith.constant 0 : index
    %304 = vector.load %arg13[%c0_104, %c0_105, %c0_106] : memref<8x2x128xf32, #tpu.memory_space<vmem>>, vector<8x2x128xf32>
    tpu.vector_store %arg13[%c0_104, %c0_105, %c0_106], %303 {strides = array<i32>} : memref<8x2x128xf32, #tpu.memory_space<vmem>>, vector<8x2x128xf32>,
    %cst_107 = arith.constant 0.000000e+00 : f32
    %305 = vector.broadcast %cst_107 : f32 to vector<2x32xf32>
    %c0_i32_108 = arith.constant 0 : i32
    %306 = arith.index_cast %c0_i32_108 : i32 to index
    %c0_109 = arith.constant 0 : index
    %c0_110 = arith.constant 0 : index
    %307 = vector.load %arg13[%306, %c0_109, %c0_110] : memref<8x2x128xf32, #tpu.memory_space<vmem>>, vector<1x2x128xf32>
    %308 = vector.shape_cast %307 : vector<1x2x128xf32> to vector<2x128xf32>
    %c0_111 = arith.constant 0 : index
    %c0_112 = arith.constant 0 : index
    %309 = vector.load %arg5[%c0_111, %c0_112] : memref<32x128xf32, #tpu.memory_space<vmem>>, vector<32x128xf32>
    %cst_113 = arith.constant dense<0.000000e+00> : vector<2x128xf32>
    %310 = tpu.matmul %305, %309, %cst_113 {dimension_numbers = #tpu.dot_dimension_numbers<[1], [0], [0], [1], [0, 0, 1, 1], [], []>} : vector<2x32xf32>, vector<32x128xf32>, vector<2x128xf32> -> vector<2x128xf32>
    %311 = arith.addf %308, %310 : vector<2x128xf32>
    %312 = vector.extract_strided_slice %311 {offsets = [0, 0], sizes = [2, 32], strides = [1, 1]} : vector<2x128xf32> to vector<2x32xf32>
    %313 = arith.negf %312 : vector<2x32xf32>
    %314 = math.exp %313 : vector<2x32xf32>
    %cst_114 = arith.constant 1.000000e+00 : f32
    %315 = vector.broadcast %cst_114 : f32 to vector<2x32xf32>
    %316 = arith.addf %315, %314 : vector<2x32xf32>
    %317 = arith.divf %315, %316 : vector<2x32xf32>
    %318 = vector.extract_strided_slice %311 {offsets = [0, 32], sizes = [2, 32], strides = [1, 1]} : vector<2x128xf32> to vector<2x32xf32>
    %319 = arith.negf %318 : vector<2x32xf32>
    %320 = math.exp %319 : vector<2x32xf32>
    %cst_115 = arith.constant 1.000000e+00 : f32
    %321 = vector.broadcast %cst_115 : f32 to vector<2x32xf32>
    %322 = arith.addf %321, %320 : vector<2x32xf32>
    %323 = arith.divf %321, %322 : vector<2x32xf32>
    %324 = vector.extract_strided_slice %311 {offsets = [0, 64], sizes = [2, 32], strides = [1, 1]} : vector<2x128xf32> to vector<2x32xf32>
    %325 = math.tanh %324 : vector<2x32xf32>
    %326 = vector.extract_strided_slice %311 {offsets = [0, 96], sizes = [2, 32], strides = [1, 1]} : vector<2x128xf32> to vector<2x32xf32>
    %327 = arith.negf %326 : vector<2x32xf32>
    %328 = math.exp %327 : vector<2x32xf32>
    %cst_116 = arith.constant 1.000000e+00 : f32
    %329 = vector.broadcast %cst_116 : f32 to vector<2x32xf32>
    %330 = arith.addf %329, %328 : vector<2x32xf32>
    %331 = arith.divf %329, %330 : vector<2x32xf32>
    %332 = arith.mulf %323, %305 : vector<2x32xf32>
    %333 = arith.mulf %317, %325 : vector<2x32xf32>
    %334 = arith.addf %332, %333 : vector<2x32xf32>
    %335 = math.tanh %334 : vector<2x32xf32>
    %336 = arith.mulf %331, %335 : vector<2x32xf32>
    %337 = arith.index_cast %c0_i32_108 : i32 to index
    %c0_117 = arith.constant 0 : index
    %c0_118 = arith.constant 0 : index
    %338 = vector.load %arg12[%337, %c0_117, %c0_118] : memref<8x2x32xf32, #tpu.memory_space<vmem>>, vector<1x2x32xf32>
    %339 = vector.shape_cast %338 : vector<1x2x32xf32> to vector<2x32xf32>
    %340 = vector.shape_cast %336 : vector<2x32xf32> to vector<1x2x32xf32>
    tpu.vector_store %arg12[%337, %c0_117, %c0_118], %340 {strides = array<i32>} : memref<8x2x32xf32, #tpu.memory_space<vmem>>, vector<1x2x32xf32>,
    %c1_i32_119 = arith.constant 1 : i32
    %341 = arith.index_cast %c1_i32_119 : i32 to index
    %c0_120 = arith.constant 0 : index
    %c0_121 = arith.constant 0 : index
    %342 = vector.load %arg13[%341, %c0_120, %c0_121] : memref<8x2x128xf32, #tpu.memory_space<vmem>>, vector<1x2x128xf32>
    %343 = vector.shape_cast %342 : vector<1x2x128xf32> to vector<2x128xf32>
    %c0_122 = arith.constant 0 : index
    %c0_123 = arith.constant 0 : index
    %344 = vector.load %arg5[%c0_122, %c0_123] : memref<32x128xf32, #tpu.memory_space<vmem>>, vector<32x128xf32>
    %cst_124 = arith.constant dense<0.000000e+00> : vector<2x128xf32>
    %345 = tpu.matmul %336, %344, %cst_124 {dimension_numbers = #tpu.dot_dimension_numbers<[1], [0], [0], [1], [0, 0, 1, 1], [], []>} : vector<2x32xf32>, vector<32x128xf32>, vector<2x128xf32> -> vector<2x128xf32>
    %346 = arith.addf %343, %345 : vector<2x128xf32>
    %347 = vector.extract_strided_slice %346 {offsets = [0, 0], sizes = [2, 32], strides = [1, 1]} : vector<2x128xf32> to vector<2x32xf32>
    %348 = arith.negf %347 : vector<2x32xf32>
    %349 = math.exp %348 : vector<2x32xf32>
    %cst_125 = arith.constant 1.000000e+00 : f32
    %350 = vector.broadcast %cst_125 : f32 to vector<2x32xf32>
    %351 = arith.addf %350, %349 : vector<2x32xf32>
    %352 = arith.divf %350, %351 : vector<2x32xf32>
    %353 = vector.extract_strided_slice %346 {offsets = [0, 32], sizes = [2, 32], strides = [1, 1]} : vector<2x128xf32> to vector<2x32xf32>
    %354 = arith.negf %353 : vector<2x32xf32>
    %355 = math.exp %354 : vector<2x32xf32>
    %cst_126 = arith.constant 1.000000e+00 : f32
    %356 = vector.broadcast %cst_126 : f32 to vector<2x32xf32>
    %357 = arith.addf %356, %355 : vector<2x32xf32>
    %358 = arith.divf %356, %357 : vector<2x32xf32>
    %359 = vector.extract_strided_slice %346 {offsets = [0, 64], sizes = [2, 32], strides = [1, 1]} : vector<2x128xf32> to vector<2x32xf32>
    %360 = math.tanh %359 : vector<2x32xf32>
    %361 = vector.extract_strided_slice %346 {offsets = [0, 96], sizes = [2, 32], strides = [1, 1]} : vector<2x128xf32> to vector<2x32xf32>
    %362 = arith.negf %361 : vector<2x32xf32>
    %363 = math.exp %362 : vector<2x32xf32>
    %cst_127 = arith.constant 1.000000e+00 : f32
    %364 = vector.broadcast %cst_127 : f32 to vector<2x32xf32>
    %365 = arith.addf %364, %363 : vector<2x32xf32>
    %366 = arith.divf %364, %365 : vector<2x32xf32>
    %367 = arith.mulf %358, %334 : vector<2x32xf32>
    %368 = arith.mulf %352, %360 : vector<2x32xf32>
    %369 = arith.addf %367, %368 : vector<2x32xf32>
    %370 = math.tanh %369 : vector<2x32xf32>
    %371 = arith.mulf %366, %370 : vector<2x32xf32>
    %372 = arith.index_cast %c1_i32_119 : i32 to index
    %c0_128 = arith.constant 0 : index
    %c0_129 = arith.constant 0 : index
    %373 = vector.load %arg12[%372, %c0_128, %c0_129] : memref<8x2x32xf32, #tpu.memory_space<vmem>>, vector<1x2x32xf32>
    %374 = vector.shape_cast %373 : vector<1x2x32xf32> to vector<2x32xf32>
    %375 = vector.shape_cast %371 : vector<2x32xf32> to vector<1x2x32xf32>
    tpu.vector_store %arg12[%372, %c0_128, %c0_129], %375 {strides = array<i32>} : memref<8x2x32xf32, #tpu.memory_space<vmem>>, vector<1x2x32xf32>,
    %c2_i32_130 = arith.constant 2 : i32
    %376 = arith.index_cast %c2_i32_130 : i32 to index
    %c0_131 = arith.constant 0 : index
    %c0_132 = arith.constant 0 : index
    %377 = vector.load %arg13[%376, %c0_131, %c0_132] : memref<8x2x128xf32, #tpu.memory_space<vmem>>, vector<1x2x128xf32>
    %378 = vector.shape_cast %377 : vector<1x2x128xf32> to vector<2x128xf32>
    %c0_133 = arith.constant 0 : index
    %c0_134 = arith.constant 0 : index
    %379 = vector.load %arg5[%c0_133, %c0_134] : memref<32x128xf32, #tpu.memory_space<vmem>>, vector<32x128xf32>
    %cst_135 = arith.constant dense<0.000000e+00> : vector<2x128xf32>
    %380 = tpu.matmul %371, %379, %cst_135 {dimension_numbers = #tpu.dot_dimension_numbers<[1], [0], [0], [1], [0, 0, 1, 1], [], []>} : vector<2x32xf32>, vector<32x128xf32>, vector<2x128xf32> -> vector<2x128xf32>
    %381 = arith.addf %378, %380 : vector<2x128xf32>
    %382 = vector.extract_strided_slice %381 {offsets = [0, 0], sizes = [2, 32], strides = [1, 1]} : vector<2x128xf32> to vector<2x32xf32>
    %383 = arith.negf %382 : vector<2x32xf32>
    %384 = math.exp %383 : vector<2x32xf32>
    %cst_136 = arith.constant 1.000000e+00 : f32
    %385 = vector.broadcast %cst_136 : f32 to vector<2x32xf32>
    %386 = arith.addf %385, %384 : vector<2x32xf32>
    %387 = arith.divf %385, %386 : vector<2x32xf32>
    %388 = vector.extract_strided_slice %381 {offsets = [0, 32], sizes = [2, 32], strides = [1, 1]} : vector<2x128xf32> to vector<2x32xf32>
    %389 = arith.negf %388 : vector<2x32xf32>
    %390 = math.exp %389 : vector<2x32xf32>
    %cst_137 = arith.constant 1.000000e+00 : f32
    %391 = vector.broadcast %cst_137 : f32 to vector<2x32xf32>
    %392 = arith.addf %391, %390 : vector<2x32xf32>
    %393 = arith.divf %391, %392 : vector<2x32xf32>
    %394 = vector.extract_strided_slice %381 {offsets = [0, 64], sizes = [2, 32], strides = [1, 1]} : vector<2x128xf32> to vector<2x32xf32>
    %395 = math.tanh %394 : vector<2x32xf32>
    %396 = vector.extract_strided_slice %381 {offsets = [0, 96], sizes = [2, 32], strides = [1, 1]} : vector<2x128xf32> to vector<2x32xf32>
    %397 = arith.negf %396 : vector<2x32xf32>
    %398 = math.exp %397 : vector<2x32xf32>
    %cst_138 = arith.constant 1.000000e+00 : f32
    %399 = vector.broadcast %cst_138 : f32 to vector<2x32xf32>
    %400 = arith.addf %399, %398 : vector<2x32xf32>
    %401 = arith.divf %399, %400 : vector<2x32xf32>
    %402 = arith.mulf %393, %369 : vector<2x32xf32>
    %403 = arith.mulf %387, %395 : vector<2x32xf32>
    %404 = arith.addf %402, %403 : vector<2x32xf32>
    %405 = math.tanh %404 : vector<2x32xf32>
    %406 = arith.mulf %401, %405 : vector<2x32xf32>
    %407 = arith.index_cast %c2_i32_130 : i32 to index
    %c0_139 = arith.constant 0 : index
    %c0_140 = arith.constant 0 : index
    %408 = vector.load %arg12[%407, %c0_139, %c0_140] : memref<8x2x32xf32, #tpu.memory_space<vmem>>, vector<1x2x32xf32>
    %409 = vector.shape_cast %408 : vector<1x2x32xf32> to vector<2x32xf32>
    %410 = vector.shape_cast %406 : vector<2x32xf32> to vector<1x2x32xf32>
    tpu.vector_store %arg12[%407, %c0_139, %c0_140], %410 {strides = array<i32>} : memref<8x2x32xf32, #tpu.memory_space<vmem>>, vector<1x2x32xf32>,
    %c3_i32_141 = arith.constant 3 : i32
    %411 = arith.index_cast %c3_i32_141 : i32 to index
    %c0_142 = arith.constant 0 : index
    %c0_143 = arith.constant 0 : index
    %412 = vector.load %arg13[%411, %c0_142, %c0_143] : memref<8x2x128xf32, #tpu.memory_space<vmem>>, vector<1x2x128xf32>
    %413 = vector.shape_cast %412 : vector<1x2x128xf32> to vector<2x128xf32>
    %c0_144 = arith.constant 0 : index
    %c0_145 = arith.constant 0 : index
    %414 = vector.load %arg5[%c0_144, %c0_145] : memref<32x128xf32, #tpu.memory_space<vmem>>, vector<32x128xf32>
    %cst_146 = arith.constant dense<0.000000e+00> : vector<2x128xf32>
    %415 = tpu.matmul %406, %414, %cst_146 {dimension_numbers = #tpu.dot_dimension_numbers<[1], [0], [0], [1], [0, 0, 1, 1], [], []>} : vector<2x32xf32>, vector<32x128xf32>, vector<2x128xf32> -> vector<2x128xf32>
    %416 = arith.addf %413, %415 : vector<2x128xf32>
    %417 = vector.extract_strided_slice %416 {offsets = [0, 0], sizes = [2, 32], strides = [1, 1]} : vector<2x128xf32> to vector<2x32xf32>
    %418 = arith.negf %417 : vector<2x32xf32>
    %419 = math.exp %418 : vector<2x32xf32>
    %cst_147 = arith.constant 1.000000e+00 : f32
    %420 = vector.broadcast %cst_147 : f32 to vector<2x32xf32>
    %421 = arith.addf %420, %419 : vector<2x32xf32>
    %422 = arith.divf %420, %421 : vector<2x32xf32>
    %423 = vector.extract_strided_slice %416 {offsets = [0, 32], sizes = [2, 32], strides = [1, 1]} : vector<2x128xf32> to vector<2x32xf32>
    %424 = arith.negf %423 : vector<2x32xf32>
    %425 = math.exp %424 : vector<2x32xf32>
    %cst_148 = arith.constant 1.000000e+00 : f32
    %426 = vector.broadcast %cst_148 : f32 to vector<2x32xf32>
    %427 = arith.addf %426, %425 : vector<2x32xf32>
    %428 = arith.divf %426, %427 : vector<2x32xf32>
    %429 = vector.extract_strided_slice %416 {offsets = [0, 64], sizes = [2, 32], strides = [1, 1]} : vector<2x128xf32> to vector<2x32xf32>
    %430 = math.tanh %429 : vector<2x32xf32>
    %431 = vector.extract_strided_slice %416 {offsets = [0, 96], sizes = [2, 32], strides = [1, 1]} : vector<2x128xf32> to vector<2x32xf32>
    %432 = arith.negf %431 : vector<2x32xf32>
    %433 = math.exp %432 : vector<2x32xf32>
    %cst_149 = arith.constant 1.000000e+00 : f32
    %434 = vector.broadcast %cst_149 : f32 to vector<2x32xf32>
    %435 = arith.addf %434, %433 : vector<2x32xf32>
    %436 = arith.divf %434, %435 : vector<2x32xf32>
    %437 = arith.mulf %428, %404 : vector<2x32xf32>
    %438 = arith.mulf %422, %430 : vector<2x32xf32>
    %439 = arith.addf %437, %438 : vector<2x32xf32>
    %440 = math.tanh %439 : vector<2x32xf32>
    %441 = arith.mulf %436, %440 : vector<2x32xf32>
    %442 = arith.index_cast %c3_i32_141 : i32 to index
    %c0_150 = arith.constant 0 : index
    %c0_151 = arith.constant 0 : index
    %443 = vector.load %arg12[%442, %c0_150, %c0_151] : memref<8x2x32xf32, #tpu.memory_space<vmem>>, vector<1x2x32xf32>
    %444 = vector.shape_cast %443 : vector<1x2x32xf32> to vector<2x32xf32>
    %445 = vector.shape_cast %441 : vector<2x32xf32> to vector<1x2x32xf32>
    tpu.vector_store %arg12[%442, %c0_150, %c0_151], %445 {strides = array<i32>} : memref<8x2x32xf32, #tpu.memory_space<vmem>>, vector<1x2x32xf32>,
    %c4_i32_152 = arith.constant 4 : i32
    %446 = arith.index_cast %c4_i32_152 : i32 to index
    %c0_153 = arith.constant 0 : index
    %c0_154 = arith.constant 0 : index
    %447 = vector.load %arg13[%446, %c0_153, %c0_154] : memref<8x2x128xf32, #tpu.memory_space<vmem>>, vector<1x2x128xf32>
    %448 = vector.shape_cast %447 : vector<1x2x128xf32> to vector<2x128xf32>
    %c0_155 = arith.constant 0 : index
    %c0_156 = arith.constant 0 : index
    %449 = vector.load %arg5[%c0_155, %c0_156] : memref<32x128xf32, #tpu.memory_space<vmem>>, vector<32x128xf32>
    %cst_157 = arith.constant dense<0.000000e+00> : vector<2x128xf32>
    %450 = tpu.matmul %441, %449, %cst_157 {dimension_numbers = #tpu.dot_dimension_numbers<[1], [0], [0], [1], [0, 0, 1, 1], [], []>} : vector<2x32xf32>, vector<32x128xf32>, vector<2x128xf32> -> vector<2x128xf32>
    %451 = arith.addf %448, %450 : vector<2x128xf32>
    %452 = vector.extract_strided_slice %451 {offsets = [0, 0], sizes = [2, 32], strides = [1, 1]} : vector<2x128xf32> to vector<2x32xf32>
    %453 = arith.negf %452 : vector<2x32xf32>
    %454 = math.exp %453 : vector<2x32xf32>
    %cst_158 = arith.constant 1.000000e+00 : f32
    %455 = vector.broadcast %cst_158 : f32 to vector<2x32xf32>
    %456 = arith.addf %455, %454 : vector<2x32xf32>
    %457 = arith.divf %455, %456 : vector<2x32xf32>
    %458 = vector.extract_strided_slice %451 {offsets = [0, 32], sizes = [2, 32], strides = [1, 1]} : vector<2x128xf32> to vector<2x32xf32>
    %459 = arith.negf %458 : vector<2x32xf32>
    %460 = math.exp %459 : vector<2x32xf32>
    %cst_159 = arith.constant 1.000000e+00 : f32
    %461 = vector.broadcast %cst_159 : f32 to vector<2x32xf32>
    %462 = arith.addf %461, %460 : vector<2x32xf32>
    %463 = arith.divf %461, %462 : vector<2x32xf32>
    %464 = vector.extract_strided_slice %451 {offsets = [0, 64], sizes = [2, 32], strides = [1, 1]} : vector<2x128xf32> to vector<2x32xf32>
    %465 = math.tanh %464 : vector<2x32xf32>
    %466 = vector.extract_strided_slice %451 {offsets = [0, 96], sizes = [2, 32], strides = [1, 1]} : vector<2x128xf32> to vector<2x32xf32>
    %467 = arith.negf %466 : vector<2x32xf32>
    %468 = math.exp %467 : vector<2x32xf32>
    %cst_160 = arith.constant 1.000000e+00 : f32
    %469 = vector.broadcast %cst_160 : f32 to vector<2x32xf32>
    %470 = arith.addf %469, %468 : vector<2x32xf32>
    %471 = arith.divf %469, %470 : vector<2x32xf32>
    %472 = arith.mulf %463, %439 : vector<2x32xf32>
    %473 = arith.mulf %457, %465 : vector<2x32xf32>
    %474 = arith.addf %472, %473 : vector<2x32xf32>
    %475 = math.tanh %474 : vector<2x32xf32>
    %476 = arith.mulf %471, %475 : vector<2x32xf32>
    %477 = arith.index_cast %c4_i32_152 : i32 to index
    %c0_161 = arith.constant 0 : index
    %c0_162 = arith.constant 0 : index
    %478 = vector.load %arg12[%477, %c0_161, %c0_162] : memref<8x2x32xf32, #tpu.memory_space<vmem>>, vector<1x2x32xf32>
    %479 = vector.shape_cast %478 : vector<1x2x32xf32> to vector<2x32xf32>
    %480 = vector.shape_cast %476 : vector<2x32xf32> to vector<1x2x32xf32>
    tpu.vector_store %arg12[%477, %c0_161, %c0_162], %480 {strides = array<i32>} : memref<8x2x32xf32, #tpu.memory_space<vmem>>, vector<1x2x32xf32>,
    %c5_i32_163 = arith.constant 5 : i32
    %481 = arith.index_cast %c5_i32_163 : i32 to index
    %c0_164 = arith.constant 0 : index
    %c0_165 = arith.constant 0 : index
    %482 = vector.load %arg13[%481, %c0_164, %c0_165] : memref<8x2x128xf32, #tpu.memory_space<vmem>>, vector<1x2x128xf32>
    %483 = vector.shape_cast %482 : vector<1x2x128xf32> to vector<2x128xf32>
    %c0_166 = arith.constant 0 : index
    %c0_167 = arith.constant 0 : index
    %484 = vector.load %arg5[%c0_166, %c0_167] : memref<32x128xf32, #tpu.memory_space<vmem>>, vector<32x128xf32>
    %cst_168 = arith.constant dense<0.000000e+00> : vector<2x128xf32>
    %485 = tpu.matmul %476, %484, %cst_168 {dimension_numbers = #tpu.dot_dimension_numbers<[1], [0], [0], [1], [0, 0, 1, 1], [], []>} : vector<2x32xf32>, vector<32x128xf32>, vector<2x128xf32> -> vector<2x128xf32>
    %486 = arith.addf %483, %485 : vector<2x128xf32>
    %487 = vector.extract_strided_slice %486 {offsets = [0, 0], sizes = [2, 32], strides = [1, 1]} : vector<2x128xf32> to vector<2x32xf32>
    %488 = arith.negf %487 : vector<2x32xf32>
    %489 = math.exp %488 : vector<2x32xf32>
    %cst_169 = arith.constant 1.000000e+00 : f32
    %490 = vector.broadcast %cst_169 : f32 to vector<2x32xf32>
    %491 = arith.addf %490, %489 : vector<2x32xf32>
    %492 = arith.divf %490, %491 : vector<2x32xf32>
    %493 = vector.extract_strided_slice %486 {offsets = [0, 32], sizes = [2, 32], strides = [1, 1]} : vector<2x128xf32> to vector<2x32xf32>
    %494 = arith.negf %493 : vector<2x32xf32>
    %495 = math.exp %494 : vector<2x32xf32>
    %cst_170 = arith.constant 1.000000e+00 : f32
    %496 = vector.broadcast %cst_170 : f32 to vector<2x32xf32>
    %497 = arith.addf %496, %495 : vector<2x32xf32>
    %498 = arith.divf %496, %497 : vector<2x32xf32>
    %499 = vector.extract_strided_slice %486 {offsets = [0, 64], sizes = [2, 32], strides = [1, 1]} : vector<2x128xf32> to vector<2x32xf32>
    %500 = math.tanh %499 : vector<2x32xf32>
    %501 = vector.extract_strided_slice %486 {offsets = [0, 96], sizes = [2, 32], strides = [1, 1]} : vector<2x128xf32> to vector<2x32xf32>
    %502 = arith.negf %501 : vector<2x32xf32>
    %503 = math.exp %502 : vector<2x32xf32>
    %cst_171 = arith.constant 1.000000e+00 : f32
    %504 = vector.broadcast %cst_171 : f32 to vector<2x32xf32>
    %505 = arith.addf %504, %503 : vector<2x32xf32>
    %506 = arith.divf %504, %505 : vector<2x32xf32>
    %507 = arith.mulf %498, %474 : vector<2x32xf32>
    %508 = arith.mulf %492, %500 : vector<2x32xf32>
    %509 = arith.addf %507, %508 : vector<2x32xf32>
    %510 = math.tanh %509 : vector<2x32xf32>
    %511 = arith.mulf %506, %510 : vector<2x32xf32>
    %512 = arith.index_cast %c5_i32_163 : i32 to index
    %c0_172 = arith.constant 0 : index
    %c0_173 = arith.constant 0 : index
    %513 = vector.load %arg12[%512, %c0_172, %c0_173] : memref<8x2x32xf32, #tpu.memory_space<vmem>>, vector<1x2x32xf32>
    %514 = vector.shape_cast %513 : vector<1x2x32xf32> to vector<2x32xf32>
    %515 = vector.shape_cast %511 : vector<2x32xf32> to vector<1x2x32xf32>
    tpu.vector_store %arg12[%512, %c0_172, %c0_173], %515 {strides = array<i32>} : memref<8x2x32xf32, #tpu.memory_space<vmem>>, vector<1x2x32xf32>,
    %c6_i32_174 = arith.constant 6 : i32
    %516 = arith.index_cast %c6_i32_174 : i32 to index
    %c0_175 = arith.constant 0 : index
    %c0_176 = arith.constant 0 : index
    %517 = vector.load %arg13[%516, %c0_175, %c0_176] : memref<8x2x128xf32, #tpu.memory_space<vmem>>, vector<1x2x128xf32>
    %518 = vector.shape_cast %517 : vector<1x2x128xf32> to vector<2x128xf32>
    %c0_177 = arith.constant 0 : index
    %c0_178 = arith.constant 0 : index
    %519 = vector.load %arg5[%c0_177, %c0_178] : memref<32x128xf32, #tpu.memory_space<vmem>>, vector<32x128xf32>
    %cst_179 = arith.constant dense<0.000000e+00> : vector<2x128xf32>
    %520 = tpu.matmul %511, %519, %cst_179 {dimension_numbers = #tpu.dot_dimension_numbers<[1], [0], [0], [1], [0, 0, 1, 1], [], []>} : vector<2x32xf32>, vector<32x128xf32>, vector<2x128xf32> -> vector<2x128xf32>
    %521 = arith.addf %518, %520 : vector<2x128xf32>
    %522 = vector.extract_strided_slice %521 {offsets = [0, 0], sizes = [2, 32], strides = [1, 1]} : vector<2x128xf32> to vector<2x32xf32>
    %523 = arith.negf %522 : vector<2x32xf32>
    %524 = math.exp %523 : vector<2x32xf32>
    %cst_180 = arith.constant 1.000000e+00 : f32
    %525 = vector.broadcast %cst_180 : f32 to vector<2x32xf32>
    %526 = arith.addf %525, %524 : vector<2x32xf32>
    %527 = arith.divf %525, %526 : vector<2x32xf32>
    %528 = vector.extract_strided_slice %521 {offsets = [0, 32], sizes = [2, 32], strides = [1, 1]} : vector<2x128xf32> to vector<2x32xf32>
    %529 = arith.negf %528 : vector<2x32xf32>
    %530 = math.exp %529 : vector<2x32xf32>
    %cst_181 = arith.constant 1.000000e+00 : f32
    %531 = vector.broadcast %cst_181 : f32 to vector<2x32xf32>
    %532 = arith.addf %531, %530 : vector<2x32xf32>
    %533 = arith.divf %531, %532 : vector<2x32xf32>
    %534 = vector.extract_strided_slice %521 {offsets = [0, 64], sizes = [2, 32], strides = [1, 1]} : vector<2x128xf32> to vector<2x32xf32>
    %535 = math.tanh %534 : vector<2x32xf32>
    %536 = vector.extract_strided_slice %521 {offsets = [0, 96], sizes = [2, 32], strides = [1, 1]} : vector<2x128xf32> to vector<2x32xf32>
    %537 = arith.negf %536 : vector<2x32xf32>
    %538 = math.exp %537 : vector<2x32xf32>
    %cst_182 = arith.constant 1.000000e+00 : f32
    %539 = vector.broadcast %cst_182 : f32 to vector<2x32xf32>
    %540 = arith.addf %539, %538 : vector<2x32xf32>
    %541 = arith.divf %539, %540 : vector<2x32xf32>
    %542 = arith.mulf %533, %509 : vector<2x32xf32>
    %543 = arith.mulf %527, %535 : vector<2x32xf32>
    %544 = arith.addf %542, %543 : vector<2x32xf32>
    %545 = math.tanh %544 : vector<2x32xf32>
    %546 = arith.mulf %541, %545 : vector<2x32xf32>
    %547 = arith.index_cast %c6_i32_174 : i32 to index
    %c0_183 = arith.constant 0 : index
    %c0_184 = arith.constant 0 : index
    %548 = vector.load %arg12[%547, %c0_183, %c0_184] : memref<8x2x32xf32, #tpu.memory_space<vmem>>, vector<1x2x32xf32>
    %549 = vector.shape_cast %548 : vector<1x2x32xf32> to vector<2x32xf32>
    %550 = vector.shape_cast %546 : vector<2x32xf32> to vector<1x2x32xf32>
    tpu.vector_store %arg12[%547, %c0_183, %c0_184], %550 {strides = array<i32>} : memref<8x2x32xf32, #tpu.memory_space<vmem>>, vector<1x2x32xf32>,
    %c7_i32_185 = arith.constant 7 : i32
    %551 = arith.index_cast %c7_i32_185 : i32 to index
    %c0_186 = arith.constant 0 : index
    %c0_187 = arith.constant 0 : index
    %552 = vector.load %arg13[%551, %c0_186, %c0_187] : memref<8x2x128xf32, #tpu.memory_space<vmem>>, vector<1x2x128xf32>
    %553 = vector.shape_cast %552 : vector<1x2x128xf32> to vector<2x128xf32>
    %c0_188 = arith.constant 0 : index
    %c0_189 = arith.constant 0 : index
    %554 = vector.load %arg5[%c0_188, %c0_189] : memref<32x128xf32, #tpu.memory_space<vmem>>, vector<32x128xf32>
    %cst_190 = arith.constant dense<0.000000e+00> : vector<2x128xf32>
    %555 = tpu.matmul %546, %554, %cst_190 {dimension_numbers = #tpu.dot_dimension_numbers<[1], [0], [0], [1], [0, 0, 1, 1], [], []>} : vector<2x32xf32>, vector<32x128xf32>, vector<2x128xf32> -> vector<2x128xf32>
    %556 = arith.addf %553, %555 : vector<2x128xf32>
    %557 = vector.extract_strided_slice %556 {offsets = [0, 0], sizes = [2, 32], strides = [1, 1]} : vector<2x128xf32> to vector<2x32xf32>
    %558 = arith.negf %557 : vector<2x32xf32>
    %559 = math.exp %558 : vector<2x32xf32>
    %cst_191 = arith.constant 1.000000e+00 : f32
    %560 = vector.broadcast %cst_191 : f32 to vector<2x32xf32>
    %561 = arith.addf %560, %559 : vector<2x32xf32>
    %562 = arith.divf %560, %561 : vector<2x32xf32>
    %563 = vector.extract_strided_slice %556 {offsets = [0, 32], sizes = [2, 32], strides = [1, 1]} : vector<2x128xf32> to vector<2x32xf32>
    %564 = arith.negf %563 : vector<2x32xf32>
    %565 = math.exp %564 : vector<2x32xf32>
    %cst_192 = arith.constant 1.000000e+00 : f32
    %566 = vector.broadcast %cst_192 : f32 to vector<2x32xf32>
    %567 = arith.addf %566, %565 : vector<2x32xf32>
    %568 = arith.divf %566, %567 : vector<2x32xf32>
    %569 = vector.extract_strided_slice %556 {offsets = [0, 64], sizes = [2, 32], strides = [1, 1]} : vector<2x128xf32> to vector<2x32xf32>
    %570 = math.tanh %569 : vector<2x32xf32>
    %571 = vector.extract_strided_slice %556 {offsets = [0, 96], sizes = [2, 32], strides = [1, 1]} : vector<2x128xf32> to vector<2x32xf32>
    %572 = arith.negf %571 : vector<2x32xf32>
    %573 = math.exp %572 : vector<2x32xf32>
    %cst_193 = arith.constant 1.000000e+00 : f32
    %574 = vector.broadcast %cst_193 : f32 to vector<2x32xf32>
    %575 = arith.addf %574, %573 : vector<2x32xf32>
    %576 = arith.divf %574, %575 : vector<2x32xf32>
    %577 = arith.mulf %568, %544 : vector<2x32xf32>
    %578 = arith.mulf %562, %570 : vector<2x32xf32>
    %579 = arith.addf %577, %578 : vector<2x32xf32>
    %580 = math.tanh %579 : vector<2x32xf32>
    %581 = arith.mulf %576, %580 : vector<2x32xf32>
    %582 = arith.index_cast %c7_i32_185 : i32 to index
    %c0_194 = arith.constant 0 : index
    %c0_195 = arith.constant 0 : index
    %583 = vector.load %arg12[%582, %c0_194, %c0_195] : memref<8x2x32xf32, #tpu.memory_space<vmem>>, vector<1x2x32xf32>
    %584 = vector.shape_cast %583 : vector<1x2x32xf32> to vector<2x32xf32>
    %585 = vector.shape_cast %581 : vector<2x32xf32> to vector<1x2x32xf32>
    tpu.vector_store %arg12[%582, %c0_194, %c0_195], %585 {strides = array<i32>} : memref<8x2x32xf32, #tpu.memory_space<vmem>>, vector<1x2x32xf32>,
    %c8_i32_196 = arith.constant 8 : i32
    %c1 = arith.constant 1 : index
    %c0_197 = arith.constant 0 : index
    %c0_198 = arith.constant 0 : index
    %586 = vector.load %arg10[%c1, %c0_197, %c0_198] : memref<2x2x32xf32, #tpu.memory_space<vmem>>, vector<1x2x32xf32>
    %587 = vector.shape_cast %586 : vector<1x2x32xf32> to vector<2x32xf32>
    %588 = vector.shape_cast %581 : vector<2x32xf32> to vector<1x2x32xf32>
    tpu.vector_store %arg10[%c1, %c0_197, %c0_198], %588 {strides = array<i32>} : memref<2x2x32xf32, #tpu.memory_space<vmem>>, vector<1x2x32xf32>,
    %c1_199 = arith.constant 1 : index
    %c0_200 = arith.constant 0 : index
    %c0_201 = arith.constant 0 : index
    %589 = vector.load %arg11[%c1_199, %c0_200, %c0_201] : memref<2x2x32xf32, #tpu.memory_space<vmem>>, vector<1x2x32xf32>
    %590 = vector.shape_cast %589 : vector<1x2x32xf32> to vector<2x32xf32>
    %591 = vector.shape_cast %579 : vector<2x32xf32> to vector<1x2x32xf32>
    tpu.vector_store %arg11[%c1_199, %c0_200, %c0_201], %591 {strides = array<i32>} : memref<2x2x32xf32, #tpu.memory_space<vmem>>, vector<1x2x32xf32>,
    %c0_202 = arith.constant 0 : index
    %c0_203 = arith.constant 0 : index
    %592 = vector.load %arg7[%c0_202, %c0_203] : memref<32x10xf32, #tpu.memory_space<vmem>>, vector<32x10xf32>
    %cst_204 = arith.constant dense<0.000000e+00> : vector<2x10xf32>
    %593 = tpu.matmul %581, %592, %cst_204 {dimension_numbers = #tpu.dot_dimension_numbers<[1], [0], [0], [1], [0, 0, 1, 1], [], []>} : vector<2x32xf32>, vector<32x10xf32>, vector<2x10xf32> -> vector<2x10xf32>
    %c0_205 = arith.constant 0 : index
    %c0_206 = arith.constant 0 : index
    %594 = vector.load %arg8[%c0_205, %c0_206] : memref<1x10xf32, #tpu.memory_space<vmem>>, vector<1x10xf32>
    %595 = vector.broadcast %594 : vector<1x10xf32> to vector<2x10xf32>
    %596 = arith.addf %593, %595 : vector<2x10xf32>
    %c0_207 = arith.constant 0 : index
    %c0_208 = arith.constant 0 : index
    %597 = vector.load %arg9[%c0_207, %c0_208] : memref<2x10xf32, #tpu.memory_space<vmem>>, vector<2x10xf32>
    tpu.vector_store %arg9[%c0_207, %c0_208], %596 {strides = array<i32>} : memref<2x10xf32, #tpu.memory_space<vmem>>, vector<2x10xf32>,
    return
  }
}

</mosaic_0001>

<llo_original>
// kernel: _lambda_.1
$region0: #{_lambda_.1}
  #allocation0 [shape = 'u32[]', space=smem, size = 0x4, offset = 0x4, fixed_abs, tag = 'smem constant byte address 0x4 - core index']
  #allocation1 [shape = 'u32[144,128]{1,0:T(1,128)}', space=vmem, size = 0x12000, scoped, tag = 'internal scratch']
  #allocation2 [shape = 'f32[8,2,32]{2,1,0:T(2,128)}', space=vmem, size = 0x2000, scoped, tag = 'scratch operand']
  #allocation3 [shape = 'f32[8,2,128]{2,1,0:T(2,128)}', space=vmem, size = 0x2000, scoped, tag = 'scratch operand']
  %s0 = inlined_call_operand.vmem [shape: f32[8,2,16], index: 0, kind: input, shape index: {}]
  %s1 = inlined_call_operand.vmem [shape: f32[16,128], index: 1, kind: input, shape index: {}]
  %s2 = inlined_call_operand.vmem [shape: f32[32,128], index: 2, kind: input, shape index: {}]
  %s3 = inlined_call_operand.vmem [shape: f32[1,128], index: 3, kind: input, shape index: {}]
  %s4 = inlined_call_operand.hbm [shape: f32[32,128], index: 4, kind: input, shape index: {}]
  %s5 = inlined_call_operand.hbm [shape: f32[32,128], index: 5, kind: input, shape index: {}]
  %s6 = inlined_call_operand.vmem [shape: f32[1,128], index: 6, kind: input, shape index: {}]
  %s7 = inlined_call_operand.hbm [shape: f32[32,10], index: 7, kind: input, shape index: {}]
  %s8 = inlined_call_operand.vmem [shape: f32[1,10], index: 8, kind: input, shape index: {}]
  %s9 = inlined_call_operand.hbm [shape: f32[2,10], index: 9, kind: output, shape index: {0}]
  %s10 = inlined_call_operand.hbm [shape: f32[2,2,32], index: 10, kind: output, shape index: {1}]
  %s11 = inlined_call_operand.hbm [shape: f32[2,2,32], index: 11, kind: output, shape index: {2}]
  %12 = xla_tuple %s9, %s10, %s11
  %s13 = sld [smem:[#allocation0]]
  $region74: #{_lambda_.1} parent=0
    _
  %s15 = ssub.s32 1, %s13
  %s16 = scalar_select 0, %s15, %s13
  $region1: #{_lambda_.1} parent=0
    #allocation4 [shape = 'u8[16384]{0}', space=vmem, size = 0x4000, scoped, tag = 'input window, operand 4, single buffered']
    #allocation5 [shape = 's32[1]{0}', space=sflag, size = 0x4, scoped, tag = 'scoped memory for _lambda_.1']
    #allocation6 [shape = 's32[1]{0}', space=sflag, size = 0x4, scoped, tag = 'scoped memory for _lambda_.1']
    #allocation7 [shape = 'u8[16384]{0}', space=vmem, size = 0x4000, scoped, tag = 'input window, operand 5, single buffered']
    #allocation8 [shape = 's32[1]{0}', space=sflag, size = 0x4, scoped, tag = 'scoped memory for _lambda_.1']
    #allocation9 [shape = 'u8[16384]{0}', space=vmem, size = 0x4000, scoped, tag = 'input window, operand 7, single buffered']
    #allocation10 [shape = 'u8[1024]{0}', space=vmem, size = 0x400, scoped, tag = 'output window, operand 0, single buffered']
    #allocation11 [shape = 'u8[2048]{0}', space=vmem, size = 0x800, scoped, tag = 'output window, operand 1, single buffered']
    #allocation12 [shape = 's32[1]{0}', space=sflag, size = 0x4, scoped, tag = 'scoped memory for _lambda_.1']
    #allocation13 [shape = 'u8[2048]{0}', space=vmem, size = 0x800, scoped, tag = 'output window, operand 2, single buffered']
    %17 = vsyncpa [#allocation5], 0
    %18 = vsyncpa [#allocation8], 0
    %19 = vsyncpa [#allocation6], 0
    %20 = vsyncpa [#allocation12], 0
    // Predicated region
    $region2: #{_lambda_.1} parent=1 // pred_check
      _
    $region3: #{_lambda_.1} parent=1 // pred_check_branch
      %22 = sbr.rel (0) target = $region5
    $region4: #{_lambda_.1} parent=1 // pred_region
      _
    $region5: #{_lambda_.1} parent=1 // pred_fallthru
      _
    // Predicated region
    $region6: #{_lambda_.1} parent=1 // pred_check
      _
    $region7: #{_lambda_.1} parent=1 // pred_check_branch
      %24 = sbr.rel (0) target = $region9
    $region8: #{_lambda_.1} parent=1 // pred_region
      _
    $region9: #{_lambda_.1} parent=1 // pred_fallthru
      _
    // Predicated region
    $region10: #{_lambda_.1} parent=1 // pred_check
      _
    $region11: #{_lambda_.1} parent=1 // pred_check_branch
      %26 = sbr.rel (0) target = $region13
    $region12: #{_lambda_.1} parent=1 // pred_region
      _
    $region13: #{_lambda_.1} parent=1 // pred_fallthru
      _
    // Predicated region
    $region14: #{_lambda_.1} parent=1 // pred_check
      _
    $region15: #{_lambda_.1} parent=1 // pred_check_branch
      %28 = sbr.rel (0) target = $region17
    $region16: #{_lambda_.1} parent=1 // pred_region
      _
    $region17: #{_lambda_.1} parent=1 // pred_fallthru
      _
    // Predicated region
    $region18: #{_lambda_.1} parent=1 // pred_check
      _
    $region19: #{_lambda_.1} parent=1 // pred_check_branch
      %30 = sbr.rel (0) target = $region21
    $region20: #{_lambda_.1} parent=1 // pred_region
      %s32 = ssub.s32 512, 512
      %33 = vsyncadd [#allocation5], %s32
      %s34 = sshll.u32 [#allocation4], 4
      %s35 = int_to_ptr.vmem [resolvable:$true] %s34
      %40 = dma.hbm_to_vmem [thread:$0]  %s4, 512, %s35, [#allocation5], 128, 128, 8
    $region21: #{_lambda_.1} parent=1 // pred_fallthru
      _
    // Predicated region
    $region22: #{_lambda_.1} parent=1 // pred_check
      _
    $region23: #{_lambda_.1} parent=1 // pred_check_branch
      %42 = sbr.rel (0) target = $region25
    $region24: #{_lambda_.1} parent=1 // pred_region
      %s44 = ssub.s32 512, 512
      %45 = vsyncadd [#allocation8], %s44
      %s46 = sshll.u32 [#allocation7], 4
      %s47 = int_to_ptr.vmem [resolvable:$true] %s46
      %52 = dma.hbm_to_vmem [thread:$0]  %s5, 512, %s47, [#allocation8], 128, 128, 8
    $region25: #{_lambda_.1} parent=1 // pred_fallthru
      _
    // Predicated region
    $region26: #{_lambda_.1} parent=1 // pred_check
      _
    $region27: #{_lambda_.1} parent=1 // pred_check_branch
      %54 = sbr.rel (0) target = $region29
    $region28: #{_lambda_.1} parent=1 // pred_region
      _
    $region29: #{_lambda_.1} parent=1 // pred_fallthru
      _
    // Predicated region
    $region30: #{_lambda_.1} parent=1 // pred_check
      _
    $region31: #{_lambda_.1} parent=1 // pred_check_branch
      %56 = sbr.rel (0) target = $region33
    $region32: #{_lambda_.1} parent=1 // pred_region
      %s58 = ssub.s32 512, 512
      %59 = vsyncadd [#allocation8], %s58
      %s60 = sshll.u32 [#allocation9], 4
      %s61 = int_to_ptr.vmem [resolvable:$true] %s60
      %66 = dma.hbm_to_vmem [thread:$0]  %s7, 512, %s61, [#allocation8], 128, 128, 8
    $region33: #{_lambda_.1} parent=1 // pred_fallthru
      _
    // Predicated region
    $region34: #{_lambda_.1} parent=1 // pred_check
      _
    $region35: #{_lambda_.1} parent=1 // pred_check_branch
      %68 = sbr.rel (0) target = $region37
    $region36: #{_lambda_.1} parent=1 // pred_region
      _
    $region37: #{_lambda_.1} parent=1 // pred_fallthru
      _
    // Predicated region
    $region38: #{_lambda_.1} parent=1 // pred_check
      _
    $region39: #{_lambda_.1} parent=1 // pred_check_branch
      %70 = sbr.rel (0) target = $region41
    $region40: #{_lambda_.1} parent=1 // pred_region
      %71 = dma.done [#allocation5], 512
    $region41: #{_lambda_.1} parent=1 // pred_fallthru
      _
    // Predicated region
    $region42: #{_lambda_.1} parent=1 // pred_check
      _
    $region43: #{_lambda_.1} parent=1 // pred_check_branch
      %73 = sbr.rel (0) target = $region45
    $region44: #{_lambda_.1} parent=1 // pred_region
      %74 = dma.done [#allocation8], 512
    $region45: #{_lambda_.1} parent=1 // pred_fallthru
      _
    // Predicated region
    $region46: #{_lambda_.1} parent=1 // pred_check
      _
    $region47: #{_lambda_.1} parent=1 // pred_check_branch
      %76 = sbr.rel (0) target = $region49
    $region48: #{_lambda_.1} parent=1 // pred_region
      %77 = dma.done [#allocation8], 512
    $region49: #{_lambda_.1} parent=1 // pred_fallthru
      _
    %v78 = vld [vmem:[%s0] sm:$0x3]
    %v79 = vld [vmem:[%s0 + $0x2] sm:$0x3]
    %v80 = vld [vmem:[%s0 + $0x4] sm:$0x3]
    %v81 = vld [vmem:[%s0 + $0x6] sm:$0x3]
    %v82 = vld [vmem:[%s0 + $0x8] sm:$0x3]
    %v83 = vld [vmem:[%s0 + $0xa] sm:$0x3]
    %v84 = vld [vmem:[%s0 + $0xc] sm:$0x3]
    %v85 = vld [vmem:[%s0 + $0xe] sm:$0x3]
    %v86 = vld [vmem:[%s1] sm:$0xff]
    %v87 = vld [vmem:[%s1 + $0x8] sm:$0xff]
    %v88 = vld [vmem:[%s3] sm:$0x1]
    %v90 = vlaneseq
    %v91 = vshrl.u32 %v90, 7
    %v92 = vsub.s32 0, %v91
    %v93 = vrot.slane %v88, %v92
    %v103 = vcombine.low %v78, %v79
    %v104 = vcombine.low %v80, %v81
    %v106 = vunpack.c.l.s4 1983009808
    %v107 = vunpack.c.0.s8 %v106
    %v108 = vlaneseq
    %v109 = vshrl.u32 %v108, 7
    %v110 = vsub.s32 %v107, %v109
    %v111 = vrot.slane %v103, %v110
    %v113 = vunpack.c.l.s4 1983009808
    %v114 = vunpack.c.0.s8 %v113
    %v115 = vlaneseq
    %v116 = vshrl.u32 %v115, 7
    %v117 = vsub.s32 %v114, %v116
    %v118 = vrot.slane %v104, %v117
    %v119 = vcombine.low %v111, %v118
    %v120 = vcombine.low %v82, %v83
    %v121 = vcombine.low %v84, %v85
    %v123 = vunpack.c.l.s4 1983009808
    %v124 = vunpack.c.0.s8 %v123
    %v125 = vlaneseq
    %v126 = vshrl.u32 %v125, 7
    %v127 = vsub.s32 %v124, %v126
    %v128 = vrot.slane %v120, %v127
    %v130 = vunpack.c.l.s4 1983009808
    %v131 = vunpack.c.0.s8 %v130
    %v132 = vlaneseq
    %v133 = vshrl.u32 %v132, 7
    %v134 = vsub.s32 %v131, %v133
    %v135 = vrot.slane %v121, %v134
    %v136 = vcombine.low %v128, %v135
    %vm137 = vcmask 130048
    %v138 = vsel %vm137, %v119, 0
    %v140 = vsel %vm137, %v136, 0
    %142 = vmatprep.subr.mxu0 0.0
    %143 = vmatpush1.msra.mxu0 %v86
    %144 = vmatprep.subr.mxu0 0.0
    %145 = vmatpush1.msra.mxu0 %v87
    %146 = vmatprep.subr.mxu0 0.0
    %147 = vmatpush1.msra.mxu0 0.0
    %148 = vmatprep.subr.mxu0 0.0
    %149 = vmatpush1.msra.mxu0 0.0
    %150 = vmatprep.subr.mxu0 0.0
    %151 = vmatpush1.msra.mxu0 0.0
    %152 = vmatprep.subr.mxu0 0.0
    %153 = vmatpush1.msra.mxu0 0.0
    %154 = vmatprep.subr.mxu0 0.0
    %155 = vmatpush1.msra.mxu0 0.0
    %156 = vmatprep.subr.mxu0 0.0
    %157 = vmatpush1.msra.mxu0 0.0
    %158 = vmatprep.subr.mxu0 0.0
    %159 = vmatpush1.msra.mxu0 0.0
    %160 = vmatprep.subr.mxu0 0.0
    %161 = vmatpush1.msra.mxu0 0.0
    %162 = vmatprep.subr.mxu0 0.0
    %163 = vmatpush1.msra.mxu0 0.0
    %164 = vmatprep.subr.mxu0 0.0
    %165 = vmatpush1.msra.mxu0 0.0
    %166 = vmatprep.subr.mxu0 0.0
    %167 = vmatpush1.msra.mxu0 0.0
    %168 = vmatprep.subr.mxu0 0.0
    %169 = vmatpush1.msra.mxu0 0.0
    %170 = vmatprep.subr.mxu0 0.0
    %171 = vmatpush1.msra.mxu0 0.0
    %172 = vmatprep.subr.mxu0 0.0
    %173 = vmatpush1.msra.mxu0 0.0
    %174 = vmatprep.subr.mxu0 0.0
    %175 = vmatpush1.msra.mxu0 0.0
    %176 = vmatprep.subr.mxu0 0.0
    %177 = vmatpush1.msra.mxu0 0.0
    %178 = vmatprep.subr.mxu0 0.0
    %179 = vmatpush1.msra.mxu0 0.0
    %180 = vmatprep.subr.mxu0 0.0
    %181 = vmatpush1.msra.mxu0 0.0
    %182 = vmatprep.subr.mxu0 0.0
    %183 = vmatpush1.msra.mxu0 0.0
    %184 = vmatprep.subr.mxu0 0.0
    %185 = vmatpush1.msra.mxu0 0.0
    %186 = vmatprep.subr.mxu0 0.0
    %187 = vmatpush1.msra.mxu0 0.0
    %188 = vmatprep.subr.mxu0 0.0
    %189 = vmatpush1.msra.mxu0 0.0
    %190 = vmatprep.subr.mxu0 0.0
    %191 = vmatpush1.msra.mxu0 0.0
    %192 = vmatprep.subr.mxu0 0.0
    %193 = vmatpush1.msra.mxu0 0.0
    %194 = vmatprep.subr.mxu0 0.0
    %195 = vmatpush1.msra.mxu0 0.0
    %196 = vmatprep.subr.mxu0 0.0
    %197 = vmatpush1.msra.mxu0 0.0
    %198 = vmatprep.subr.mxu0 0.0
    %199 = vmatpush1.msra.mxu0 0.0
    %200 = vmatprep.subr.mxu0 0.0
    %201 = vmatpush1.msra.mxu0 0.0
    %202 = vmatprep.subr.mxu0 0.0
    %203 = vmatpush1.msra.mxu0 0.0
    %204 = vmatprep.subr.mxu0 0.0
    %205 = vmatpush1.msra.mxu0 0.0
    %206 = vmatprep.mubr.f32.mxu0 0.0
    %207 = vmatmul.mubr.f32.gmra.mrb[0].mxu0 %v138
    %v208 = vpop.f32.mrb[0].mxu0
    %v209 = vadd.f32 %v93, %v208
    %v210 = vpop.f32.mrb[0].mxu0
    %211 = vmatprep.mubr.f32.mxu0 0.0
    %212 = vmatmul.mubr.f32.gmra.mrb[0].mxu0 %v140
    %v213 = vpop.f32.mrb[0].mxu0
    %v214 = vadd.f32 %v93, %v213
    %v215 = vpop.f32.mrb[0].mxu0
    %216 = vdwg.mxu0
    %v219 = vcombine.high %v209, %v209
    %v221 = vunpack.c.l.s4 1983009808
    %v222 = vunpack.c.0.s8 %v221
    %v223 = vlaneseq
    %v224 = vshrl.u32 %v223, 7
    %v225 = vsub.s32 %v222, %v224
    %v226 = vrot.slane %v209, %v225
    %v228 = vunpack.c.l.s4 1983009808
    %v229 = vunpack.c.0.s8 %v228
    %v230 = vlaneseq
    %v231 = vshrl.u32 %v230, 7
    %v232 = vsub.s32 %v229, %v231
    %v233 = vrot.slane %v219, %v232
    %v234 = vcombine.high %v226, %v226
    %v235 = vcombine.high %v233, %v233
    %v236 = vcombine.high %v214, %v214
    %v238 = vunpack.c.l.s4 1983009808
    %v239 = vunpack.c.0.s8 %v238
    %v240 = vlaneseq
    %v241 = vshrl.u32 %v240, 7
    %v242 = vsub.s32 %v239, %v241
    %v243 = vrot.slane %v214, %v242
    %v245 = vunpack.c.l.s4 1983009808
    %v246 = vunpack.c.0.s8 %v245
    %v247 = vlaneseq
    %v248 = vshrl.u32 %v247, 7
    %v249 = vsub.s32 %v246, %v248
    %v250 = vrot.slane %v236, %v249
    %v251 = vcombine.high %v243, %v243
    %v252 = vcombine.high %v250, %v250
    %261 = vst [vmem:[#allocation3] sm:$0x3] %v226
    %262 = vst [vmem:[#allocation3 + $0x2] sm:$0x3] %v234
    %263 = vst [vmem:[#allocation3 + $0x4] sm:$0x3] %v233
    %264 = vst [vmem:[#allocation3 + $0x6] sm:$0x3] %v235
    %265 = vst [vmem:[#allocation3 + $0x8] sm:$0x3] %v243
    %266 = vst [vmem:[#allocation3 + $0xa] sm:$0x3] %v251
    %267 = vst [vmem:[#allocation3 + $0xc] sm:$0x3] %v250
    %268 = vst [vmem:[#allocation3 + $0xe] sm:$0x3] %v252
    %v269 = vld [vmem:[#allocation3] sm:$0x3]
    %v270 = vld [vmem:[%s2] sm:$0xff]
    %v271 = vld [vmem:[%s2 + $0x8] sm:$0xff]
    %v272 = vld [vmem:[%s2 + $0x10] sm:$0xff]
    %v273 = vld [vmem:[%s2 + $0x18] sm:$0xff]
    %vm274 = vcmask 261120
    %v276 = vsel %vm274, 0.0, 0
    %278 = vmatprep.subr.mxu0 0.0
    %279 = vmatpush1.msra.mxu0 %v270
    %280 = vmatprep.subr.mxu0 0.0
    %281 = vmatpush1.msra.mxu0 %v271
    %282 = vmatprep.subr.mxu0 0.0
    %283 = vmatpush1.msra.mxu0 %v272
    %284 = vmatprep.subr.mxu0 0.0
    %285 = vmatpush1.msra.mxu0 %v273
    %286 = vmatprep.subr.mxu0 0.0
    %287 = vmatpush1.msra.mxu0 0.0
    %288 = vmatprep.subr.mxu0 0.0
    %289 = vmatpush1.msra.mxu0 0.0
    %290 = vmatprep.subr.mxu0 0.0
    %291 = vmatpush1.msra.mxu0 0.0
    %292 = vmatprep.subr.mxu0 0.0
    %293 = vmatpush1.msra.mxu0 0.0
    %294 = vmatprep.subr.mxu0 0.0
    %295 = vmatpush1.msra.mxu0 0.0
    %296 = vmatprep.subr.mxu0 0.0
    %297 = vmatpush1.msra.mxu0 0.0
    %298 = vmatprep.subr.mxu0 0.0
    %299 = vmatpush1.msra.mxu0 0.0
    %300 = vmatprep.subr.mxu0 0.0
    %301 = vmatpush1.msra.mxu0 0.0
    %302 = vmatprep.subr.mxu0 0.0
    %303 = vmatpush1.msra.mxu0 0.0
    %304 = vmatprep.subr.mxu0 0.0
    %305 = vmatpush1.msra.mxu0 0.0
    %306 = vmatprep.subr.mxu0 0.0
    %307 = vmatpush1.msra.mxu0 0.0
    %308 = vmatprep.subr.mxu0 0.0
    %309 = vmatpush1.msra.mxu0 0.0
    %310 = vmatprep.subr.mxu0 0.0
    %311 = vmatpush1.msra.mxu0 0.0
    %312 = vmatprep.subr.mxu0 0.0
    %313 = vmatpush1.msra.mxu0 0.0
    %314 = vmatprep.subr.mxu0 0.0
    %315 = vmatpush1.msra.mxu0 0.0
    %316 = vmatprep.subr.mxu0 0.0
    %317 = vmatpush1.msra.mxu0 0.0
    %318 = vmatprep.subr.mxu0 0.0
    %319 = vmatpush1.msra.mxu0 0.0
    %320 = vmatprep.subr.mxu0 0.0
    %321 = vmatpush1.msra.mxu0 0.0
    %322 = vmatprep.subr.mxu0 0.0
    %323 = vmatpush1.msra.mxu0 0.0
    %324 = vmatprep.subr.mxu0 0.0
    %325 = vmatpush1.msra.mxu0 0.0
    %326 = vmatprep.subr.mxu0 0.0
    %327 = vmatpush1.msra.mxu0 0.0
    %328 = vmatprep.subr.mxu0 0.0
    %329 = vmatpush1.msra.mxu0 0.0
    %330 = vmatprep.subr.mxu0 0.0
    %331 = vmatpush1.msra.mxu0 0.0
    %332 = vmatprep.subr.mxu0 0.0
    %333 = vmatpush1.msra.mxu0 0.0
    %334 = vmatprep.subr.mxu0 0.0
    %335 = vmatpush1.msra.mxu0 0.0
    %336 = vmatprep.subr.mxu0 0.0
    %337 = vmatpush1.msra.mxu0 0.0
    %338 = vmatprep.subr.mxu0 0.0
    %339 = vmatpush1.msra.mxu0 0.0
    %340 = vmatprep.subr.mxu0 0.0
    %341 = vmatpush1.msra.mxu0 0.0
    %342 = vmatprep.mubr.f32.mxu0 0.0
    %343 = vmatmul.mubr.f32.gmra.mrb[0].mxu0 %v276
    %v344 = vpop.f32.mrb[0].mxu0
    %v345 = vadd.f32 0.0, %v344
    %v346 = vpop.f32.mrb[0].mxu0
    %347 = vdwg.mxu0
    %v348 = vadd.f32 %v269, %v345
    %v349 = vxor.u32 %v348, 2147483648
    %v350 = vmul.f32 %v349, 1.442695
    %v351 = vpow.pop %v350
    %v352 = vadd.f32 %v351, 1.0
    %v353 = vrcp.pop %v352
    %v354 = vmul.f32 1.0, %v353
    %v355 = vtanh.pop %v348
    %v356 = vmul.f32 %v354, 0.0
    %358 = vrot.lane.b32.xlu0 %v355, 64
    %v359 = vpop.permute.xlu0 %358
    %v361 = vmul.f32 %v354, %v359
    %363 = vrot.lane.b32.xlu0 %v361, 32
    %v364 = vpop.permute.xlu0 %363
    %v366 = vadd.f32 %v356, %v364
    %v367 = vtanh.pop %v366
    %369 = vrot.lane.b32.xlu0 %v367, 64
    %v370 = vpop.permute.xlu0 %369
    %v372 = vmul.f32 %v354, %v370
    %374 = vrot.lane.b32.xlu0 %v372, 32
    %v375 = vpop.permute.xlu0 %374
    %vm377 = vcmask 254976
    %378 = vst.msk [vmem:[#allocation2] sm:$0x3] %vm377, %v375
    %s379 = scalar_lea.vmem [#allocation3], 2
    %v380 = vld [vmem:[%s379] sm:$0x3]
    %v381 = vld [vmem:[%s2] sm:$0xff]
    %v382 = vld [vmem:[%s2 + $0x8] sm:$0xff]
    %v383 = vld [vmem:[%s2 + $0x10] sm:$0xff]
    %v384 = vld [vmem:[%s2 + $0x18] sm:$0xff]
    %v385 = vsel %vm274, %v375, 0
    %387 = vmatprep.subr.mxu0 0.0
    %388 = vmatpush1.msra.mxu0 %v381
    %389 = vmatprep.subr.mxu0 0.0
    %390 = vmatpush1.msra.mxu0 %v382
    %391 = vmatprep.subr.mxu0 0.0
    %392 = vmatpush1.msra.mxu0 %v383
    %393 = vmatprep.subr.mxu0 0.0
    %394 = vmatpush1.msra.mxu0 %v384
    %395 = vmatprep.subr.mxu0 0.0
    %396 = vmatpush1.msra.mxu0 0.0
    %397 = vmatprep.subr.mxu0 0.0
    %398 = vmatpush1.msra.mxu0 0.0
    %399 = vmatprep.subr.mxu0 0.0
    %400 = vmatpush1.msra.mxu0 0.0
    %401 = vmatprep.subr.mxu0 0.0
    %402 = vmatpush1.msra.mxu0 0.0
    %403 = vmatprep.subr.mxu0 0.0
    %404 = vmatpush1.msra.mxu0 0.0
    %405 = vmatprep.subr.mxu0 0.0
    %406 = vmatpush1.msra.mxu0 0.0
    %407 = vmatprep.subr.mxu0 0.0
    %408 = vmatpush1.msra.mxu0 0.0
    %409 = vmatprep.subr.mxu0 0.0
    %410 = vmatpush1.msra.mxu0 0.0
    %411 = vmatprep.subr.mxu0 0.0
    %412 = vmatpush1.msra.mxu0 0.0
    %413 = vmatprep.subr.mxu0 0.0
    %414 = vmatpush1.msra.mxu0 0.0
    %415 = vmatprep.subr.mxu0 0.0
    %416 = vmatpush1.msra.mxu0 0.0
    %417 = vmatprep.subr.mxu0 0.0
    %418 = vmatpush1.msra.mxu0 0.0
    %419 = vmatprep.subr.mxu0 0.0
    %420 = vmatpush1.msra.mxu0 0.0
    %421 = vmatprep.subr.mxu0 0.0
    %422 = vmatpush1.msra.mxu0 0.0
    %423 = vmatprep.subr.mxu0 0.0
    %424 = vmatpush1.msra.mxu0 0.0
    %425 = vmatprep.subr.mxu0 0.0
    %426 = vmatpush1.msra.mxu0 0.0
    %427 = vmatprep.subr.mxu0 0.0
    %428 = vmatpush1.msra.mxu0 0.0
    %429 = vmatprep.subr.mxu0 0.0
    %430 = vmatpush1.msra.mxu0 0.0
    %431 = vmatprep.subr.mxu0 0.0
    %432 = vmatpush1.msra.mxu0 0.0
    %433 = vmatprep.subr.mxu0 0.0
    %434 = vmatpush1.msra.mxu0 0.0
    %435 = vmatprep.subr.mxu0 0.0
    %436 = vmatpush1.msra.mxu0 0.0
    %437 = vmatprep.subr.mxu0 0.0
    %438 = vmatpush1.msra.mxu0 0.0
    %439 = vmatprep.subr.mxu0 0.0
    %440 = vmatpush1.msra.mxu0 0.0
    %441 = vmatprep.subr.mxu0 0.0
    %442 = vmatpush1.msra.mxu0 0.0
    %443 = vmatprep.subr.mxu0 0.0
    %444 = vmatpush1.msra.mxu0 0.0
    %445 = vmatprep.subr.mxu0 0.0
    %446 = vmatpush1.msra.mxu0 0.0
    %447 = vmatprep.subr.mxu0 0.0
    %448 = vmatpush1.msra.mxu0 0.0
    %449 = vmatprep.subr.mxu0 0.0
    %450 = vmatpush1.msra.mxu0 0.0
    %451 = vmatprep.mubr.f32.mxu0 0.0
    %452 = vmatmul.mubr.f32.gmra.mrb[0].mxu0 %v385
    %v453 = vpop.f32.mrb[0].mxu0
    %v454 = vadd.f32 0.0, %v453
    %v455 = vpop.f32.mrb[0].mxu0
    %456 = vdwg.mxu0
    %v457 = vadd.f32 %v380, %v454
    %v458 = vxor.u32 %v457, 2147483648
    %v459 = vmul.f32 %v458, 1.442695
    %v460 = vpow.pop %v459
    %v461 = vadd.f32 %v460, 1.0
    %v462 = vrcp.pop %v461
    %v463 = vmul.f32 1.0, %v462
    %v464 = vtanh.pop %v457
    %v465 = vmul.f32 %v463, %v366
    %467 = vrot.lane.b32.xlu0 %v464, 64
    %v468 = vpop.permute.xlu0 %467
    %v470 = vmul.f32 %v463, %v468
    %472 = vrot.lane.b32.xlu0 %v470, 32
    %v473 = vpop.permute.xlu0 %472
    %v475 = vadd.f32 %v465, %v473
    %v476 = vtanh.pop %v475
    %478 = vrot.lane.b32.xlu0 %v476, 64
    %v479 = vpop.permute.xlu0 %478
    %v481 = vmul.f32 %v463, %v479
    %483 = vrot.lane.b32.xlu0 %v481, 32
    %v484 = vpop.permute.xlu0 %483
    %s486 = scalar_lea.vmem [#allocation2], 2
    %487 = vst.msk [vmem:[%s486] sm:$0x3] %vm377, %v484
    %s488 = scalar_lea.vmem [#allocation3], 4
    %v489 = vld [vmem:[%s488] sm:$0x3]
    %v490 = vld [vmem:[%s2] sm:$0xff]
    %v491 = vld [vmem:[%s2 + $0x8] sm:$0xff]
    %v492 = vld [vmem:[%s2 + $0x10] sm:$0xff]
    %v493 = vld [vmem:[%s2 + $0x18] sm:$0xff]
    %v494 = vsel %vm274, %v484, 0
    %496 = vmatprep.subr.mxu0 0.0
    %497 = vmatpush1.msra.mxu0 %v490
    %498 = vmatprep.subr.mxu0 0.0
    %499 = vmatpush1.msra.mxu0 %v491
    %500 = vmatprep.subr.mxu0 0.0
    %501 = vmatpush1.msra.mxu0 %v492
    %502 = vmatprep.subr.mxu0 0.0
    %503 = vmatpush1.msra.mxu0 %v493
    %504 = vmatprep.subr.mxu0 0.0
    %505 = vmatpush1.msra.mxu0 0.0
    %506 = vmatprep.subr.mxu0 0.0
    %507 = vmatpush1.msra.mxu0 0.0
    %508 = vmatprep.subr.mxu0 0.0
    %509 = vmatpush1.msra.mxu0 0.0
    %510 = vmatprep.subr.mxu0 0.0
    %511 = vmatpush1.msra.mxu0 0.0
    %512 = vmatprep.subr.mxu0 0.0
    %513 = vmatpush1.msra.mxu0 0.0
    %514 = vmatprep.subr.mxu0 0.0
    %515 = vmatpush1.msra.mxu0 0.0
    %516 = vmatprep.subr.mxu0 0.0
    %517 = vmatpush1.msra.mxu0 0.0
    %518 = vmatprep.subr.mxu0 0.0
    %519 = vmatpush1.msra.mxu0 0.0
    %520 = vmatprep.subr.mxu0 0.0
    %521 = vmatpush1.msra.mxu0 0.0
    %522 = vmatprep.subr.mxu0 0.0
    %523 = vmatpush1.msra.mxu0 0.0
    %524 = vmatprep.subr.mxu0 0.0
    %525 = vmatpush1.msra.mxu0 0.0
    %526 = vmatprep.subr.mxu0 0.0
    %527 = vmatpush1.msra.mxu0 0.0
    %528 = vmatprep.subr.mxu0 0.0
    %529 = vmatpush1.msra.mxu0 0.0
    %530 = vmatprep.subr.mxu0 0.0
    %531 = vmatpush1.msra.mxu0 0.0
    %532 = vmatprep.subr.mxu0 0.0
    %533 = vmatpush1.msra.mxu0 0.0
    %534 = vmatprep.subr.mxu0 0.0
    %535 = vmatpush1.msra.mxu0 0.0
    %536 = vmatprep.subr.mxu0 0.0
    %537 = vmatpush1.msra.mxu0 0.0
    %538 = vmatprep.subr.mxu0 0.0
    %539 = vmatpush1.msra.mxu0 0.0
    %540 = vmatprep.subr.mxu0 0.0
    %541 = vmatpush1.msra.mxu0 0.0
    %542 = vmatprep.subr.mxu0 0.0
    %543 = vmatpush1.msra.mxu0 0.0
    %544 = vmatprep.subr.mxu0 0.0
    %545 = vmatpush1.msra.mxu0 0.0
    %546 = vmatprep.subr.mxu0 0.0
    %547 = vmatpush1.msra.mxu0 0.0
    %548 = vmatprep.subr.mxu0 0.0
    %549 = vmatpush1.msra.mxu0 0.0
    %550 = vmatprep.subr.mxu0 0.0
    %551 = vmatpush1.msra.mxu0 0.0
    %552 = vmatprep.subr.mxu0 0.0
    %553 = vmatpush1.msra.mxu0 0.0
    %554 = vmatprep.subr.mxu0 0.0
    %555 = vmatpush1.msra.mxu0 0.0
    %556 = vmatprep.subr.mxu0 0.0
    %557 = vmatpush1.msra.mxu0 0.0
    %558 = vmatprep.subr.mxu0 0.0
    %559 = vmatpush1.msra.mxu0 0.0
    %560 = vmatprep.mubr.f32.mxu0 0.0
    %561 = vmatmul.mubr.f32.gmra.mrb[0].mxu0 %v494
    %v562 = vpop.f32.mrb[0].mxu0
    %v563 = vadd.f32 0.0, %v562
    %v564 = vpop.f32.mrb[0].mxu0
    %565 = vdwg.mxu0
    %v566 = vadd.f32 %v489, %v563
    %v567 = vxor.u32 %v566, 2147483648
    %v568 = vmul.f32 %v567, 1.442695
    %v569 = vpow.pop %v568
    %v570 = vadd.f32 %v569, 1.0
    %v571 = vrcp.pop %v570
    %v572 = vmul.f32 1.0, %v571
    %v573 = vtanh.pop %v566
    %v574 = vmul.f32 %v572, %v475
    %576 = vrot.lane.b32.xlu0 %v573, 64
    %v577 = vpop.permute.xlu0 %576
    %v579 = vmul.f32 %v572, %v577
    %581 = vrot.lane.b32.xlu0 %v579, 32
    %v582 = vpop.permute.xlu0 %581
    %v584 = vadd.f32 %v574, %v582
    %v585 = vtanh.pop %v584
    %587 = vrot.lane.b32.xlu0 %v585, 64
    %v588 = vpop.permute.xlu0 %587
    %v590 = vmul.f32 %v572, %v588
    %592 = vrot.lane.b32.xlu0 %v590, 32
    %v593 = vpop.permute.xlu0 %592
    %s595 = scalar_lea.vmem [#allocation2], 4
    %596 = vst.msk [vmem:[%s595] sm:$0x3] %vm377, %v593
    %s597 = scalar_lea.vmem [#allocation3], 6
    %v598 = vld [vmem:[%s597] sm:$0x3]
    %v599 = vld [vmem:[%s2] sm:$0xff]
    %v600 = vld [vmem:[%s2 + $0x8] sm:$0xff]
    %v601 = vld [vmem:[%s2 + $0x10] sm:$0xff]
    %v602 = vld [vmem:[%s2 + $0x18] sm:$0xff]
    %v603 = vsel %vm274, %v593, 0
    %605 = vmatprep.subr.mxu0 0.0
    %606 = vmatpush1.msra.mxu0 %v599
    %607 = vmatprep.subr.mxu0 0.0
    %608 = vmatpush1.msra.mxu0 %v600
    %609 = vmatprep.subr.mxu0 0.0
    %610 = vmatpush1.msra.mxu0 %v601
    %611 = vmatprep.subr.mxu0 0.0
    %612 = vmatpush1.msra.mxu0 %v602
    %613 = vmatprep.subr.mxu0 0.0
    %614 = vmatpush1.msra.mxu0 0.0
    %615 = vmatprep.subr.mxu0 0.0
    %616 = vmatpush1.msra.mxu0 0.0
    %617 = vmatprep.subr.mxu0 0.0
    %618 = vmatpush1.msra.mxu0 0.0
    %619 = vmatprep.subr.mxu0 0.0
    %620 = vmatpush1.msra.mxu0 0.0
    %621 = vmatprep.subr.mxu0 0.0
    %622 = vmatpush1.msra.mxu0 0.0
    %623 = vmatprep.subr.mxu0 0.0
    %624 = vmatpush1.msra.mxu0 0.0
    %625 = vmatprep.subr.mxu0 0.0
    %626 = vmatpush1.msra.mxu0 0.0
    %627 = vmatprep.subr.mxu0 0.0
    %628 = vmatpush1.msra.mxu0 0.0
    %629 = vmatprep.subr.mxu0 0.0
    %630 = vmatpush1.msra.mxu0 0.0
    %631 = vmatprep.subr.mxu0 0.0
    %632 = vmatpush1.msra.mxu0 0.0
    %633 = vmatprep.subr.mxu0 0.0
    %634 = vmatpush1.msra.mxu0 0.0
    %635 = vmatprep.subr.mxu0 0.0
    %636 = vmatpush1.msra.mxu0 0.0
    %637 = vmatprep.subr.mxu0 0.0
    %638 = vmatpush1.msra.mxu0 0.0
    %639 = vmatprep.subr.mxu0 0.0
    %640 = vmatpush1.msra.mxu0 0.0
    %641 = vmatprep.subr.mxu0 0.0
    %642 = vmatpush1.msra.mxu0 0.0
    %643 = vmatprep.subr.mxu0 0.0
    %644 = vmatpush1.msra.mxu0 0.0
    %645 = vmatprep.subr.mxu0 0.0
    %646 = vmatpush1.msra.mxu0 0.0
    %647 = vmatprep.subr.mxu0 0.0
    %648 = vmatpush1.msra.mxu0 0.0
    %649 = vmatprep.subr.mxu0 0.0
    %650 = vmatpush1.msra.mxu0 0.0
    %651 = vmatprep.subr.mxu0 0.0
    %652 = vmatpush1.msra.mxu0 0.0
    %653 = vmatprep.subr.mxu0 0.0
    %654 = vmatpush1.msra.mxu0 0.0
    %655 = vmatprep.subr.mxu0 0.0
    %656 = vmatpush1.msra.mxu0 0.0
    %657 = vmatprep.subr.mxu0 0.0
    %658 = vmatpush1.msra.mxu0 0.0
    %659 = vmatprep.subr.mxu0 0.0
    %660 = vmatpush1.msra.mxu0 0.0
    %661 = vmatprep.subr.mxu0 0.0
    %662 = vmatpush1.msra.mxu0 0.0
    %663 = vmatprep.subr.mxu0 0.0
    %664 = vmatpush1.msra.mxu0 0.0
    %665 = vmatprep.subr.mxu0 0.0
    %666 = vmatpush1.msra.mxu0 0.0
    %667 = vmatprep.subr.mxu0 0.0
    %668 = vmatpush1.msra.mxu0 0.0
    %669 = vmatprep.mubr.f32.mxu0 0.0
    %670 = vmatmul.mubr.f32.gmra.mrb[0].mxu0 %v603
    %v671 = vpop.f32.mrb[0].mxu0
    %v672 = vadd.f32 0.0, %v671
    %v673 = vpop.f32.mrb[0].mxu0
    %674 = vdwg.mxu0
    %v675 = vadd.f32 %v598, %v672
    %v676 = vxor.u32 %v675, 2147483648
    %v677 = vmul.f32 %v676, 1.442695
    %v678 = vpow.pop %v677
    %v679 = vadd.f32 %v678, 1.0
    %v680 = vrcp.pop %v679
    %v681 = vmul.f32 1.0, %v680
    %v682 = vtanh.pop %v675
    %v683 = vmul.f32 %v681, %v584
    %685 = vrot.lane.b32.xlu0 %v682, 64
    %v686 = vpop.permute.xlu0 %685
    %v688 = vmul.f32 %v681, %v686
    %690 = vrot.lane.b32.xlu0 %v688, 32
    %v691 = vpop.permute.xlu0 %690
    %v693 = vadd.f32 %v683, %v691
    %v694 = vtanh.pop %v693
    %696 = vrot.lane.b32.xlu0 %v694, 64
    %v697 = vpop.permute.xlu0 %696
    %v699 = vmul.f32 %v681, %v697
    %701 = vrot.lane.b32.xlu0 %v699, 32
    %v702 = vpop.permute.xlu0 %701
    %s704 = scalar_lea.vmem [#allocation2], 6
    %705 = vst.msk [vmem:[%s704] sm:$0x3] %vm377, %v702
    %s706 = scalar_lea.vmem [#allocation3], 8
    %v707 = vld [vmem:[%s706] sm:$0x3]
    %v708 = vld [vmem:[%s2] sm:$0xff]
    %v709 = vld [vmem:[%s2 + $0x8] sm:$0xff]
    %v710 = vld [vmem:[%s2 + $0x10] sm:$0xff]
    %v711 = vld [vmem:[%s2 + $0x18] sm:$0xff]
    %v712 = vsel %vm274, %v702, 0
    %714 = vmatprep.subr.mxu0 0.0
    %715 = vmatpush1.msra.mxu0 %v708
    %716 = vmatprep.subr.mxu0 0.0
    %717 = vmatpush1.msra.mxu0 %v709
    %718 = vmatprep.subr.mxu0 0.0
    %719 = vmatpush1.msra.mxu0 %v710
    %720 = vmatprep.subr.mxu0 0.0
    %721 = vmatpush1.msra.mxu0 %v711
    %722 = vmatprep.subr.mxu0 0.0
    %723 = vmatpush1.msra.mxu0 0.0
    %724 = vmatprep.subr.mxu0 0.0
    %725 = vmatpush1.msra.mxu0 0.0
    %726 = vmatprep.subr.mxu0 0.0
    %727 = vmatpush1.msra.mxu0 0.0
    %728 = vmatprep.subr.mxu0 0.0
    %729 = vmatpush1.msra.mxu0 0.0
    %730 = vmatprep.subr.mxu0 0.0
    %731 = vmatpush1.msra.mxu0 0.0
    %732 = vmatprep.subr.mxu0 0.0
    %733 = vmatpush1.msra.mxu0 0.0
    %734 = vmatprep.subr.mxu0 0.0
    %735 = vmatpush1.msra.mxu0 0.0
    %736 = vmatprep.subr.mxu0 0.0
    %737 = vmatpush1.msra.mxu0 0.0
    %738 = vmatprep.subr.mxu0 0.0
    %739 = vmatpush1.msra.mxu0 0.0
    %740 = vmatprep.subr.mxu0 0.0
    %741 = vmatpush1.msra.mxu0 0.0
    %742 = vmatprep.subr.mxu0 0.0
    %743 = vmatpush1.msra.mxu0 0.0
    %744 = vmatprep.subr.mxu0 0.0
    %745 = vmatpush1.msra.mxu0 0.0
    %746 = vmatprep.subr.mxu0 0.0
    %747 = vmatpush1.msra.mxu0 0.0
    %748 = vmatprep.subr.mxu0 0.0
    %749 = vmatpush1.msra.mxu0 0.0
    %750 = vmatprep.subr.mxu0 0.0
    %751 = vmatpush1.msra.mxu0 0.0
    %752 = vmatprep.subr.mxu0 0.0
    %753 = vmatpush1.msra.mxu0 0.0
    %754 = vmatprep.subr.mxu0 0.0
    %755 = vmatpush1.msra.mxu0 0.0
    %756 = vmatprep.subr.mxu0 0.0
    %757 = vmatpush1.msra.mxu0 0.0
    %758 = vmatprep.subr.mxu0 0.0
    %759 = vmatpush1.msra.mxu0 0.0
    %760 = vmatprep.subr.mxu0 0.0
    %761 = vmatpush1.msra.mxu0 0.0
    %762 = vmatprep.subr.mxu0 0.0
    %763 = vmatpush1.msra.mxu0 0.0
    %764 = vmatprep.subr.mxu0 0.0
    %765 = vmatpush1.msra.mxu0 0.0
    %766 = vmatprep.subr.mxu0 0.0
    %767 = vmatpush1.msra.mxu0 0.0
    %768 = vmatprep.subr.mxu0 0.0
    %769 = vmatpush1.msra.mxu0 0.0
    %770 = vmatprep.subr.mxu0 0.0
    %771 = vmatpush1.msra.mxu0 0.0
    %772 = vmatprep.subr.mxu0 0.0
    %773 = vmatpush1.msra.mxu0 0.0
    %774 = vmatprep.subr.mxu0 0.0
    %775 = vmatpush1.msra.mxu0 0.0
    %776 = vmatprep.subr.mxu0 0.0
    %777 = vmatpush1.msra.mxu0 0.0
    %778 = vmatprep.mubr.f32.mxu0 0.0
    %779 = vmatmul.mubr.f32.gmra.mrb[0].mxu0 %v712
    %v780 = vpop.f32.mrb[0].mxu0
    %v781 = vadd.f32 0.0, %v780
    %v782 = vpop.f32.mrb[0].mxu0
    %783 = vdwg.mxu0
    %v784 = vadd.f32 %v707, %v781
    %v785 = vxor.u32 %v784, 2147483648
    %v786 = vmul.f32 %v785, 1.442695
    %v787 = vpow.pop %v786
    %v788 = vadd.f32 %v787, 1.0
    %v789 = vrcp.pop %v788
    %v790 = vmul.f32 1.0, %v789
    %v791 = vtanh.pop %v784
    %v792 = vmul.f32 %v790, %v693
    %794 = vrot.lane.b32.xlu0 %v791, 64
    %v795 = vpop.permute.xlu0 %794
    %v797 = vmul.f32 %v790, %v795
    %799 = vrot.lane.b32.xlu0 %v797, 32
    %v800 = vpop.permute.xlu0 %799
    %v802 = vadd.f32 %v792, %v800
    %v803 = vtanh.pop %v802
    %805 = vrot.lane.b32.xlu0 %v803, 64
    %v806 = vpop.permute.xlu0 %805
    %v808 = vmul.f32 %v790, %v806
    %810 = vrot.lane.b32.xlu0 %v808, 32
    %v811 = vpop.permute.xlu0 %810
    %s813 = scalar_lea.vmem [#allocation2], 8
    %814 = vst.msk [vmem:[%s813] sm:$0x3] %vm377, %v811
    %s815 = scalar_lea.vmem [#allocation3], 10
    %v816 = vld [vmem:[%s815] sm:$0x3]
    %v817 = vld [vmem:[%s2] sm:$0xff]
    %v818 = vld [vmem:[%s2 + $0x8] sm:$0xff]
    %v819 = vld [vmem:[%s2 + $0x10] sm:$0xff]
    %v820 = vld [vmem:[%s2 + $0x18] sm:$0xff]
    %v821 = vsel %vm274, %v811, 0
    %823 = vmatprep.subr.mxu0 0.0
    %824 = vmatpush1.msra.mxu0 %v817
    %825 = vmatprep.subr.mxu0 0.0
    %826 = vmatpush1.msra.mxu0 %v818
    %827 = vmatprep.subr.mxu0 0.0
    %828 = vmatpush1.msra.mxu0 %v819
    %829 = vmatprep.subr.mxu0 0.0
    %830 = vmatpush1.msra.mxu0 %v820
    %831 = vmatprep.subr.mxu0 0.0
    %832 = vmatpush1.msra.mxu0 0.0
    %833 = vmatprep.subr.mxu0 0.0
    %834 = vmatpush1.msra.mxu0 0.0
    %835 = vmatprep.subr.mxu0 0.0
    %836 = vmatpush1.msra.mxu0 0.0
    %837 = vmatprep.subr.mxu0 0.0
    %838 = vmatpush1.msra.mxu0 0.0
    %839 = vmatprep.subr.mxu0 0.0
    %840 = vmatpush1.msra.mxu0 0.0
    %841 = vmatprep.subr.mxu0 0.0
    %842 = vmatpush1.msra.mxu0 0.0
    %843 = vmatprep.subr.mxu0 0.0
    %844 = vmatpush1.msra.mxu0 0.0
    %845 = vmatprep.subr.mxu0 0.0
    %846 = vmatpush1.msra.mxu0 0.0
    %847 = vmatprep.subr.mxu0 0.0
    %848 = vmatpush1.msra.mxu0 0.0
    %849 = vmatprep.subr.mxu0 0.0
    %850 = vmatpush1.msra.mxu0 0.0
    %851 = vmatprep.subr.mxu0 0.0
    %852 = vmatpush1.msra.mxu0 0.0
    %853 = vmatprep.subr.mxu0 0.0
    %854 = vmatpush1.msra.mxu0 0.0
    %855 = vmatprep.subr.mxu0 0.0
    %856 = vmatpush1.msra.mxu0 0.0
    %857 = vmatprep.subr.mxu0 0.0
    %858 = vmatpush1.msra.mxu0 0.0
    %859 = vmatprep.subr.mxu0 0.0
    %860 = vmatpush1.msra.mxu0 0.0
    %861 = vmatprep.subr.mxu0 0.0
    %862 = vmatpush1.msra.mxu0 0.0
    %863 = vmatprep.subr.mxu0 0.0
    %864 = vmatpush1.msra.mxu0 0.0
    %865 = vmatprep.subr.mxu0 0.0
    %866 = vmatpush1.msra.mxu0 0.0
    %867 = vmatprep.subr.mxu0 0.0
    %868 = vmatpush1.msra.mxu0 0.0
    %869 = vmatprep.subr.mxu0 0.0
    %870 = vmatpush1.msra.mxu0 0.0
    %871 = vmatprep.subr.mxu0 0.0
    %872 = vmatpush1.msra.mxu0 0.0
    %873 = vmatprep.subr.mxu0 0.0
    %874 = vmatpush1.msra.mxu0 0.0
    %875 = vmatprep.subr.mxu0 0.0
    %876 = vmatpush1.msra.mxu0 0.0
    %877 = vmatprep.subr.mxu0 0.0
    %878 = vmatpush1.msra.mxu0 0.0
    %879 = vmatprep.subr.mxu0 0.0
    %880 = vmatpush1.msra.mxu0 0.0
    %881 = vmatprep.subr.mxu0 0.0
    %882 = vmatpush1.msra.mxu0 0.0
    %883 = vmatprep.subr.mxu0 0.0
    %884 = vmatpush1.msra.mxu0 0.0
    %885 = vmatprep.subr.mxu0 0.0
    %886 = vmatpush1.msra.mxu0 0.0
    %887 = vmatprep.mubr.f32.mxu0 0.0
    %888 = vmatmul.mubr.f32.gmra.mrb[0].mxu0 %v821
    %v889 = vpop.f32.mrb[0].mxu0
    %v890 = vadd.f32 0.0, %v889
    %v891 = vpop.f32.mrb[0].mxu0
    %892 = vdwg.mxu0
    %v893 = vadd.f32 %v816, %v890
    %v894 = vxor.u32 %v893, 2147483648
    %v895 = vmul.f32 %v894, 1.442695
    %v896 = vpow.pop %v895
    %v897 = vadd.f32 %v896, 1.0
    %v898 = vrcp.pop %v897
    %v899 = vmul.f32 1.0, %v898
    %v900 = vtanh.pop %v893
    %v901 = vmul.f32 %v899, %v802
    %903 = vrot.lane.b32.xlu0 %v900, 64
    %v904 = vpop.permute.xlu0 %903
    %v906 = vmul.f32 %v899, %v904
    %908 = vrot.lane.b32.xlu0 %v906, 32
    %v909 = vpop.permute.xlu0 %908
    %v911 = vadd.f32 %v901, %v909
    %v912 = vtanh.pop %v911
    %914 = vrot.lane.b32.xlu0 %v912, 64
    %v915 = vpop.permute.xlu0 %914
    %v917 = vmul.f32 %v899, %v915
    %919 = vrot.lane.b32.xlu0 %v917, 32
    %v920 = vpop.permute.xlu0 %919
    %s922 = scalar_lea.vmem [#allocation2], 10
    %923 = vst.msk [vmem:[%s922] sm:$0x3] %vm377, %v920
    %s924 = scalar_lea.vmem [#allocation3], 12
    %v925 = vld [vmem:[%s924] sm:$0x3]
    %v926 = vld [vmem:[%s2] sm:$0xff]
    %v927 = vld [vmem:[%s2 + $0x8] sm:$0xff]
    %v928 = vld [vmem:[%s2 + $0x10] sm:$0xff]
    %v929 = vld [vmem:[%s2 + $0x18] sm:$0xff]
    %v930 = vsel %vm274, %v920, 0
    %932 = vmatprep.subr.mxu0 0.0
    %933 = vmatpush1.msra.mxu0 %v926
    %934 = vmatprep.subr.mxu0 0.0
    %935 = vmatpush1.msra.mxu0 %v927
    %936 = vmatprep.subr.mxu0 0.0
    %937 = vmatpush1.msra.mxu0 %v928
    %938 = vmatprep.subr.mxu0 0.0
    %939 = vmatpush1.msra.mxu0 %v929
    %940 = vmatprep.subr.mxu0 0.0
    %941 = vmatpush1.msra.mxu0 0.0
    %942 = vmatprep.subr.mxu0 0.0
    %943 = vmatpush1.msra.mxu0 0.0
    %944 = vmatprep.subr.mxu0 0.0
    %945 = vmatpush1.msra.mxu0 0.0
    %946 = vmatprep.subr.mxu0 0.0
    %947 = vmatpush1.msra.mxu0 0.0
    %948 = vmatprep.subr.mxu0 0.0
    %949 = vmatpush1.msra.mxu0 0.0
    %950 = vmatprep.subr.mxu0 0.0
    %951 = vmatpush1.msra.mxu0 0.0
    %952 = vmatprep.subr.mxu0 0.0
    %953 = vmatpush1.msra.mxu0 0.0
    %954 = vmatprep.subr.mxu0 0.0
    %955 = vmatpush1.msra.mxu0 0.0
    %956 = vmatprep.subr.mxu0 0.0
    %957 = vmatpush1.msra.mxu0 0.0
    %958 = vmatprep.subr.mxu0 0.0
    %959 = vmatpush1.msra.mxu0 0.0
    %960 = vmatprep.subr.mxu0 0.0
    %961 = vmatpush1.msra.mxu0 0.0
    %962 = vmatprep.subr.mxu0 0.0
    %963 = vmatpush1.msra.mxu0 0.0
    %964 = vmatprep.subr.mxu0 0.0
    %965 = vmatpush1.msra.mxu0 0.0
    %966 = vmatprep.subr.mxu0 0.0
    %967 = vmatpush1.msra.mxu0 0.0
    %968 = vmatprep.subr.mxu0 0.0
    %969 = vmatpush1.msra.mxu0 0.0
    %970 = vmatprep.subr.mxu0 0.0
    %971 = vmatpush1.msra.mxu0 0.0
    %972 = vmatprep.subr.mxu0 0.0
    %973 = vmatpush1.msra.mxu0 0.0
    %974 = vmatprep.subr.mxu0 0.0
    %975 = vmatpush1.msra.mxu0 0.0
    %976 = vmatprep.subr.mxu0 0.0
    %977 = vmatpush1.msra.mxu0 0.0
    %978 = vmatprep.subr.mxu0 0.0
    %979 = vmatpush1.msra.mxu0 0.0
    %980 = vmatprep.subr.mxu0 0.0
    %981 = vmatpush1.msra.mxu0 0.0
    %982 = vmatprep.subr.mxu0 0.0
    %983 = vmatpush1.msra.mxu0 0.0
    %984 = vmatprep.subr.mxu0 0.0
    %985 = vmatpush1.msra.mxu0 0.0
    %986 = vmatprep.subr.mxu0 0.0
    %987 = vmatpush1.msra.mxu0 0.0
    %988 = vmatprep.subr.mxu0 0.0
    %989 = vmatpush1.msra.mxu0 0.0
    %990 = vmatprep.subr.mxu0 0.0
    %991 = vmatpush1.msra.mxu0 0.0
    %992 = vmatprep.subr.mxu0 0.0
    %993 = vmatpush1.msra.mxu0 0.0
    %994 = vmatprep.subr.mxu0 0.0
    %995 = vmatpush1.msra.mxu0 0.0
    %996 = vmatprep.mubr.f32.mxu0 0.0
    %997 = vmatmul.mubr.f32.gmra.mrb[0].mxu0 %v930
    %v998 = vpop.f32.mrb[0].mxu0
    %v999 = vadd.f32 0.0, %v998
    %v1000 = vpop.f32.mrb[0].mxu0
    %1001 = vdwg.mxu0
    %v1002 = vadd.f32 %v925, %v999
    %v1003 = vxor.u32 %v1002, 2147483648
    %v1004 = vmul.f32 %v1003, 1.442695
    %v1005 = vpow.pop %v1004
    %v1006 = vadd.f32 %v1005, 1.0
    %v1007 = vrcp.pop %v1006
    %v1008 = vmul.f32 1.0, %v1007
    %v1009 = vtanh.pop %v1002
    %v1010 = vmul.f32 %v1008, %v911
    %1012 = vrot.lane.b32.xlu0 %v1009, 64
    %v1013 = vpop.permute.xlu0 %1012
    %v1015 = vmul.f32 %v1008, %v1013
    %1017 = vrot.lane.b32.xlu0 %v1015, 32
    %v1018 = vpop.permute.xlu0 %1017
    %v1020 = vadd.f32 %v1010, %v1018
    %v1021 = vtanh.pop %v1020
    %1023 = vrot.lane.b32.xlu0 %v1021, 64
    %v1024 = vpop.permute.xlu0 %1023
    %v1026 = vmul.f32 %v1008, %v1024
    %1028 = vrot.lane.b32.xlu0 %v1026, 32
    %v1029 = vpop.permute.xlu0 %1028
    %s1031 = scalar_lea.vmem [#allocation2], 12
    %1032 = vst.msk [vmem:[%s1031] sm:$0x3] %vm377, %v1029
    %s1033 = scalar_lea.vmem [#allocation3], 14
    %v1034 = vld [vmem:[%s1033] sm:$0x3]
    %v1035 = vld [vmem:[%s2] sm:$0xff]
    %v1036 = vld [vmem:[%s2 + $0x8] sm:$0xff]
    %v1037 = vld [vmem:[%s2 + $0x10] sm:$0xff]
    %v1038 = vld [vmem:[%s2 + $0x18] sm:$0xff]
    %v1039 = vsel %vm274, %v1029, 0
    %1041 = vmatprep.subr.mxu0 0.0
    %1042 = vmatpush1.msra.mxu0 %v1035
    %1043 = vmatprep.subr.mxu0 0.0
    %1044 = vmatpush1.msra.mxu0 %v1036
    %1045 = vmatprep.subr.mxu0 0.0
    %1046 = vmatpush1.msra.mxu0 %v1037
    %1047 = vmatprep.subr.mxu0 0.0
    %1048 = vmatpush1.msra.mxu0 %v1038
    %1049 = vmatprep.subr.mxu0 0.0
    %1050 = vmatpush1.msra.mxu0 0.0
    %1051 = vmatprep.subr.mxu0 0.0
    %1052 = vmatpush1.msra.mxu0 0.0
    %1053 = vmatprep.subr.mxu0 0.0
    %1054 = vmatpush1.msra.mxu0 0.0
    %1055 = vmatprep.subr.mxu0 0.0
    %1056 = vmatpush1.msra.mxu0 0.0
    %1057 = vmatprep.subr.mxu0 0.0
    %1058 = vmatpush1.msra.mxu0 0.0
    %1059 = vmatprep.subr.mxu0 0.0
    %1060 = vmatpush1.msra.mxu0 0.0
    %1061 = vmatprep.subr.mxu0 0.0
    %1062 = vmatpush1.msra.mxu0 0.0
    %1063 = vmatprep.subr.mxu0 0.0
    %1064 = vmatpush1.msra.mxu0 0.0
    %1065 = vmatprep.subr.mxu0 0.0
    %1066 = vmatpush1.msra.mxu0 0.0
    %1067 = vmatprep.subr.mxu0 0.0
    %1068 = vmatpush1.msra.mxu0 0.0
    %1069 = vmatprep.subr.mxu0 0.0
    %1070 = vmatpush1.msra.mxu0 0.0
    %1071 = vmatprep.subr.mxu0 0.0
    %1072 = vmatpush1.msra.mxu0 0.0
    %1073 = vmatprep.subr.mxu0 0.0
    %1074 = vmatpush1.msra.mxu0 0.0
    %1075 = vmatprep.subr.mxu0 0.0
    %1076 = vmatpush1.msra.mxu0 0.0
    %1077 = vmatprep.subr.mxu0 0.0
    %1078 = vmatpush1.msra.mxu0 0.0
    %1079 = vmatprep.subr.mxu0 0.0
    %1080 = vmatpush1.msra.mxu0 0.0
    %1081 = vmatprep.subr.mxu0 0.0
    %1082 = vmatpush1.msra.mxu0 0.0
    %1083 = vmatprep.subr.mxu0 0.0
    %1084 = vmatpush1.msra.mxu0 0.0
    %1085 = vmatprep.subr.mxu0 0.0
    %1086 = vmatpush1.msra.mxu0 0.0
    %1087 = vmatprep.subr.mxu0 0.0
    %1088 = vmatpush1.msra.mxu0 0.0
    %1089 = vmatprep.subr.mxu0 0.0
    %1090 = vmatpush1.msra.mxu0 0.0
    %1091 = vmatprep.subr.mxu0 0.0
    %1092 = vmatpush1.msra.mxu0 0.0
    %1093 = vmatprep.subr.mxu0 0.0
    %1094 = vmatpush1.msra.mxu0 0.0
    %1095 = vmatprep.subr.mxu0 0.0
    %1096 = vmatpush1.msra.mxu0 0.0
    %1097 = vmatprep.subr.mxu0 0.0
    %1098 = vmatpush1.msra.mxu0 0.0
    %1099 = vmatprep.subr.mxu0 0.0
    %1100 = vmatpush1.msra.mxu0 0.0
    %1101 = vmatprep.subr.mxu0 0.0
    %1102 = vmatpush1.msra.mxu0 0.0
    %1103 = vmatprep.subr.mxu0 0.0
    %1104 = vmatpush1.msra.mxu0 0.0
    %1105 = vmatprep.mubr.f32.mxu0 0.0
    %1106 = vmatmul.mubr.f32.gmra.mrb[0].mxu0 %v1039
    %v1107 = vpop.f32.mrb[0].mxu0
    %v1108 = vadd.f32 0.0, %v1107
    %v1109 = vpop.f32.mrb[0].mxu0
    %1110 = vdwg.mxu0
    %v1111 = vadd.f32 %v1034, %v1108
    %v1112 = vxor.u32 %v1111, 2147483648
    %v1113 = vmul.f32 %v1112, 1.442695
    %v1114 = vpow.pop %v1113
    %v1115 = vadd.f32 %v1114, 1.0
    %v1116 = vrcp.pop %v1115
    %v1117 = vmul.f32 1.0, %v1116
    %v1118 = vtanh.pop %v1111
    %v1119 = vmul.f32 %v1117, %v1020
    %1121 = vrot.lane.b32.xlu0 %v1118, 64
    %v1122 = vpop.permute.xlu0 %1121
    %v1124 = vmul.f32 %v1117, %v1122
    %1126 = vrot.lane.b32.xlu0 %v1124, 32
    %v1127 = vpop.permute.xlu0 %1126
    %v1129 = vadd.f32 %v1119, %v1127
    %v1130 = vtanh.pop %v1129
    %1132 = vrot.lane.b32.xlu0 %v1130, 64
    %v1133 = vpop.permute.xlu0 %1132
    %v1135 = vmul.f32 %v1117, %v1133
    %1137 = vrot.lane.b32.xlu0 %v1135, 32
    %v1138 = vpop.permute.xlu0 %1137
    %s1140 = scalar_lea.vmem [#allocation2], 14
    %1141 = vst.msk [vmem:[%s1140] sm:$0x3] %vm377, %v1138
    %1142 = vst.msk [vmem:[#allocation11] sm:$0x3] %vm377, %v1138
    %1144 = vrot.lane.b32.xlu0 %v1129, 96
    %v1145 = vpop.permute.xlu0 %1144
    %1147 = vst.msk [vmem:[#allocation13] sm:$0x3] %vm377, %v1145
    %v1148 = vld [vmem:[#allocation2] sm:$0x3]
    %v1149 = vld [vmem:[#allocation2 + $0x2] sm:$0x3]
    %v1150 = vld [vmem:[#allocation2 + $0x4] sm:$0x3]
    %v1151 = vld [vmem:[#allocation2 + $0x6] sm:$0x3]
    %v1152 = vld [vmem:[#allocation2 + $0x8] sm:$0x3]
    %v1153 = vld [vmem:[#allocation2 + $0xa] sm:$0x3]
    %v1154 = vld [vmem:[#allocation2 + $0xc] sm:$0x3]
    %v1155 = vld [vmem:[#allocation2 + $0xe] sm:$0x3]
    %v1156 = vld [vmem:[#allocation4] sm:$0xff]
    %v1157 = vld [vmem:[#allocation4 + $0x8] sm:$0xff]
    %v1158 = vld [vmem:[#allocation4 + $0x10] sm:$0xff]
    %v1159 = vld [vmem:[#allocation4 + $0x18] sm:$0xff]
    %v1160 = vld [vmem:[%s6] sm:$0x1]
    %v1162 = vlaneseq
    %v1163 = vshrl.u32 %v1162, 7
    %v1164 = vsub.s32 0, %v1163
    %v1165 = vrot.slane %v1160, %v1164
    %v1175 = vcombine.low %v1148, %v1149
    %v1176 = vcombine.low %v1150, %v1151
    %v1178 = vunpack.c.l.s4 1983009808
    %v1179 = vunpack.c.0.s8 %v1178
    %v1180 = vlaneseq
    %v1181 = vshrl.u32 %v1180, 7
    %v1182 = vsub.s32 %v1179, %v1181
    %v1183 = vrot.slane %v1175, %v1182
    %v1185 = vunpack.c.l.s4 1983009808
    %v1186 = vunpack.c.0.s8 %v1185
    %v1187 = vlaneseq
    %v1188 = vshrl.u32 %v1187, 7
    %v1189 = vsub.s32 %v1186, %v1188
    %v1190 = vrot.slane %v1176, %v1189
    %v1191 = vcombine.low %v1183, %v1190
    %v1192 = vcombine.low %v1152, %v1153
    %v1193 = vcombine.low %v1154, %v1155
    %v1195 = vunpack.c.l.s4 1983009808
    %v1196 = vunpack.c.0.s8 %v1195
    %v1197 = vlaneseq
    %v1198 = vshrl.u32 %v1197, 7
    %v1199 = vsub.s32 %v1196, %v1198
    %v1200 = vrot.slane %v1192, %v1199
    %v1202 = vunpack.c.l.s4 1983009808
    %v1203 = vunpack.c.0.s8 %v1202
    %v1204 = vlaneseq
    %v1205 = vshrl.u32 %v1204, 7
    %v1206 = vsub.s32 %v1203, %v1205
    %v1207 = vrot.slane %v1193, %v1206
    %v1208 = vcombine.low %v1200, %v1207
    %v1209 = vsel %vm274, %v1191, 0
    %v1211 = vsel %vm274, %v1208, 0
    %1213 = vmatprep.subr.mxu0 0.0
    %1214 = vmatpush1.msra.mxu0 %v1156
    %1215 = vmatprep.subr.mxu0 0.0
    %1216 = vmatpush1.msra.mxu0 %v1157
    %1217 = vmatprep.subr.mxu0 0.0
    %1218 = vmatpush1.msra.mxu0 %v1158
    %1219 = vmatprep.subr.mxu0 0.0
    %1220 = vmatpush1.msra.mxu0 %v1159
    %1221 = vmatprep.subr.mxu0 0.0
    %1222 = vmatpush1.msra.mxu0 0.0
    %1223 = vmatprep.subr.mxu0 0.0
    %1224 = vmatpush1.msra.mxu0 0.0
    %1225 = vmatprep.subr.mxu0 0.0
    %1226 = vmatpush1.msra.mxu0 0.0
    %1227 = vmatprep.subr.mxu0 0.0
    %1228 = vmatpush1.msra.mxu0 0.0
    %1229 = vmatprep.subr.mxu0 0.0
    %1230 = vmatpush1.msra.mxu0 0.0
    %1231 = vmatprep.subr.mxu0 0.0
    %1232 = vmatpush1.msra.mxu0 0.0
    %1233 = vmatprep.subr.mxu0 0.0
    %1234 = vmatpush1.msra.mxu0 0.0
    %1235 = vmatprep.subr.mxu0 0.0
    %1236 = vmatpush1.msra.mxu0 0.0
    %1237 = vmatprep.subr.mxu0 0.0
    %1238 = vmatpush1.msra.mxu0 0.0
    %1239 = vmatprep.subr.mxu0 0.0
    %1240 = vmatpush1.msra.mxu0 0.0
    %1241 = vmatprep.subr.mxu0 0.0
    %1242 = vmatpush1.msra.mxu0 0.0
    %1243 = vmatprep.subr.mxu0 0.0
    %1244 = vmatpush1.msra.mxu0 0.0
    %1245 = vmatprep.subr.mxu0 0.0
    %1246 = vmatpush1.msra.mxu0 0.0
    %1247 = vmatprep.subr.mxu0 0.0
    %1248 = vmatpush1.msra.mxu0 0.0
    %1249 = vmatprep.subr.mxu0 0.0
    %1250 = vmatpush1.msra.mxu0 0.0
    %1251 = vmatprep.subr.mxu0 0.0
    %1252 = vmatpush1.msra.mxu0 0.0
    %1253 = vmatprep.subr.mxu0 0.0
    %1254 = vmatpush1.msra.mxu0 0.0
    %1255 = vmatprep.subr.mxu0 0.0
    %1256 = vmatpush1.msra.mxu0 0.0
    %1257 = vmatprep.subr.mxu0 0.0
    %1258 = vmatpush1.msra.mxu0 0.0
    %1259 = vmatprep.subr.mxu0 0.0
    %1260 = vmatpush1.msra.mxu0 0.0
    %1261 = vmatprep.subr.mxu0 0.0
    %1262 = vmatpush1.msra.mxu0 0.0
    %1263 = vmatprep.subr.mxu0 0.0
    %1264 = vmatpush1.msra.mxu0 0.0
    %1265 = vmatprep.subr.mxu0 0.0
    %1266 = vmatpush1.msra.mxu0 0.0
    %1267 = vmatprep.subr.mxu0 0.0
    %1268 = vmatpush1.msra.mxu0 0.0
    %1269 = vmatprep.subr.mxu0 0.0
    %1270 = vmatpush1.msra.mxu0 0.0
    %1271 = vmatprep.subr.mxu0 0.0
    %1272 = vmatpush1.msra.mxu0 0.0
    %1273 = vmatprep.subr.mxu0 0.0
    %1274 = vmatpush1.msra.mxu0 0.0
    %1275 = vmatprep.subr.mxu0 0.0
    %1276 = vmatpush1.msra.mxu0 0.0
    %1277 = vmatprep.mubr.f32.mxu0 0.0
    %1278 = vmatmul.mubr.f32.gmra.mrb[0].mxu0 %v1209
    %v1279 = vpop.f32.mrb[0].mxu0
    %v1280 = vadd.f32 %v1165, %v1279
    %v1281 = vpop.f32.mrb[0].mxu0
    %1282 = vmatprep.mubr.f32.mxu0 0.0
    %1283 = vmatmul.mubr.f32.gmra.mrb[0].mxu0 %v1211
    %v1284 = vpop.f32.mrb[0].mxu0
    %v1285 = vadd.f32 %v1165, %v1284
    %v1286 = vpop.f32.mrb[0].mxu0
    %1287 = vdwg.mxu0
    %v1290 = vcombine.high %v1280, %v1280
    %v1292 = vunpack.c.l.s4 1983009808
    %v1293 = vunpack.c.0.s8 %v1292
    %v1294 = vlaneseq
    %v1295 = vshrl.u32 %v1294, 7
    %v1296 = vsub.s32 %v1293, %v1295
    %v1297 = vrot.slane %v1280, %v1296
    %v1299 = vunpack.c.l.s4 1983009808
    %v1300 = vunpack.c.0.s8 %v1299
    %v1301 = vlaneseq
    %v1302 = vshrl.u32 %v1301, 7
    %v1303 = vsub.s32 %v1300, %v1302
    %v1304 = vrot.slane %v1290, %v1303
    %v1305 = vcombine.high %v1297, %v1297
    %v1306 = vcombine.high %v1304, %v1304
    %v1307 = vcombine.high %v1285, %v1285
    %v1309 = vunpack.c.l.s4 1983009808
    %v1310 = vunpack.c.0.s8 %v1309
    %v1311 = vlaneseq
    %v1312 = vshrl.u32 %v1311, 7
    %v1313 = vsub.s32 %v1310, %v1312
    %v1314 = vrot.slane %v1285, %v1313
    %v1316 = vunpack.c.l.s4 1983009808
    %v1317 = vunpack.c.0.s8 %v1316
    %v1318 = vlaneseq
    %v1319 = vshrl.u32 %v1318, 7
    %v1320 = vsub.s32 %v1317, %v1319
    %v1321 = vrot.slane %v1307, %v1320
    %v1322 = vcombine.high %v1314, %v1314
    %v1323 = vcombine.high %v1321, %v1321
    %1332 = vst [vmem:[#allocation3] sm:$0x3] %v1297
    %1333 = vst [vmem:[#allocation3 + $0x2] sm:$0x3] %v1305
    %1334 = vst [vmem:[#allocation3 + $0x4] sm:$0x3] %v1304
    %1335 = vst [vmem:[#allocation3 + $0x6] sm:$0x3] %v1306
    %1336 = vst [vmem:[#allocation3 + $0x8] sm:$0x3] %v1314
    %1337 = vst [vmem:[#allocation3 + $0xa] sm:$0x3] %v1322
    %1338 = vst [vmem:[#allocation3 + $0xc] sm:$0x3] %v1321
    %1339 = vst [vmem:[#allocation3 + $0xe] sm:$0x3] %v1323
    %v1340 = vld [vmem:[#allocation3] sm:$0x3]
    %v1341 = vld [vmem:[#allocation7] sm:$0xff]
    %v1342 = vld [vmem:[#allocation7 + $0x8] sm:$0xff]
    %v1343 = vld [vmem:[#allocation7 + $0x10] sm:$0xff]
    %v1344 = vld [vmem:[#allocation7 + $0x18] sm:$0xff]
    %1345 = vmatprep.subr.mxu0 0.0
    %1346 = vmatpush1.msra.mxu0 %v1341
    %1347 = vmatprep.subr.mxu0 0.0
    %1348 = vmatpush1.msra.mxu0 %v1342
    %1349 = vmatprep.subr.mxu0 0.0
    %1350 = vmatpush1.msra.mxu0 %v1343
    %1351 = vmatprep.subr.mxu0 0.0
    %1352 = vmatpush1.msra.mxu0 %v1344
    %1353 = vmatprep.subr.mxu0 0.0
    %1354 = vmatpush1.msra.mxu0 0.0
    %1355 = vmatprep.subr.mxu0 0.0
    %1356 = vmatpush1.msra.mxu0 0.0
    %1357 = vmatprep.subr.mxu0 0.0
    %1358 = vmatpush1.msra.mxu0 0.0
    %1359 = vmatprep.subr.mxu0 0.0
    %1360 = vmatpush1.msra.mxu0 0.0
    %1361 = vmatprep.subr.mxu0 0.0
    %1362 = vmatpush1.msra.mxu0 0.0
    %1363 = vmatprep.subr.mxu0 0.0
    %1364 = vmatpush1.msra.mxu0 0.0
    %1365 = vmatprep.subr.mxu0 0.0
    %1366 = vmatpush1.msra.mxu0 0.0
    %1367 = vmatprep.subr.mxu0 0.0
    %1368 = vmatpush1.msra.mxu0 0.0
    %1369 = vmatprep.subr.mxu0 0.0
    %1370 = vmatpush1.msra.mxu0 0.0
    %1371 = vmatprep.subr.mxu0 0.0
    %1372 = vmatpush1.msra.mxu0 0.0
    %1373 = vmatprep.subr.mxu0 0.0
    %1374 = vmatpush1.msra.mxu0 0.0
    %1375 = vmatprep.subr.mxu0 0.0
    %1376 = vmatpush1.msra.mxu0 0.0
    %1377 = vmatprep.subr.mxu0 0.0
    %1378 = vmatpush1.msra.mxu0 0.0
    %1379 = vmatprep.subr.mxu0 0.0
    %1380 = vmatpush1.msra.mxu0 0.0
    %1381 = vmatprep.subr.mxu0 0.0
    %1382 = vmatpush1.msra.mxu0 0.0
    %1383 = vmatprep.subr.mxu0 0.0
    %1384 = vmatpush1.msra.mxu0 0.0
    %1385 = vmatprep.subr.mxu0 0.0
    %1386 = vmatpush1.msra.mxu0 0.0
    %1387 = vmatprep.subr.mxu0 0.0
    %1388 = vmatpush1.msra.mxu0 0.0
    %1389 = vmatprep.subr.mxu0 0.0
    %1390 = vmatpush1.msra.mxu0 0.0
    %1391 = vmatprep.subr.mxu0 0.0
    %1392 = vmatpush1.msra.mxu0 0.0
    %1393 = vmatprep.subr.mxu0 0.0
    %1394 = vmatpush1.msra.mxu0 0.0
    %1395 = vmatprep.subr.mxu0 0.0
    %1396 = vmatpush1.msra.mxu0 0.0
    %1397 = vmatprep.subr.mxu0 0.0
    %1398 = vmatpush1.msra.mxu0 0.0
    %1399 = vmatprep.subr.mxu0 0.0
    %1400 = vmatpush1.msra.mxu0 0.0
    %1401 = vmatprep.subr.mxu0 0.0
    %1402 = vmatpush1.msra.mxu0 0.0
    %1403 = vmatprep.subr.mxu0 0.0
    %1404 = vmatpush1.msra.mxu0 0.0
    %1405 = vmatprep.subr.mxu0 0.0
    %1406 = vmatpush1.msra.mxu0 0.0
    %1407 = vmatprep.subr.mxu0 0.0
    %1408 = vmatpush1.msra.mxu0 0.0
    %1409 = vmatprep.mubr.f32.mxu0 0.0
    %1410 = vmatmul.mubr.f32.gmra.mrb[0].mxu0 %v276
    %v1411 = vpop.f32.mrb[0].mxu0
    %v1412 = vadd.f32 0.0, %v1411
    %v1413 = vpop.f32.mrb[0].mxu0
    %1414 = vdwg.mxu0
    %v1415 = vadd.f32 %v1340, %v1412
    %v1416 = vxor.u32 %v1415, 2147483648
    %v1417 = vmul.f32 %v1416, 1.442695
    %v1418 = vpow.pop %v1417
    %v1419 = vadd.f32 %v1418, 1.0
    %v1420 = vrcp.pop %v1419
    %v1421 = vmul.f32 1.0, %v1420
    %v1422 = vtanh.pop %v1415
    %v1423 = vmul.f32 %v1421, 0.0
    %1425 = vrot.lane.b32.xlu0 %v1422, 64
    %v1426 = vpop.permute.xlu0 %1425
    %v1428 = vmul.f32 %v1421, %v1426
    %1430 = vrot.lane.b32.xlu0 %v1428, 32
    %v1431 = vpop.permute.xlu0 %1430
    %v1433 = vadd.f32 %v1423, %v1431
    %v1434 = vtanh.pop %v1433
    %1436 = vrot.lane.b32.xlu0 %v1434, 64
    %v1437 = vpop.permute.xlu0 %1436
    %v1439 = vmul.f32 %v1421, %v1437
    %1441 = vrot.lane.b32.xlu0 %v1439, 32
    %v1442 = vpop.permute.xlu0 %1441
    %1444 = vst.msk [vmem:[#allocation2] sm:$0x3] %vm377, %v1442
    %v1445 = vld [vmem:[%s379] sm:$0x3]
    %v1446 = vld [vmem:[#allocation7] sm:$0xff]
    %v1447 = vld [vmem:[#allocation7 + $0x8] sm:$0xff]
    %v1448 = vld [vmem:[#allocation7 + $0x10] sm:$0xff]
    %v1449 = vld [vmem:[#allocation7 + $0x18] sm:$0xff]
    %v1450 = vsel %vm274, %v1442, 0
    %1452 = vmatprep.subr.mxu0 0.0
    %1453 = vmatpush1.msra.mxu0 %v1446
    %1454 = vmatprep.subr.mxu0 0.0
    %1455 = vmatpush1.msra.mxu0 %v1447
    %1456 = vmatprep.subr.mxu0 0.0
    %1457 = vmatpush1.msra.mxu0 %v1448
    %1458 = vmatprep.subr.mxu0 0.0
    %1459 = vmatpush1.msra.mxu0 %v1449
    %1460 = vmatprep.subr.mxu0 0.0
    %1461 = vmatpush1.msra.mxu0 0.0
    %1462 = vmatprep.subr.mxu0 0.0
    %1463 = vmatpush1.msra.mxu0 0.0
    %1464 = vmatprep.subr.mxu0 0.0
    %1465 = vmatpush1.msra.mxu0 0.0
    %1466 = vmatprep.subr.mxu0 0.0
    %1467 = vmatpush1.msra.mxu0 0.0
    %1468 = vmatprep.subr.mxu0 0.0
    %1469 = vmatpush1.msra.mxu0 0.0
    %1470 = vmatprep.subr.mxu0 0.0
    %1471 = vmatpush1.msra.mxu0 0.0
    %1472 = vmatprep.subr.mxu0 0.0
    %1473 = vmatpush1.msra.mxu0 0.0
    %1474 = vmatprep.subr.mxu0 0.0
    %1475 = vmatpush1.msra.mxu0 0.0
    %1476 = vmatprep.subr.mxu0 0.0
    %1477 = vmatpush1.msra.mxu0 0.0
    %1478 = vmatprep.subr.mxu0 0.0
    %1479 = vmatpush1.msra.mxu0 0.0
    %1480 = vmatprep.subr.mxu0 0.0
    %1481 = vmatpush1.msra.mxu0 0.0
    %1482 = vmatprep.subr.mxu0 0.0
    %1483 = vmatpush1.msra.mxu0 0.0
    %1484 = vmatprep.subr.mxu0 0.0
    %1485 = vmatpush1.msra.mxu0 0.0
    %1486 = vmatprep.subr.mxu0 0.0
    %1487 = vmatpush1.msra.mxu0 0.0
    %1488 = vmatprep.subr.mxu0 0.0
    %1489 = vmatpush1.msra.mxu0 0.0
    %1490 = vmatprep.subr.mxu0 0.0
    %1491 = vmatpush1.msra.mxu0 0.0
    %1492 = vmatprep.subr.mxu0 0.0
    %1493 = vmatpush1.msra.mxu0 0.0
    %1494 = vmatprep.subr.mxu0 0.0
    %1495 = vmatpush1.msra.mxu0 0.0
    %1496 = vmatprep.subr.mxu0 0.0
    %1497 = vmatpush1.msra.mxu0 0.0
    %1498 = vmatprep.subr.mxu0 0.0
    %1499 = vmatpush1.msra.mxu0 0.0
    %1500 = vmatprep.subr.mxu0 0.0
    %1501 = vmatpush1.msra.mxu0 0.0
    %1502 = vmatprep.subr.mxu0 0.0
    %1503 = vmatpush1.msra.mxu0 0.0
    %1504 = vmatprep.subr.mxu0 0.0
    %1505 = vmatpush1.msra.mxu0 0.0
    %1506 = vmatprep.subr.mxu0 0.0
    %1507 = vmatpush1.msra.mxu0 0.0
    %1508 = vmatprep.subr.mxu0 0.0
    %1509 = vmatpush1.msra.mxu0 0.0
    %1510 = vmatprep.subr.mxu0 0.0
    %1511 = vmatpush1.msra.mxu0 0.0
    %1512 = vmatprep.subr.mxu0 0.0
    %1513 = vmatpush1.msra.mxu0 0.0
    %1514 = vmatprep.subr.mxu0 0.0
    %1515 = vmatpush1.msra.mxu0 0.0
    %1516 = vmatprep.mubr.f32.mxu0 0.0
    %1517 = vmatmul.mubr.f32.gmra.mrb[0].mxu0 %v1450
    %v1518 = vpop.f32.mrb[0].mxu0
    %v1519 = vadd.f32 0.0, %v1518
    %v1520 = vpop.f32.mrb[0].mxu0
    %1521 = vdwg.mxu0
    %v1522 = vadd.f32 %v1445, %v1519
    %v1523 = vxor.u32 %v1522, 2147483648
    %v1524 = vmul.f32 %v1523, 1.442695
    %v1525 = vpow.pop %v1524
    %v1526 = vadd.f32 %v1525, 1.0
    %v1527 = vrcp.pop %v1526
    %v1528 = vmul.f32 1.0, %v1527
    %v1529 = vtanh.pop %v1522
    %v1530 = vmul.f32 %v1528, %v1433
    %1532 = vrot.lane.b32.xlu0 %v1529, 64
    %v1533 = vpop.permute.xlu0 %1532
    %v1535 = vmul.f32 %v1528, %v1533
    %1537 = vrot.lane.b32.xlu0 %v1535, 32
    %v1538 = vpop.permute.xlu0 %1537
    %v1540 = vadd.f32 %v1530, %v1538
    %v1541 = vtanh.pop %v1540
    %1543 = vrot.lane.b32.xlu0 %v1541, 64
    %v1544 = vpop.permute.xlu0 %1543
    %v1546 = vmul.f32 %v1528, %v1544
    %1548 = vrot.lane.b32.xlu0 %v1546, 32
    %v1549 = vpop.permute.xlu0 %1548
    %1551 = vst.msk [vmem:[%s486] sm:$0x3] %vm377, %v1549
    %v1552 = vld [vmem:[%s488] sm:$0x3]
    %v1553 = vld [vmem:[#allocation7] sm:$0xff]
    %v1554 = vld [vmem:[#allocation7 + $0x8] sm:$0xff]
    %v1555 = vld [vmem:[#allocation7 + $0x10] sm:$0xff]
    %v1556 = vld [vmem:[#allocation7 + $0x18] sm:$0xff]
    %v1557 = vsel %vm274, %v1549, 0
    %1559 = vmatprep.subr.mxu0 0.0
    %1560 = vmatpush1.msra.mxu0 %v1553
    %1561 = vmatprep.subr.mxu0 0.0
    %1562 = vmatpush1.msra.mxu0 %v1554
    %1563 = vmatprep.subr.mxu0 0.0
    %1564 = vmatpush1.msra.mxu0 %v1555
    %1565 = vmatprep.subr.mxu0 0.0
    %1566 = vmatpush1.msra.mxu0 %v1556
    %1567 = vmatprep.subr.mxu0 0.0
    %1568 = vmatpush1.msra.mxu0 0.0
    %1569 = vmatprep.subr.mxu0 0.0
    %1570 = vmatpush1.msra.mxu0 0.0
    %1571 = vmatprep.subr.mxu0 0.0
    %1572 = vmatpush1.msra.mxu0 0.0
    %1573 = vmatprep.subr.mxu0 0.0
    %1574 = vmatpush1.msra.mxu0 0.0
    %1575 = vmatprep.subr.mxu0 0.0
    %1576 = vmatpush1.msra.mxu0 0.0
    %1577 = vmatprep.subr.mxu0 0.0
    %1578 = vmatpush1.msra.mxu0 0.0
    %1579 = vmatprep.subr.mxu0 0.0
    %1580 = vmatpush1.msra.mxu0 0.0
    %1581 = vmatprep.subr.mxu0 0.0
    %1582 = vmatpush1.msra.mxu0 0.0
    %1583 = vmatprep.subr.mxu0 0.0
    %1584 = vmatpush1.msra.mxu0 0.0
    %1585 = vmatprep.subr.mxu0 0.0
    %1586 = vmatpush1.msra.mxu0 0.0
    %1587 = vmatprep.subr.mxu0 0.0
    %1588 = vmatpush1.msra.mxu0 0.0
    %1589 = vmatprep.subr.mxu0 0.0
    %1590 = vmatpush1.msra.mxu0 0.0
    %1591 = vmatprep.subr.mxu0 0.0
    %1592 = vmatpush1.msra.mxu0 0.0
    %1593 = vmatprep.subr.mxu0 0.0
    %1594 = vmatpush1.msra.mxu0 0.0
    %1595 = vmatprep.subr.mxu0 0.0
    %1596 = vmatpush1.msra.mxu0 0.0
    %1597 = vmatprep.subr.mxu0 0.0
    %1598 = vmatpush1.msra.mxu0 0.0
    %1599 = vmatprep.subr.mxu0 0.0
    %1600 = vmatpush1.msra.mxu0 0.0
    %1601 = vmatprep.subr.mxu0 0.0
    %1602 = vmatpush1.msra.mxu0 0.0
    %1603 = vmatprep.subr.mxu0 0.0
    %1604 = vmatpush1.msra.mxu0 0.0
    %1605 = vmatprep.subr.mxu0 0.0
    %1606 = vmatpush1.msra.mxu0 0.0
    %1607 = vmatprep.subr.mxu0 0.0
    %1608 = vmatpush1.msra.mxu0 0.0
    %1609 = vmatprep.subr.mxu0 0.0
    %1610 = vmatpush1.msra.mxu0 0.0
    %1611 = vmatprep.subr.mxu0 0.0
    %1612 = vmatpush1.msra.mxu0 0.0
    %1613 = vmatprep.subr.mxu0 0.0
    %1614 = vmatpush1.msra.mxu0 0.0
    %1615 = vmatprep.subr.mxu0 0.0
    %1616 = vmatpush1.msra.mxu0 0.0
    %1617 = vmatprep.subr.mxu0 0.0
    %1618 = vmatpush1.msra.mxu0 0.0
    %1619 = vmatprep.subr.mxu0 0.0
    %1620 = vmatpush1.msra.mxu0 0.0
    %1621 = vmatprep.subr.mxu0 0.0
    %1622 = vmatpush1.msra.mxu0 0.0
    %1623 = vmatprep.mubr.f32.mxu0 0.0
    %1624 = vmatmul.mubr.f32.gmra.mrb[0].mxu0 %v1557
    %v1625 = vpop.f32.mrb[0].mxu0
    %v1626 = vadd.f32 0.0, %v1625
    %v1627 = vpop.f32.mrb[0].mxu0
    %1628 = vdwg.mxu0
    %v1629 = vadd.f32 %v1552, %v1626
    %v1630 = vxor.u32 %v1629, 2147483648
    %v1631 = vmul.f32 %v1630, 1.442695
    %v1632 = vpow.pop %v1631
    %v1633 = vadd.f32 %v1632, 1.0
    %v1634 = vrcp.pop %v1633
    %v1635 = vmul.f32 1.0, %v1634
    %v1636 = vtanh.pop %v1629
    %v1637 = vmul.f32 %v1635, %v1540
    %1639 = vrot.lane.b32.xlu0 %v1636, 64
    %v1640 = vpop.permute.xlu0 %1639
    %v1642 = vmul.f32 %v1635, %v1640
    %1644 = vrot.lane.b32.xlu0 %v1642, 32
    %v1645 = vpop.permute.xlu0 %1644
    %v1647 = vadd.f32 %v1637, %v1645
    %v1648 = vtanh.pop %v1647
    %1650 = vrot.lane.b32.xlu0 %v1648, 64
    %v1651 = vpop.permute.xlu0 %1650
    %v1653 = vmul.f32 %v1635, %v1651
    %1655 = vrot.lane.b32.xlu0 %v1653, 32
    %v1656 = vpop.permute.xlu0 %1655
    %1658 = vst.msk [vmem:[%s595] sm:$0x3] %vm377, %v1656
    %v1659 = vld [vmem:[%s597] sm:$0x3]
    %v1660 = vld [vmem:[#allocation7] sm:$0xff]
    %v1661 = vld [vmem:[#allocation7 + $0x8] sm:$0xff]
    %v1662 = vld [vmem:[#allocation7 + $0x10] sm:$0xff]
    %v1663 = vld [vmem:[#allocation7 + $0x18] sm:$0xff]
    %v1664 = vsel %vm274, %v1656, 0
    %1666 = vmatprep.subr.mxu0 0.0
    %1667 = vmatpush1.msra.mxu0 %v1660
    %1668 = vmatprep.subr.mxu0 0.0
    %1669 = vmatpush1.msra.mxu0 %v1661
    %1670 = vmatprep.subr.mxu0 0.0
    %1671 = vmatpush1.msra.mxu0 %v1662
    %1672 = vmatprep.subr.mxu0 0.0
    %1673 = vmatpush1.msra.mxu0 %v1663
    %1674 = vmatprep.subr.mxu0 0.0
    %1675 = vmatpush1.msra.mxu0 0.0
    %1676 = vmatprep.subr.mxu0 0.0
    %1677 = vmatpush1.msra.mxu0 0.0
    %1678 = vmatprep.subr.mxu0 0.0
    %1679 = vmatpush1.msra.mxu0 0.0
    %1680 = vmatprep.subr.mxu0 0.0
    %1681 = vmatpush1.msra.mxu0 0.0
    %1682 = vmatprep.subr.mxu0 0.0
    %1683 = vmatpush1.msra.mxu0 0.0
    %1684 = vmatprep.subr.mxu0 0.0
    %1685 = vmatpush1.msra.mxu0 0.0
    %1686 = vmatprep.subr.mxu0 0.0
    %1687 = vmatpush1.msra.mxu0 0.0
    %1688 = vmatprep.subr.mxu0 0.0
    %1689 = vmatpush1.msra.mxu0 0.0
    %1690 = vmatprep.subr.mxu0 0.0
    %1691 = vmatpush1.msra.mxu0 0.0
    %1692 = vmatprep.subr.mxu0 0.0
    %1693 = vmatpush1.msra.mxu0 0.0
    %1694 = vmatprep.subr.mxu0 0.0
    %1695 = vmatpush1.msra.mxu0 0.0
    %1696 = vmatprep.subr.mxu0 0.0
    %1697 = vmatpush1.msra.mxu0 0.0
    %1698 = vmatprep.subr.mxu0 0.0
    %1699 = vmatpush1.msra.mxu0 0.0
    %1700 = vmatprep.subr.mxu0 0.0
    %1701 = vmatpush1.msra.mxu0 0.0
    %1702 = vmatprep.subr.mxu0 0.0
    %1703 = vmatpush1.msra.mxu0 0.0
    %1704 = vmatprep.subr.mxu0 0.0
    %1705 = vmatpush1.msra.mxu0 0.0
    %1706 = vmatprep.subr.mxu0 0.0
    %1707 = vmatpush1.msra.mxu0 0.0
    %1708 = vmatprep.subr.mxu0 0.0
    %1709 = vmatpush1.msra.mxu0 0.0
    %1710 = vmatprep.subr.mxu0 0.0
    %1711 = vmatpush1.msra.mxu0 0.0
    %1712 = vmatprep.subr.mxu0 0.0
    %1713 = vmatpush1.msra.mxu0 0.0
    %1714 = vmatprep.subr.mxu0 0.0
    %1715 = vmatpush1.msra.mxu0 0.0
    %1716 = vmatprep.subr.mxu0 0.0
    %1717 = vmatpush1.msra.mxu0 0.0
    %1718 = vmatprep.subr.mxu0 0.0
    %1719 = vmatpush1.msra.mxu0 0.0
    %1720 = vmatprep.subr.mxu0 0.0
    %1721 = vmatpush1.msra.mxu0 0.0
    %1722 = vmatprep.subr.mxu0 0.0
    %1723 = vmatpush1.msra.mxu0 0.0
    %1724 = vmatprep.subr.mxu0 0.0
    %1725 = vmatpush1.msra.mxu0 0.0
    %1726 = vmatprep.subr.mxu0 0.0
    %1727 = vmatpush1.msra.mxu0 0.0
    %1728 = vmatprep.subr.mxu0 0.0
    %1729 = vmatpush1.msra.mxu0 0.0
    %1730 = vmatprep.mubr.f32.mxu0 0.0
    %1731 = vmatmul.mubr.f32.gmra.mrb[0].mxu0 %v1664
    %v1732 = vpop.f32.mrb[0].mxu0
    %v1733 = vadd.f32 0.0, %v1732
    %v1734 = vpop.f32.mrb[0].mxu0
    %1735 = vdwg.mxu0
    %v1736 = vadd.f32 %v1659, %v1733
    %v1737 = vxor.u32 %v1736, 2147483648
    %v1738 = vmul.f32 %v1737, 1.442695
    %v1739 = vpow.pop %v1738
    %v1740 = vadd.f32 %v1739, 1.0
    %v1741 = vrcp.pop %v1740
    %v1742 = vmul.f32 1.0, %v1741
    %v1743 = vtanh.pop %v1736
    %v1744 = vmul.f32 %v1742, %v1647
    %1746 = vrot.lane.b32.xlu0 %v1743, 64
    %v1747 = vpop.permute.xlu0 %1746
    %v1749 = vmul.f32 %v1742, %v1747
    %1751 = vrot.lane.b32.xlu0 %v1749, 32
    %v1752 = vpop.permute.xlu0 %1751
    %v1754 = vadd.f32 %v1744, %v1752
    %v1755 = vtanh.pop %v1754
    %1757 = vrot.lane.b32.xlu0 %v1755, 64
    %v1758 = vpop.permute.xlu0 %1757
    %v1760 = vmul.f32 %v1742, %v1758
    %1762 = vrot.lane.b32.xlu0 %v1760, 32
    %v1763 = vpop.permute.xlu0 %1762
    %1765 = vst.msk [vmem:[%s704] sm:$0x3] %vm377, %v1763
    %v1766 = vld [vmem:[%s706] sm:$0x3]
    %v1767 = vld [vmem:[#allocation7] sm:$0xff]
    %v1768 = vld [vmem:[#allocation7 + $0x8] sm:$0xff]
    %v1769 = vld [vmem:[#allocation7 + $0x10] sm:$0xff]
    %v1770 = vld [vmem:[#allocation7 + $0x18] sm:$0xff]
    %v1771 = vsel %vm274, %v1763, 0
    %1773 = vmatprep.subr.mxu0 0.0
    %1774 = vmatpush1.msra.mxu0 %v1767
    %1775 = vmatprep.subr.mxu0 0.0
    %1776 = vmatpush1.msra.mxu0 %v1768
    %1777 = vmatprep.subr.mxu0 0.0
    %1778 = vmatpush1.msra.mxu0 %v1769
    %1779 = vmatprep.subr.mxu0 0.0
    %1780 = vmatpush1.msra.mxu0 %v1770
    %1781 = vmatprep.subr.mxu0 0.0
    %1782 = vmatpush1.msra.mxu0 0.0
    %1783 = vmatprep.subr.mxu0 0.0
    %1784 = vmatpush1.msra.mxu0 0.0
    %1785 = vmatprep.subr.mxu0 0.0
    %1786 = vmatpush1.msra.mxu0 0.0
    %1787 = vmatprep.subr.mxu0 0.0
    %1788 = vmatpush1.msra.mxu0 0.0
    %1789 = vmatprep.subr.mxu0 0.0
    %1790 = vmatpush1.msra.mxu0 0.0
    %1791 = vmatprep.subr.mxu0 0.0
    %1792 = vmatpush1.msra.mxu0 0.0
    %1793 = vmatprep.subr.mxu0 0.0
    %1794 = vmatpush1.msra.mxu0 0.0
    %1795 = vmatprep.subr.mxu0 0.0
    %1796 = vmatpush1.msra.mxu0 0.0
    %1797 = vmatprep.subr.mxu0 0.0
    %1798 = vmatpush1.msra.mxu0 0.0
    %1799 = vmatprep.subr.mxu0 0.0
    %1800 = vmatpush1.msra.mxu0 0.0
    %1801 = vmatprep.subr.mxu0 0.0
    %1802 = vmatpush1.msra.mxu0 0.0
    %1803 = vmatprep.subr.mxu0 0.0
    %1804 = vmatpush1.msra.mxu0 0.0
    %1805 = vmatprep.subr.mxu0 0.0
    %1806 = vmatpush1.msra.mxu0 0.0
    %1807 = vmatprep.subr.mxu0 0.0
    %1808 = vmatpush1.msra.mxu0 0.0
    %1809 = vmatprep.subr.mxu0 0.0
    %1810 = vmatpush1.msra.mxu0 0.0
    %1811 = vmatprep.subr.mxu0 0.0
    %1812 = vmatpush1.msra.mxu0 0.0
    %1813 = vmatprep.subr.mxu0 0.0
    %1814 = vmatpush1.msra.mxu0 0.0
    %1815 = vmatprep.subr.mxu0 0.0
    %1816 = vmatpush1.msra.mxu0 0.0
    %1817 = vmatprep.subr.mxu0 0.0
    %1818 = vmatpush1.msra.mxu0 0.0
    %1819 = vmatprep.subr.mxu0 0.0
    %1820 = vmatpush1.msra.mxu0 0.0
    %1821 = vmatprep.subr.mxu0 0.0
    %1822 = vmatpush1.msra.mxu0 0.0
    %1823 = vmatprep.subr.mxu0 0.0
    %1824 = vmatpush1.msra.mxu0 0.0
    %1825 = vmatprep.subr.mxu0 0.0
    %1826 = vmatpush1.msra.mxu0 0.0
    %1827 = vmatprep.subr.mxu0 0.0
    %1828 = vmatpush1.msra.mxu0 0.0
    %1829 = vmatprep.subr.mxu0 0.0
    %1830 = vmatpush1.msra.mxu0 0.0
    %1831 = vmatprep.subr.mxu0 0.0
    %1832 = vmatpush1.msra.mxu0 0.0
    %1833 = vmatprep.subr.mxu0 0.0
    %1834 = vmatpush1.msra.mxu0 0.0
    %1835 = vmatprep.subr.mxu0 0.0
    %1836 = vmatpush1.msra.mxu0 0.0
    %1837 = vmatprep.mubr.f32.mxu0 0.0
    %1838 = vmatmul.mubr.f32.gmra.mrb[0].mxu0 %v1771
    %v1839 = vpop.f32.mrb[0].mxu0
    %v1840 = vadd.f32 0.0, %v1839
    %v1841 = vpop.f32.mrb[0].mxu0
    %1842 = vdwg.mxu0
    %v1843 = vadd.f32 %v1766, %v1840
    %v1844 = vxor.u32 %v1843, 2147483648
    %v1845 = vmul.f32 %v1844, 1.442695
    %v1846 = vpow.pop %v1845
    %v1847 = vadd.f32 %v1846, 1.0
    %v1848 = vrcp.pop %v1847
    %v1849 = vmul.f32 1.0, %v1848
    %v1850 = vtanh.pop %v1843
    %v1851 = vmul.f32 %v1849, %v1754
    %1853 = vrot.lane.b32.xlu0 %v1850, 64
    %v1854 = vpop.permute.xlu0 %1853
    %v1856 = vmul.f32 %v1849, %v1854
    %1858 = vrot.lane.b32.xlu0 %v1856, 32
    %v1859 = vpop.permute.xlu0 %1858
    %v1861 = vadd.f32 %v1851, %v1859
    %v1862 = vtanh.pop %v1861
    %1864 = vrot.lane.b32.xlu0 %v1862, 64
    %v1865 = vpop.permute.xlu0 %1864
    %v1867 = vmul.f32 %v1849, %v1865
    %1869 = vrot.lane.b32.xlu0 %v1867, 32
    %v1870 = vpop.permute.xlu0 %1869
    %1872 = vst.msk [vmem:[%s813] sm:$0x3] %vm377, %v1870
    %v1873 = vld [vmem:[%s815] sm:$0x3]
    %v1874 = vld [vmem:[#allocation7] sm:$0xff]
    %v1875 = vld [vmem:[#allocation7 + $0x8] sm:$0xff]
    %v1876 = vld [vmem:[#allocation7 + $0x10] sm:$0xff]
    %v1877 = vld [vmem:[#allocation7 + $0x18] sm:$0xff]
    %v1878 = vsel %vm274, %v1870, 0
    %1880 = vmatprep.subr.mxu0 0.0
    %1881 = vmatpush1.msra.mxu0 %v1874
    %1882 = vmatprep.subr.mxu0 0.0
    %1883 = vmatpush1.msra.mxu0 %v1875
    %1884 = vmatprep.subr.mxu0 0.0
    %1885 = vmatpush1.msra.mxu0 %v1876
    %1886 = vmatprep.subr.mxu0 0.0
    %1887 = vmatpush1.msra.mxu0 %v1877
    %1888 = vmatprep.subr.mxu0 0.0
    %1889 = vmatpush1.msra.mxu0 0.0
    %1890 = vmatprep.subr.mxu0 0.0
    %1891 = vmatpush1.msra.mxu0 0.0
    %1892 = vmatprep.subr.mxu0 0.0
    %1893 = vmatpush1.msra.mxu0 0.0
    %1894 = vmatprep.subr.mxu0 0.0
    %1895 = vmatpush1.msra.mxu0 0.0
    %1896 = vmatprep.subr.mxu0 0.0
    %1897 = vmatpush1.msra.mxu0 0.0
    %1898 = vmatprep.subr.mxu0 0.0
    %1899 = vmatpush1.msra.mxu0 0.0
    %1900 = vmatprep.subr.mxu0 0.0
    %1901 = vmatpush1.msra.mxu0 0.0
    %1902 = vmatprep.subr.mxu0 0.0
    %1903 = vmatpush1.msra.mxu0 0.0
    %1904 = vmatprep.subr.mxu0 0.0
    %1905 = vmatpush1.msra.mxu0 0.0
    %1906 = vmatprep.subr.mxu0 0.0
    %1907 = vmatpush1.msra.mxu0 0.0
    %1908 = vmatprep.subr.mxu0 0.0
    %1909 = vmatpush1.msra.mxu0 0.0
    %1910 = vmatprep.subr.mxu0 0.0
    %1911 = vmatpush1.msra.mxu0 0.0
    %1912 = vmatprep.subr.mxu0 0.0
    %1913 = vmatpush1.msra.mxu0 0.0
    %1914 = vmatprep.subr.mxu0 0.0
    %1915 = vmatpush1.msra.mxu0 0.0
    %1916 = vmatprep.subr.mxu0 0.0
    %1917 = vmatpush1.msra.mxu0 0.0
    %1918 = vmatprep.subr.mxu0 0.0
    %1919 = vmatpush1.msra.mxu0 0.0
    %1920 = vmatprep.subr.mxu0 0.0
    %1921 = vmatpush1.msra.mxu0 0.0
    %1922 = vmatprep.subr.mxu0 0.0
    %1923 = vmatpush1.msra.mxu0 0.0
    %1924 = vmatprep.subr.mxu0 0.0
    %1925 = vmatpush1.msra.mxu0 0.0
    %1926 = vmatprep.subr.mxu0 0.0
    %1927 = vmatpush1.msra.mxu0 0.0
    %1928 = vmatprep.subr.mxu0 0.0
    %1929 = vmatpush1.msra.mxu0 0.0
    %1930 = vmatprep.subr.mxu0 0.0
    %1931 = vmatpush1.msra.mxu0 0.0
    %1932 = vmatprep.subr.mxu0 0.0
    %1933 = vmatpush1.msra.mxu0 0.0
    %1934 = vmatprep.subr.mxu0 0.0
    %1935 = vmatpush1.msra.mxu0 0.0
    %1936 = vmatprep.subr.mxu0 0.0
    %1937 = vmatpush1.msra.mxu0 0.0
    %1938 = vmatprep.subr.mxu0 0.0
    %1939 = vmatpush1.msra.mxu0 0.0
    %1940 = vmatprep.subr.mxu0 0.0
    %1941 = vmatpush1.msra.mxu0 0.0
    %1942 = vmatprep.subr.mxu0 0.0
    %1943 = vmatpush1.msra.mxu0 0.0
    %1944 = vmatprep.mubr.f32.mxu0 0.0
    %1945 = vmatmul.mubr.f32.gmra.mrb[0].mxu0 %v1878
    %v1946 = vpop.f32.mrb[0].mxu0
    %v1947 = vadd.f32 0.0, %v1946
    %v1948 = vpop.f32.mrb[0].mxu0
    %1949 = vdwg.mxu0
    %v1950 = vadd.f32 %v1873, %v1947
    %v1951 = vxor.u32 %v1950, 2147483648
    %v1952 = vmul.f32 %v1951, 1.442695
    %v1953 = vpow.pop %v1952
    %v1954 = vadd.f32 %v1953, 1.0
    %v1955 = vrcp.pop %v1954
    %v1956 = vmul.f32 1.0, %v1955
    %v1957 = vtanh.pop %v1950
    %v1958 = vmul.f32 %v1956, %v1861
    %1960 = vrot.lane.b32.xlu0 %v1957, 64
    %v1961 = vpop.permute.xlu0 %1960
    %v1963 = vmul.f32 %v1956, %v1961
    %1965 = vrot.lane.b32.xlu0 %v1963, 32
    %v1966 = vpop.permute.xlu0 %1965
    %v1968 = vadd.f32 %v1958, %v1966
    %v1969 = vtanh.pop %v1968
    %1971 = vrot.lane.b32.xlu0 %v1969, 64
    %v1972 = vpop.permute.xlu0 %1971
    %v1974 = vmul.f32 %v1956, %v1972
    %1976 = vrot.lane.b32.xlu0 %v1974, 32
    %v1977 = vpop.permute.xlu0 %1976
    %1979 = vst.msk [vmem:[%s922] sm:$0x3] %vm377, %v1977
    %v1980 = vld [vmem:[%s924] sm:$0x3]
    %v1981 = vld [vmem:[#allocation7] sm:$0xff]
    %v1982 = vld [vmem:[#allocation7 + $0x8] sm:$0xff]
    %v1983 = vld [vmem:[#allocation7 + $0x10] sm:$0xff]
    %v1984 = vld [vmem:[#allocation7 + $0x18] sm:$0xff]
    %v1985 = vsel %vm274, %v1977, 0
    %1987 = vmatprep.subr.mxu0 0.0
    %1988 = vmatpush1.msra.mxu0 %v1981
    %1989 = vmatprep.subr.mxu0 0.0
    %1990 = vmatpush1.msra.mxu0 %v1982
    %1991 = vmatprep.subr.mxu0 0.0
    %1992 = vmatpush1.msra.mxu0 %v1983
    %1993 = vmatprep.subr.mxu0 0.0
    %1994 = vmatpush1.msra.mxu0 %v1984
    %1995 = vmatprep.subr.mxu0 0.0
    %1996 = vmatpush1.msra.mxu0 0.0
    %1997 = vmatprep.subr.mxu0 0.0
    %1998 = vmatpush1.msra.mxu0 0.0
    %1999 = vmatprep.subr.mxu0 0.0
    %2000 = vmatpush1.msra.mxu0 0.0
    %2001 = vmatprep.subr.mxu0 0.0
    %2002 = vmatpush1.msra.mxu0 0.0
    %2003 = vmatprep.subr.mxu0 0.0
    %2004 = vmatpush1.msra.mxu0 0.0
    %2005 = vmatprep.subr.mxu0 0.0
    %2006 = vmatpush1.msra.mxu0 0.0
    %2007 = vmatprep.subr.mxu0 0.0
    %2008 = vmatpush1.msra.mxu0 0.0
    %2009 = vmatprep.subr.mxu0 0.0
    %2010 = vmatpush1.msra.mxu0 0.0
    %2011 = vmatprep.subr.mxu0 0.0
    %2012 = vmatpush1.msra.mxu0 0.0
    %2013 = vmatprep.subr.mxu0 0.0
    %2014 = vmatpush1.msra.mxu0 0.0
    %2015 = vmatprep.subr.mxu0 0.0
    %2016 = vmatpush1.msra.mxu0 0.0
    %2017 = vmatprep.subr.mxu0 0.0
    %2018 = vmatpush1.msra.mxu0 0.0
    %2019 = vmatprep.subr.mxu0 0.0
    %2020 = vmatpush1.msra.mxu0 0.0
    %2021 = vmatprep.subr.mxu0 0.0
    %2022 = vmatpush1.msra.mxu0 0.0
    %2023 = vmatprep.subr.mxu0 0.0
    %2024 = vmatpush1.msra.mxu0 0.0
    %2025 = vmatprep.subr.mxu0 0.0
    %2026 = vmatpush1.msra.mxu0 0.0
    %2027 = vmatprep.subr.mxu0 0.0
    %2028 = vmatpush1.msra.mxu0 0.0
    %2029 = vmatprep.subr.mxu0 0.0
    %2030 = vmatpush1.msra.mxu0 0.0
    %2031 = vmatprep.subr.mxu0 0.0
    %2032 = vmatpush1.msra.mxu0 0.0
    %2033 = vmatprep.subr.mxu0 0.0
    %2034 = vmatpush1.msra.mxu0 0.0
    %2035 = vmatprep.subr.mxu0 0.0
    %2036 = vmatpush1.msra.mxu0 0.0
    %2037 = vmatprep.subr.mxu0 0.0
    %2038 = vmatpush1.msra.mxu0 0.0
    %2039 = vmatprep.subr.mxu0 0.0
    %2040 = vmatpush1.msra.mxu0 0.0
    %2041 = vmatprep.subr.mxu0 0.0
    %2042 = vmatpush1.msra.mxu0 0.0
    %2043 = vmatprep.subr.mxu0 0.0
    %2044 = vmatpush1.msra.mxu0 0.0
    %2045 = vmatprep.subr.mxu0 0.0
    %2046 = vmatpush1.msra.mxu0 0.0
    %2047 = vmatprep.subr.mxu0 0.0
    %2048 = vmatpush1.msra.mxu0 0.0
    %2049 = vmatprep.subr.mxu0 0.0
    %2050 = vmatpush1.msra.mxu0 0.0
    %2051 = vmatprep.mubr.f32.mxu0 0.0
    %2052 = vmatmul.mubr.f32.gmra.mrb[0].mxu0 %v1985
    %v2053 = vpop.f32.mrb[0].mxu0
    %v2054 = vadd.f32 0.0, %v2053
    %v2055 = vpop.f32.mrb[0].mxu0
    %2056 = vdwg.mxu0
    %v2057 = vadd.f32 %v1980, %v2054
    %v2058 = vxor.u32 %v2057, 2147483648
    %v2059 = vmul.f32 %v2058, 1.442695
    %v2060 = vpow.pop %v2059
    %v2061 = vadd.f32 %v2060, 1.0
    %v2062 = vrcp.pop %v2061
    %v2063 = vmul.f32 1.0, %v2062
    %v2064 = vtanh.pop %v2057
    %v2065 = vmul.f32 %v2063, %v1968
    %2067 = vrot.lane.b32.xlu0 %v2064, 64
    %v2068 = vpop.permute.xlu0 %2067
    %v2070 = vmul.f32 %v2063, %v2068
    %2072 = vrot.lane.b32.xlu0 %v2070, 32
    %v2073 = vpop.permute.xlu0 %2072
    %v2075 = vadd.f32 %v2065, %v2073
    %v2076 = vtanh.pop %v2075
    %2078 = vrot.lane.b32.xlu0 %v2076, 64
    %v2079 = vpop.permute.xlu0 %2078
    %v2081 = vmul.f32 %v2063, %v2079
    %2083 = vrot.lane.b32.xlu0 %v2081, 32
    %v2084 = vpop.permute.xlu0 %2083
    %2086 = vst.msk [vmem:[%s1031] sm:$0x3] %vm377, %v2084
    %v2087 = vld [vmem:[%s1033] sm:$0x3]
    %v2088 = vld [vmem:[#allocation7] sm:$0xff]
    %v2089 = vld [vmem:[#allocation7 + $0x8] sm:$0xff]
    %v2090 = vld [vmem:[#allocation7 + $0x10] sm:$0xff]
    %v2091 = vld [vmem:[#allocation7 + $0x18] sm:$0xff]
    %v2092 = vsel %vm274, %v2084, 0
    %2094 = vmatprep.subr.mxu0 0.0
    %2095 = vmatpush1.msra.mxu0 %v2088
    %2096 = vmatprep.subr.mxu0 0.0
    %2097 = vmatpush1.msra.mxu0 %v2089
    %2098 = vmatprep.subr.mxu0 0.0
    %2099 = vmatpush1.msra.mxu0 %v2090
    %2100 = vmatprep.subr.mxu0 0.0
    %2101 = vmatpush1.msra.mxu0 %v2091
    %2102 = vmatprep.subr.mxu0 0.0
    %2103 = vmatpush1.msra.mxu0 0.0
    %2104 = vmatprep.subr.mxu0 0.0
    %2105 = vmatpush1.msra.mxu0 0.0
    %2106 = vmatprep.subr.mxu0 0.0
    %2107 = vmatpush1.msra.mxu0 0.0
    %2108 = vmatprep.subr.mxu0 0.0
    %2109 = vmatpush1.msra.mxu0 0.0
    %2110 = vmatprep.subr.mxu0 0.0
    %2111 = vmatpush1.msra.mxu0 0.0
    %2112 = vmatprep.subr.mxu0 0.0
    %2113 = vmatpush1.msra.mxu0 0.0
    %2114 = vmatprep.subr.mxu0 0.0
    %2115 = vmatpush1.msra.mxu0 0.0
    %2116 = vmatprep.subr.mxu0 0.0
    %2117 = vmatpush1.msra.mxu0 0.0
    %2118 = vmatprep.subr.mxu0 0.0
    %2119 = vmatpush1.msra.mxu0 0.0
    %2120 = vmatprep.subr.mxu0 0.0
    %2121 = vmatpush1.msra.mxu0 0.0
    %2122 = vmatprep.subr.mxu0 0.0
    %2123 = vmatpush1.msra.mxu0 0.0
    %2124 = vmatprep.subr.mxu0 0.0
    %2125 = vmatpush1.msra.mxu0 0.0
    %2126 = vmatprep.subr.mxu0 0.0
    %2127 = vmatpush1.msra.mxu0 0.0
    %2128 = vmatprep.subr.mxu0 0.0
    %2129 = vmatpush1.msra.mxu0 0.0
    %2130 = vmatprep.subr.mxu0 0.0
    %2131 = vmatpush1.msra.mxu0 0.0
    %2132 = vmatprep.subr.mxu0 0.0
    %2133 = vmatpush1.msra.mxu0 0.0
    %2134 = vmatprep.subr.mxu0 0.0
    %2135 = vmatpush1.msra.mxu0 0.0
    %2136 = vmatprep.subr.mxu0 0.0
    %2137 = vmatpush1.msra.mxu0 0.0
    %2138 = vmatprep.subr.mxu0 0.0
    %2139 = vmatpush1.msra.mxu0 0.0
    %2140 = vmatprep.subr.mxu0 0.0
    %2141 = vmatpush1.msra.mxu0 0.0
    %2142 = vmatprep.subr.mxu0 0.0
    %2143 = vmatpush1.msra.mxu0 0.0
    %2144 = vmatprep.subr.mxu0 0.0
    %2145 = vmatpush1.msra.mxu0 0.0
    %2146 = vmatprep.subr.mxu0 0.0
    %2147 = vmatpush1.msra.mxu0 0.0
    %2148 = vmatprep.subr.mxu0 0.0
    %2149 = vmatpush1.msra.mxu0 0.0
    %2150 = vmatprep.subr.mxu0 0.0
    %2151 = vmatpush1.msra.mxu0 0.0
    %2152 = vmatprep.subr.mxu0 0.0
    %2153 = vmatpush1.msra.mxu0 0.0
    %2154 = vmatprep.subr.mxu0 0.0
    %2155 = vmatpush1.msra.mxu0 0.0
    %2156 = vmatprep.subr.mxu0 0.0
    %2157 = vmatpush1.msra.mxu0 0.0
    %2158 = vmatprep.mubr.f32.mxu0 0.0
    %2159 = vmatmul.mubr.f32.gmra.mrb[0].mxu0 %v2092
    %v2160 = vpop.f32.mrb[0].mxu0
    %v2161 = vadd.f32 0.0, %v2160
    %v2162 = vpop.f32.mrb[0].mxu0
    %2163 = vdwg.mxu0
    %v2164 = vadd.f32 %v2087, %v2161
    %v2165 = vxor.u32 %v2164, 2147483648
    %v2166 = vmul.f32 %v2165, 1.442695
    %v2167 = vpow.pop %v2166
    %v2168 = vadd.f32 %v2167, 1.0
    %v2169 = vrcp.pop %v2168
    %v2170 = vmul.f32 1.0, %v2169
    %v2171 = vtanh.pop %v2164
    %v2172 = vmul.f32 %v2170, %v2075
    %2174 = vrot.lane.b32.xlu0 %v2171, 64
    %v2175 = vpop.permute.xlu0 %2174
    %v2177 = vmul.f32 %v2170, %v2175
    %2179 = vrot.lane.b32.xlu0 %v2177, 32
    %v2180 = vpop.permute.xlu0 %2179
    %v2182 = vadd.f32 %v2172, %v2180
    %v2183 = vtanh.pop %v2182
    %2185 = vrot.lane.b32.xlu0 %v2183, 64
    %v2186 = vpop.permute.xlu0 %2185
    %v2188 = vmul.f32 %v2170, %v2186
    %2190 = vrot.lane.b32.xlu0 %v2188, 32
    %v2191 = vpop.permute.xlu0 %2190
    %2193 = vst.msk [vmem:[%s1140] sm:$0x3] %vm377, %v2191
    %s2194 = scalar_lea.vmem [#allocation11], 2
    %2195 = vst.msk [vmem:[%s2194] sm:$0x3] %vm377, %v2191
    %2197 = vrot.lane.b32.xlu0 %v2182, 96
    %v2198 = vpop.permute.xlu0 %2197
    %s2200 = scalar_lea.vmem [#allocation13], 2
    %2201 = vst.msk [vmem:[%s2200] sm:$0x3] %vm377, %v2198
    %v2202 = vld [vmem:[#allocation9] sm:$0xff]
    %v2203 = vld [vmem:[#allocation9 + $0x8] sm:$0xff]
    %v2204 = vld [vmem:[#allocation9 + $0x10] sm:$0xff]
    %v2205 = vld [vmem:[#allocation9 + $0x18] sm:$0xff]
    %v2206 = vld [vmem:[%s8] sm:$0x1]
    %v2208 = vlaneseq
    %v2209 = vshrl.u32 %v2208, 7
    %v2210 = vsub.s32 0, %v2209
    %v2211 = vrot.slane %v2206, %v2210
    %v2213 = vsel %vm274, %v2191, 0
    %2215 = vmatprep.subr.mxu0 0.0
    %2216 = vmatpush1.msra.mxu0 %v2202
    %2217 = vmatprep.subr.mxu0 0.0
    %2218 = vmatpush1.msra.mxu0 %v2203
    %2219 = vmatprep.subr.mxu0 0.0
    %2220 = vmatpush1.msra.mxu0 %v2204
    %2221 = vmatprep.subr.mxu0 0.0
    %2222 = vmatpush1.msra.mxu0 %v2205
    %2223 = vmatprep.subr.mxu0 0.0
    %2224 = vmatpush1.msra.mxu0 0.0
    %2225 = vmatprep.subr.mxu0 0.0
    %2226 = vmatpush1.msra.mxu0 0.0
    %2227 = vmatprep.subr.mxu0 0.0
    %2228 = vmatpush1.msra.mxu0 0.0
    %2229 = vmatprep.subr.mxu0 0.0
    %2230 = vmatpush1.msra.mxu0 0.0
    %2231 = vmatprep.subr.mxu0 0.0
    %2232 = vmatpush1.msra.mxu0 0.0
    %2233 = vmatprep.subr.mxu0 0.0
    %2234 = vmatpush1.msra.mxu0 0.0
    %2235 = vmatprep.subr.mxu0 0.0
    %2236 = vmatpush1.msra.mxu0 0.0
    %2237 = vmatprep.subr.mxu0 0.0
    %2238 = vmatpush1.msra.mxu0 0.0
    %2239 = vmatprep.subr.mxu0 0.0
    %2240 = vmatpush1.msra.mxu0 0.0
    %2241 = vmatprep.subr.mxu0 0.0
    %2242 = vmatpush1.msra.mxu0 0.0
    %2243 = vmatprep.subr.mxu0 0.0
    %2244 = vmatpush1.msra.mxu0 0.0
    %2245 = vmatprep.subr.mxu0 0.0
    %2246 = vmatpush1.msra.mxu0 0.0
    %2247 = vmatprep.subr.mxu0 0.0
    %2248 = vmatpush1.msra.mxu0 0.0
    %2249 = vmatprep.subr.mxu0 0.0
    %2250 = vmatpush1.msra.mxu0 0.0
    %2251 = vmatprep.subr.mxu0 0.0
    %2252 = vmatpush1.msra.mxu0 0.0
    %2253 = vmatprep.subr.mxu0 0.0
    %2254 = vmatpush1.msra.mxu0 0.0
    %2255 = vmatprep.subr.mxu0 0.0
    %2256 = vmatpush1.msra.mxu0 0.0
    %2257 = vmatprep.subr.mxu0 0.0
    %2258 = vmatpush1.msra.mxu0 0.0
    %2259 = vmatprep.subr.mxu0 0.0
    %2260 = vmatpush1.msra.mxu0 0.0
    %2261 = vmatprep.subr.mxu0 0.0
    %2262 = vmatpush1.msra.mxu0 0.0
    %2263 = vmatprep.subr.mxu0 0.0
    %2264 = vmatpush1.msra.mxu0 0.0
    %2265 = vmatprep.subr.mxu0 0.0
    %2266 = vmatpush1.msra.mxu0 0.0
    %2267 = vmatprep.subr.mxu0 0.0
    %2268 = vmatpush1.msra.mxu0 0.0
    %2269 = vmatprep.subr.mxu0 0.0
    %2270 = vmatpush1.msra.mxu0 0.0
    %2271 = vmatprep.subr.mxu0 0.0
    %2272 = vmatpush1.msra.mxu0 0.0
    %2273 = vmatprep.subr.mxu0 0.0
    %2274 = vmatpush1.msra.mxu0 0.0
    %2275 = vmatprep.subr.mxu0 0.0
    %2276 = vmatpush1.msra.mxu0 0.0
    %2277 = vmatprep.subr.mxu0 0.0
    %2278 = vmatpush1.msra.mxu0 0.0
    %2279 = vmatprep.mubr.f32.mxu0 0.0
    %2280 = vmatmul.mubr.f32.gmra.mrb[0].mxu0 %v2213
    %v2281 = vpop.f32.mrb[0].mxu0
    %v2282 = vadd.f32 %v2211, %v2281
    %v2283 = vpop.f32.mrb[0].mxu0
    %2284 = vdwg.mxu0
    %vm2285 = vcmask 74752
    %2286 = vst.msk [vmem:[#allocation10] sm:$0x3] %vm2285, %v2282
    // Predicated region
    $region50: #{_lambda_.1} parent=1 // pred_check
      _
    $region51: #{_lambda_.1} parent=1 // pred_check_branch
      %2288 = sbr.rel (0) target = $region53
    $region52: #{_lambda_.1} parent=1 // pred_region
      %s2290 = ssub.s32 32, 32
      %2291 = vsyncadd [#allocation6], %s2290
      %s2293 = sshll.u32 [#allocation10], 4
      %s2294 = int_to_ptr.vmem [resolvable:$true] %s2293
      %2296 = dma.vmem_to_hbm [thread:$0]  %s2294, 32, %s9, [#allocation6]
    $region53: #{_lambda_.1} parent=1 // pred_fallthru
      _
    // Predicated region
    $region54: #{_lambda_.1} parent=1 // pred_check
      _
    $region55: #{_lambda_.1} parent=1 // pred_check_branch
      %2298 = sbr.rel (0) target = $region57
    $region56: #{_lambda_.1} parent=1 // pred_region
      %s2300 = ssub.s32 64, 64
      %2301 = vsyncadd [#allocation12], %s2300
      %s2302 = sshll.u32 [#allocation11], 4
      %s2303 = int_to_ptr.vmem [resolvable:$true] %s2302
      %2308 = dma.vmem_to_hbm [thread:$0]  %s2303, 64, %s10, [#allocation12], 32, 32, 2
    $region57: #{_lambda_.1} parent=1 // pred_fallthru
      _
    // Predicated region
    $region58: #{_lambda_.1} parent=1 // pred_check
      _
    $region59: #{_lambda_.1} parent=1 // pred_check_branch
      %2310 = sbr.rel (0) target = $region61
    $region60: #{_lambda_.1} parent=1 // pred_region
      %s2312 = ssub.s32 64, 64
      %2313 = vsyncadd [#allocation12], %s2312
      %s2314 = sshll.u32 [#allocation13], 4
      %s2315 = int_to_ptr.vmem [resolvable:$true] %s2314
      %2320 = dma.vmem_to_hbm [thread:$0]  %s2315, 64, %s11, [#allocation12], 32, 32, 2
    $region61: #{_lambda_.1} parent=1 // pred_fallthru
      _
    // Predicated region
    $region62: #{_lambda_.1} parent=1 // pred_check
      _
    $region63: #{_lambda_.1} parent=1 // pred_check_branch
      %2322 = sbr.rel (0) target = $region65
    $region64: #{_lambda_.1} parent=1 // pred_region
      %2323 = dma.done [#allocation6], 32
    $region65: #{_lambda_.1} parent=1 // pred_fallthru
      _
    // Predicated region
    $region66: #{_lambda_.1} parent=1 // pred_check
      _
    $region67: #{_lambda_.1} parent=1 // pred_check_branch
      %2325 = sbr.rel (0) target = $region69
    $region68: #{_lambda_.1} parent=1 // pred_region
      %2326 = dma.done [#allocation12], 64
    $region69: #{_lambda_.1} parent=1 // pred_fallthru
      _
    // Predicated region
    $region70: #{_lambda_.1} parent=1 // pred_check
      _
    $region71: #{_lambda_.1} parent=1 // pred_check_branch
      %2328 = sbr.rel (0) target = $region73
    $region72: #{_lambda_.1} parent=1 // pred_region
      %2329 = dma.done [#allocation12], 64
    $region73: #{_lambda_.1} parent=1 // pred_fallthru
      _
    %2330 = vsyncpa [#allocation5], 1
    %2331 = vsyncpa [#allocation8], 1
    %2332 = vsyncpa [#allocation6], 1
    %2333 = vsyncpa [#allocation12], 1

</llo_original>
